<compile_context>
chip_gen: v6e
topology: v6e:2x2x1
jax: 0.10.0
libtpu: 0.0.40
codegen_flags: <defaults>
</compile_context>

<pallas_src>
from functools import partial

import jax
import jax.numpy as jnp
from jax import lax
from jax.experimental import pallas as pl
from jax.experimental.pallas import tpu as pltpu


# ---------------------------------------------------------------------------
# Fused kernel: per-step channel attention + attention-scaled complex 3x3 conv
# (stride 1, padding 1) expressed as a single im2col matmul.
# ---------------------------------------------------------------------------
def _cbam_fused_kernel(x_ref, w1_ref, b1_ref, w2_ref, b2_ref,
                       wflT_ref, bf_ref, out_ref, pad_ref, col_ref,
                       *, transposed_out):
    # x_ref    : (Nb, Ti, Fr, 2C)     channels-last, lanes = [re-chans | im-chans]
    # wflT_ref : (2Co, 9*2C)          fused+flattened complex conv weight (transposed)
    # bf_ref   : (2Co, 1) or (1, 2Co) fused complex bias
    # out_ref  : (2Co, Nb*Ti*Fr) if transposed_out else (Nb, Ti*Fr, 2Co)
    # pad_ref  : (Nb, Ti+2, Fr+2, 2C) zero-haloed, attention-scaled scratch
    # col_ref  : (Nb, Ti, Fr, 9*2C)   im2col scratch
    Nb, Ti, Fr, C2 = x_ref.shape
    C = C2 // 2
    Co2, K = wflT_ref.shape
    M = Nb * Ti * Fr

    # ---- channel attention on the resident block --------------------------
    x = x_ref[...]                                        # (Nb, Ti, Fr, 2C)
    re = x[..., :C]
    im = x[..., C:]
    mag = jnp.sqrt(re * re + im * im).reshape(Nb, Ti * Fr, C)

    # Pooled mean as a ones-row MXU matmul (avoids an XLU sublane reduce).
    ones_row = jnp.full((1, Ti * Fr), 1.0 / float(Ti * Fr), jnp.float32)
    pooled = jnp.concatenate(
        [jnp.dot(ones_row, mag[b], preferred_element_type=jnp.float32)
         for b in range(Nb)], axis=0)                     # (Nb, C)

    h = jnp.maximum(
        jnp.dot(pooled, w1_ref[...], preferred_element_type=jnp.float32)
        + b1_ref[...], 0.0)
    att = jax.nn.sigmoid(
        jnp.dot(h, w2_ref[...], preferred_element_type=jnp.float32)
        + b2_ref[...])                                    # (Nb, C)
    att2 = jnp.concatenate([att, att], axis=1)            # (Nb, 2C): same re/im scale

    # ---- padded input: zero ONLY the halo ring; fuse attention into the fill ----
    zrow = jnp.zeros((Nb, 1, Fr + 2, C2), jnp.float32)
    zcol = jnp.zeros((Nb, Ti, 1, C2), jnp.float32)
    pad_ref[:, 0:1, :, :] = zrow
    pad_ref[:, Ti + 1:Ti + 2, :, :] = zrow
    pad_ref[:, 1:Ti + 1, 0:1, :] = zcol
    pad_ref[:, 1:Ti + 1, Fr + 1:Fr + 2, :] = zcol
    pad_ref[:, 1:Ti + 1, 1:Fr + 1, :] = x * att2[:, None, None, :]

    # ---- im2col: 9 plain window copies, then ONE big-K MXU matmul ---------
    for t in range(9):
        di, dj = t // 3, t % 3
        col_ref[:, :, :, t * C2:(t + 1) * C2] = pad_ref[:, di:di + Ti, dj:dj + Fr, :]

    colm = col_ref[...].reshape(M, K)                     # leading-dim merge only

    nt_dims = (((1,), (1,)), ((), ()))                    # contract on last dims (A @ B^T)
    if transposed_out:
        # (2Co, K) x (M, K)^T -> (2Co, M): lane dim = M (>=128, unmasked stores).
        accT = lax.dot_general(wflT_ref[...], colm, nt_dims,
                               preferred_element_type=jnp.float32)
        out_ref[...] = (accT + bf_ref[...]).astype(out_ref.dtype)
    else:
        # (M, K) x (2Co, K)^T -> (M, 2Co): already lane-dense when 2Co >= 128.
        acc = lax.dot_general(colm, wflT_ref[...], nt_dims,
                              preferred_element_type=jnp.float32)
        out_ref[...] = (acc + bf_ref[...]).reshape(Nb, Ti * Fr, Co2).astype(out_ref.dtype)


# ---------------------------------------------------------------------------
# Wrapper: one input relayout pass, tiny fused weight prep, one output
# relayout pass.
# ---------------------------------------------------------------------------
def cbam_forward(x, params):
    B, C, Ti, Fr, _ = x.shape
    Cr = params["w1"].shape[1]
    Co = params["conv_w_re"].shape[3]
    C2, Co2 = 2 * C, 2 * Co

    # Single input relayout pass: (B,C,Ti,Fr,2) -> (B,Ti,Fr,2C), lanes=[re|im].
    x_t = jnp.transpose(x, (0, 2, 3, 4, 1)).reshape(B, Ti, Fr, C2)

    # Fused complex-conv weight, flattened for im2col and stored TRANSPOSED so
    # both matmul orientations are native A @ B^T forms:
    #   input rows [0:C)  (re chans) -> [ w_re | w_im ]
    #   input rows [C:2C) (im chans) -> [-w_im | w_re ]
    w_re, w_im = params["conv_w_re"], params["conv_w_im"]
    wf = jnp.concatenate(
        [jnp.concatenate([w_re, w_im], axis=3),
         jnp.concatenate([-w_im, w_re], axis=3)], axis=2)          # (3,3,2C,2Co)
    wflT = jnp.transpose(wf.reshape(9 * C2, Co2))                  # (2Co, 9*2C)
    bf = jnp.concatenate(
        [params["conv_b_re"] - params["conv_b_im"],
         params["conv_b_re"] + params["conv_b_im"]], axis=1)       # (1, 2Co)

    transposed_out = Co2 < 128

    # ---- VMEM budget, Nb (batch elements per step), vmem limit -------------
    try:
        vmem_cap = int(pltpu.get_tpu_info().vmem_capacity_bytes)
    except Exception:
        vmem_cap = 64 << 20
    per_item = 4 * (2 * Ti * Fr * C2                 # input block (double-buffered)
                    + 2 * Ti * Fr * Co2              # output block (double-buffered)
                    + (Ti + 2) * (Fr + 2) * C2       # padded scratch
                    + 2 * Ti * Fr * 9 * C2           # im2col scratch + loaded value
                    + Ti * Fr * Co2)                 # f32 matmul result
    budget = min(24 << 20, vmem_cap // 3)
    Nb = 1
    for cand in range(1, B + 1):
        if B % cand == 0 and cand * per_item <= budget:
            Nb = cand
    M = Nb * Ti * Fr

    w_bytes = 4 * int(wflT.size + bf.size + params["w1"].size + params["b1"].size
                      + params["w2"].size + params["b2"].size)
    need = Nb * per_item + 2 * w_bytes
    vmem_limit = int(min(int(0.75 * vmem_cap), max(16 << 20, int(1.5 * need))))

    # ---- specs --------------------------------------------------------------
    in_specs = [
        pl.BlockSpec((Nb, Ti, Fr, C2), lambda g: (g, 0, 0, 0)),
        pl.BlockSpec((C, Cr), lambda g: (0, 0)),
        pl.BlockSpec((1, Cr), lambda g: (0, 0)),
        pl.BlockSpec((Cr, C), lambda g: (0, 0)),
        pl.BlockSpec((1, C), lambda g: (0, 0)),
        pl.BlockSpec((Co2, 9 * C2), lambda g: (0, 0)),
    ]
    if transposed_out:
        bias = jnp.transpose(bf)                                   # (2Co, 1)
        in_specs.append(pl.BlockSpec((Co2, 1), lambda g: (0, 0)))
        out_shape = jax.ShapeDtypeStruct((Co2, B * Ti * Fr), jnp.float32)
        out_spec = pl.BlockSpec((Co2, M), lambda g: (0, g))
    else:
        bias = bf                                                  # (1, 2Co)
        in_specs.append(pl.BlockSpec((1, Co2), lambda g: (0, 0)))
        out_shape = jax.ShapeDtypeStruct((B, Ti * Fr, Co2), jnp.float32)
        out_spec = pl.BlockSpec((Nb, Ti * Fr, Co2), lambda g: (g, 0, 0))

    conv_flops = 2 * B * Ti * Fr * (9 * C2) * Co2
    mlp_flops = 2 * B * (Ti * Fr * C + C * Cr + Cr * C)
    cost = pl.CostEstimate(
        flops=int(conv_flops + mlp_flops),
        transcendentals=int(B * (Ti * Fr * C + C)),
        bytes_accessed=int(4 * (x_t.size + Co2 * B * Ti * Fr + wflT.size)))

    out = pl.pallas_call(
        partial(_cbam_fused_kernel, transposed_out=transposed_out),
        grid=(B // Nb,),
        in_specs=in_specs,
        out_specs=out_spec,
        out_shape=out_shape,
        scratch_shapes=[
            pltpu.VMEM((Nb, Ti + 2, Fr + 2, C2), jnp.float32),   # padded input
            pltpu.VMEM((Nb, Ti, Fr, 9 * C2), jnp.float32),       # im2col buffer
        ],
        compiler_params=pltpu.CompilerParams(
            dimension_semantics=("parallel",),
            vmem_limit_bytes=vmem_limit),
        cost_estimate=cost,
    )(x_t, params["w1"], params["b1"], params["w2"], params["b2"], wflT, bias)

    # Single output relayout pass back to the PyTorch layout (B,Co,Ti,Fr,2).
    if transposed_out:
        return jnp.transpose(out.reshape(2, Co, B, Ti, Fr), (2, 1, 3, 4, 0))
    return jnp.transpose(out.reshape(B, Ti, Fr, 2, Co), (0, 4, 1, 2, 3))


# ---------------------------------------------------------------------------
# Deterministic parameter init (shapes from CBAM.__init__)
# ---------------------------------------------------------------------------
def init_params(key, in_dim, out_dim, ratio):
    cr = in_dim // ratio
    ks = jax.random.split(key, 8)
    s = 0.2
    return dict(
        w1=s * jax.random.normal(ks[0], (in_dim, cr), jnp.float32),       # linear_r
        b1=s * jax.random.normal(ks[1], (1, cr), jnp.float32),
        w2=s * jax.random.normal(ks[2], (cr, in_dim), jnp.float32),       # linear
        b2=s * jax.random.normal(ks[3], (1, in_dim), jnp.float32),
        conv_w_re=s * jax.random.normal(ks[4], (3, 3, in_dim, out_dim), jnp.float32),
        conv_w_im=s * jax.random.normal(ks[5], (3, 3, in_dim, out_dim), jnp.float32),
        conv_b_re=s * jax.random.normal(ks[6], (1, out_dim), jnp.float32),
        conv_b_im=s * jax.random.normal(ks[7], (1, out_dim), jnp.float32),
    )


# Pure-JAX reference (sanity check of the Pallas kernel)
def cbam_reference(x, p):
    B, C, Ti, Fr, _ = x.shape
    xr, xi = x[..., 0], x[..., 1]
    mag = jnp.sqrt(xr ** 2 + xi ** 2)
    pooled = mag.mean(axis=(2, 3))
    h = jax.nn.relu(pooled @ p["w1"] + p["b1"][0])
    att = jax.nn.sigmoid(h @ p["w2"] + p["b2"][0]).reshape(B, C, 1, 1, 1)
    xs = x * att
    xsr = jnp.transpose(xs[..., 0], (0, 2, 3, 1))
    xsi = jnp.transpose(xs[..., 1], (0, 2, 3, 1))

    def conv(inp, w):
        return lax.conv_general_dilated(
            inp, w, (1, 1), "SAME",
            dimension_numbers=("NHWC", "HWIO", "NHWC"),
            precision=lax.Precision.HIGHEST)

    out_re = (conv(xsr, p["conv_w_re"]) + p["conv_b_re"][0]) \
           - (conv(xsi, p["conv_w_im"]) + p["conv_b_im"][0])
    out_im = (conv(xsi, p["conv_w_re"]) + p["conv_b_re"][0]) \
           + (conv(xsr, p["conv_w_im"]) + p["conv_b_im"][0])
    return jnp.stack([jnp.transpose(out_re, (0, 3, 1, 2)),
                      jnp.transpose(out_im, (0, 3, 1, 2))], axis=-1)


if __name__ == "__main__":
    B, in_dim, out_dim, ratio, Ti, Fr = 2, 4, 4, 2, 16, 16
    key = jax.random.PRNGKey(0)
    kx, kp = jax.random.split(key)
    x = jax.random.normal(kx, (B, in_dim, Ti, Fr, 2), jnp.float32)
    params = init_params(kp, in_dim, out_dim, ratio)

    out = jax.jit(cbam_forward)(x, params)
    out = jax.block_until_ready(out)

    assert out.shape == (B, out_dim, Ti, Fr, 2), out.shape
    ref = cbam_reference(x, params)
    max_err = float(jnp.max(jnp.abs(out - ref)))
    if max_err > 2e-2:
        raise SystemExit(f"mismatch vs reference: max abs err {max_err}")
    print("KERNEL_OK")
</pallas_src>

<mosaic_0001>
module attributes {stable_mosaic.version = 11 : i64} {
  func.func @_cbam_fused_kernel(%arg0: i32, %arg1: memref<2x16x16x8xf32, #tpu.memory_space<vmem>>, %arg2: memref<4x2xf32, #tpu.memory_space<vmem>>, %arg3: memref<1x2xf32, #tpu.memory_space<vmem>>, %arg4: memref<2x4xf32, #tpu.memory_space<vmem>>, %arg5: memref<1x4xf32, #tpu.memory_space<vmem>>, %arg6: memref<8x72xf32, #tpu.memory_space<vmem>>, %arg7: memref<8x1xf32, #tpu.memory_space<vmem>>, %arg8: memref<8x512xf32, #tpu.memory_space<vmem>>, %arg9: memref<2x18x18x8xf32, #tpu.memory_space<vmem>>, %arg10: memref<2x16x16x72xf32, #tpu.memory_space<vmem>>) attributes {dimension_semantics = [#tpu.dimension_semantics<parallel>], iteration_bounds = array<i64: 1>, scalar_prefetch = 0 : i64, scratch_operands = 2 : i64, tpu.core_type = #tpu.core_type<tc>, window_params = [{transform_indices = @transform_0, window_bounds = array<i64: 2, 16, 16, 8>}, {pipeline_mode = #tpu.pipeline_mode<synchronous>, transform_indices = @transform_1, window_bounds = array<i64: 4, 2>}, {pipeline_mode = #tpu.pipeline_mode<synchronous>, transform_indices = @transform_2, window_bounds = array<i64: 1, 2>}, {pipeline_mode = #tpu.pipeline_mode<synchronous>, transform_indices = @transform_3, window_bounds = array<i64: 2, 4>}, {pipeline_mode = #tpu.pipeline_mode<synchronous>, transform_indices = @transform_4, window_bounds = array<i64: 1, 4>}, {pipeline_mode = #tpu.pipeline_mode<synchronous>, transform_indices = @transform_5, window_bounds = array<i64: 8, 72>}, {pipeline_mode = #tpu.pipeline_mode<synchronous>, transform_indices = @transform_6, window_bounds = array<i64: 8, 1>}, {transform_indices = @transform_7, window_bounds = array<i64: 8, 512>}]} {
    %c0 = arith.constant 0 : index
    %c0_0 = arith.constant 0 : index
    %c0_1 = arith.constant 0 : index
    %c0_2 = arith.constant 0 : index
    %0 = vector.load %arg1[%c0, %c0_0, %c0_1, %c0_2] : memref<2x16x16x8xf32, #tpu.memory_space<vmem>>, vector<2x16x16x8xf32>
    %1 = vector.extract_strided_slice %0 {offsets = [0, 0, 0, 0], sizes = [2, 16, 16, 4], strides = [1, 1, 1, 1]} : vector<2x16x16x8xf32> to vector<2x16x16x4xf32>
    %2 = vector.extract_strided_slice %0 {offsets = [0, 0, 0, 4], sizes = [2, 16, 16, 4], strides = [1, 1, 1, 1]} : vector<2x16x16x8xf32> to vector<2x16x16x4xf32>
    %3 = arith.mulf %1, %1 : vector<2x16x16x4xf32>
    %4 = arith.mulf %2, %2 : vector<2x16x16x4xf32>
    %5 = arith.addf %3, %4 : vector<2x16x16x4xf32>
    %6 = math.sqrt %5 : vector<2x16x16x4xf32>
    %7 = vector.shape_cast %6 : vector<2x16x16x4xf32> to vector<2x256x4xf32>
    %cst = arith.constant 3.906250e-03 : f32
    %8 = vector.broadcast %cst : f32 to vector<1x256xf32>
    %9 = vector.extract_strided_slice %7 {offsets = [0, 0, 0], sizes = [1, 256, 4], strides = [1, 1, 1]} : vector<2x256x4xf32> to vector<1x256x4xf32>
    %10 = vector.shape_cast %9 : vector<1x256x4xf32> to vector<256x4xf32>
    %cst_3 = arith.constant dense<0.000000e+00> : vector<1x4xf32>
    %11 = tpu.matmul %8, %10, %cst_3 {dimension_numbers = #tpu.dot_dimension_numbers<[1], [0], [0], [1], [0, 0, 1, 1], [], []>} : vector<1x256xf32>, vector<256x4xf32>, vector<1x4xf32> -> vector<1x4xf32>
    %12 = vector.extract_strided_slice %7 {offsets = [1, 0, 0], sizes = [1, 256, 4], strides = [1, 1, 1]} : vector<2x256x4xf32> to vector<1x256x4xf32>
    %13 = vector.shape_cast %12 : vector<1x256x4xf32> to vector<256x4xf32>
    %cst_4 = arith.constant dense<0.000000e+00> : vector<1x4xf32>
    %14 = tpu.matmul %8, %13, %cst_4 {dimension_numbers = #tpu.dot_dimension_numbers<[1], [0], [0], [1], [0, 0, 1, 1], [], []>} : vector<1x256xf32>, vector<256x4xf32>, vector<1x4xf32> -> vector<1x4xf32>
    %15 = tpu.concatenate %11, %14 in 0 : vector<1x4xf32>, vector<1x4xf32> -> vector<2x4xf32>
    %c0_5 = arith.constant 0 : index
    %c0_6 = arith.constant 0 : index
    %16 = vector.load %arg2[%c0_5, %c0_6] : memref<4x2xf32, #tpu.memory_space<vmem>>, vector<4x2xf32>
    %cst_7 = arith.constant dense<0.000000e+00> : vector<2x2xf32>
    %17 = tpu.matmul %15, %16, %cst_7 {dimension_numbers = #tpu.dot_dimension_numbers<[1], [0], [0], [1], [0, 0, 1, 1], [], []>} : vector<2x4xf32>, vector<4x2xf32>, vector<2x2xf32> -> vector<2x2xf32>
    %c0_8 = arith.constant 0 : index
    %c0_9 = arith.constant 0 : index
    %18 = vector.load %arg3[%c0_8, %c0_9] : memref<1x2xf32, #tpu.memory_space<vmem>>, vector<1x2xf32>
    %19 = vector.broadcast %18 : vector<1x2xf32> to vector<2x2xf32>
    %20 = arith.addf %17, %19 : vector<2x2xf32>
    %cst_10 = arith.constant 0.000000e+00 : f32
    %21 = vector.broadcast %cst_10 : f32 to vector<2x2xf32>
    %22 = arith.maximumf %20, %21 : vector<2x2xf32>
    %c0_11 = arith.constant 0 : index
    %c0_12 = arith.constant 0 : index
    %23 = vector.load %arg4[%c0_11, %c0_12] : memref<2x4xf32, #tpu.memory_space<vmem>>, vector<2x4xf32>
    %cst_13 = arith.constant dense<0.000000e+00> : vector<2x4xf32>
    %24 = tpu.matmul %22, %23, %cst_13 {dimension_numbers = #tpu.dot_dimension_numbers<[1], [0], [0], [1], [0, 0, 1, 1], [], []>} : vector<2x2xf32>, vector<2x4xf32>, vector<2x4xf32> -> vector<2x4xf32>
    %c0_14 = arith.constant 0 : index
    %c0_15 = arith.constant 0 : index
    %25 = vector.load %arg5[%c0_14, %c0_15] : memref<1x4xf32, #tpu.memory_space<vmem>>, vector<1x4xf32>
    %26 = vector.broadcast %25 : vector<1x4xf32> to vector<2x4xf32>
    %27 = arith.addf %24, %26 : vector<2x4xf32>
    %28 = arith.negf %27 : vector<2x4xf32>
    %29 = math.exp %28 : vector<2x4xf32>
    %cst_16 = arith.constant 1.000000e+00 : f32
    %30 = vector.broadcast %cst_16 : f32 to vector<2x4xf32>
    %31 = arith.addf %30, %29 : vector<2x4xf32>
    %32 = arith.divf %30, %31 : vector<2x4xf32>
    %33 = tpu.concatenate %32, %32 in 1 : vector<2x4xf32>, vector<2x4xf32> -> vector<2x8xf32>
    %cst_17 = arith.constant 0.000000e+00 : f32
    %34 = vector.broadcast %cst_17 : f32 to vector<2x1x18x8xf32>
    %cst_18 = arith.constant 0.000000e+00 : f32
    %35 = vector.broadcast %cst_18 : f32 to vector<2x16x1x8xf32>
    %c0_19 = arith.constant 0 : index
    %c0_20 = arith.constant 0 : index
    %c0_21 = arith.constant 0 : index
    %c0_22 = arith.constant 0 : index
    %36 = vector.load %arg9[%c0_19, %c0_20, %c0_21, %c0_22] : memref<2x18x18x8xf32, #tpu.memory_space<vmem>>, vector<2x1x18x8xf32>
    tpu.vector_store %arg9[%c0_19, %c0_20, %c0_21, %c0_22], %34 {strides = array<i32>} : memref<2x18x18x8xf32, #tpu.memory_space<vmem>>, vector<2x1x18x8xf32>,
    %c0_23 = arith.constant 0 : index
    %c17 = arith.constant 17 : index
    %c0_24 = arith.constant 0 : index
    %c0_25 = arith.constant 0 : index
    %37 = vector.load %arg9[%c0_23, %c17, %c0_24, %c0_25] : memref<2x18x18x8xf32, #tpu.memory_space<vmem>>, vector<2x1x18x8xf32>
    tpu.vector_store %arg9[%c0_23, %c17, %c0_24, %c0_25], %34 {strides = array<i32>} : memref<2x18x18x8xf32, #tpu.memory_space<vmem>>, vector<2x1x18x8xf32>,
    %c0_26 = arith.constant 0 : index
    %c1 = arith.constant 1 : index
    %c0_27 = arith.constant 0 : index
    %c0_28 = arith.constant 0 : index
    %38 = vector.load %arg9[%c0_26, %c1, %c0_27, %c0_28] : memref<2x18x18x8xf32, #tpu.memory_space<vmem>>, vector<2x16x1x8xf32>
    tpu.vector_store %arg9[%c0_26, %c1, %c0_27, %c0_28], %35 {strides = array<i32>} : memref<2x18x18x8xf32, #tpu.memory_space<vmem>>, vector<2x16x1x8xf32>,
    %c0_29 = arith.constant 0 : index
    %c1_30 = arith.constant 1 : index
    %c17_31 = arith.constant 17 : index
    %c0_32 = arith.constant 0 : index
    %39 = vector.load %arg9[%c0_29, %c1_30, %c17_31, %c0_32] : memref<2x18x18x8xf32, #tpu.memory_space<vmem>>, vector<2x16x1x8xf32>
    tpu.vector_store %arg9[%c0_29, %c1_30, %c17_31, %c0_32], %35 {strides = array<i32>} : memref<2x18x18x8xf32, #tpu.memory_space<vmem>>, vector<2x16x1x8xf32>,
    %40 = vector.shape_cast %33 : vector<2x8xf32> to vector<2x1x1x8xf32>
    %41 = vector.broadcast %40 : vector<2x1x1x8xf32> to vector<2x16x16x8xf32>
    %42 = arith.mulf %0, %41 : vector<2x16x16x8xf32>
    %c0_33 = arith.constant 0 : index
    %c1_34 = arith.constant 1 : index
    %c1_35 = arith.constant 1 : index
    %c0_36 = arith.constant 0 : index
    %43 = vector.load %arg9[%c0_33, %c1_34, %c1_35, %c0_36] : memref<2x18x18x8xf32, #tpu.memory_space<vmem>>, vector<2x16x16x8xf32>
    tpu.vector_store %arg9[%c0_33, %c1_34, %c1_35, %c0_36], %42 {strides = array<i32>} : memref<2x18x18x8xf32, #tpu.memory_space<vmem>>, vector<2x16x16x8xf32>,
    %c0_37 = arith.constant 0 : index
    %c0_38 = arith.constant 0 : index
    %c0_39 = arith.constant 0 : index
    %c0_40 = arith.constant 0 : index
    %44 = vector.load %arg9[%c0_37, %c0_38, %c0_39, %c0_40] : memref<2x18x18x8xf32, #tpu.memory_space<vmem>>, vector<2x16x16x8xf32>
    %c0_41 = arith.constant 0 : index
    %c0_42 = arith.constant 0 : index
    %c0_43 = arith.constant 0 : index
    %c0_44 = arith.constant 0 : index
    %45 = vector.load %arg10[%c0_41, %c0_42, %c0_43, %c0_44] : memref<2x16x16x72xf32, #tpu.memory_space<vmem>>, vector<2x16x16x8xf32>
    tpu.vector_store %arg10[%c0_41, %c0_42, %c0_43, %c0_44], %44 {strides = array<i32>} : memref<2x16x16x72xf32, #tpu.memory_space<vmem>>, vector<2x16x16x8xf32>,
    %c0_45 = arith.constant 0 : index
    %c0_46 = arith.constant 0 : index
    %c1_47 = arith.constant 1 : index
    %c0_48 = arith.constant 0 : index
    %46 = vector.load %arg9[%c0_45, %c0_46, %c1_47, %c0_48] : memref<2x18x18x8xf32, #tpu.memory_space<vmem>>, vector<2x16x16x8xf32>
    %c0_49 = arith.constant 0 : index
    %c0_50 = arith.constant 0 : index
    %c0_51 = arith.constant 0 : index
    %c8 = arith.constant 8 : index
    %47 = vector.load %arg10[%c0_49, %c0_50, %c0_51, %c8] : memref<2x16x16x72xf32, #tpu.memory_space<vmem>>, vector<2x16x16x8xf32>
    tpu.vector_store %arg10[%c0_49, %c0_50, %c0_51, %c8], %46 {strides = array<i32>} : memref<2x16x16x72xf32, #tpu.memory_space<vmem>>, vector<2x16x16x8xf32>,
    %c0_52 = arith.constant 0 : index
    %c0_53 = arith.constant 0 : index
    %c2 = arith.constant 2 : index
    %c0_54 = arith.constant 0 : index
    %48 = vector.load %arg9[%c0_52, %c0_53, %c2, %c0_54] : memref<2x18x18x8xf32, #tpu.memory_space<vmem>>, vector<2x16x16x8xf32>
    %c0_55 = arith.constant 0 : index
    %c0_56 = arith.constant 0 : index
    %c0_57 = arith.constant 0 : index
    %c16 = arith.constant 16 : index
    %49 = vector.load %arg10[%c0_55, %c0_56, %c0_57, %c16] : memref<2x16x16x72xf32, #tpu.memory_space<vmem>>, vector<2x16x16x8xf32>
    tpu.vector_store %arg10[%c0_55, %c0_56, %c0_57, %c16], %48 {strides = array<i32>} : memref<2x16x16x72xf32, #tpu.memory_space<vmem>>, vector<2x16x16x8xf32>,
    %c0_58 = arith.constant 0 : index
    %c1_59 = arith.constant 1 : index
    %c0_60 = arith.constant 0 : index
    %c0_61 = arith.constant 0 : index
    %50 = vector.load %arg9[%c0_58, %c1_59, %c0_60, %c0_61] : memref<2x18x18x8xf32, #tpu.memory_space<vmem>>, vector<2x16x16x8xf32>
    %c0_62 = arith.constant 0 : index
    %c0_63 = arith.constant 0 : index
    %c0_64 = arith.constant 0 : index
    %c24 = arith.constant 24 : index
    %51 = vector.load %arg10[%c0_62, %c0_63, %c0_64, %c24] : memref<2x16x16x72xf32, #tpu.memory_space<vmem>>, vector<2x16x16x8xf32>
    tpu.vector_store %arg10[%c0_62, %c0_63, %c0_64, %c24], %50 {strides = array<i32>} : memref<2x16x16x72xf32, #tpu.memory_space<vmem>>, vector<2x16x16x8xf32>,
    %c0_65 = arith.constant 0 : index
    %c1_66 = arith.constant 1 : index
    %c1_67 = arith.constant 1 : index
    %c0_68 = arith.constant 0 : index
    %52 = vector.load %arg9[%c0_65, %c1_66, %c1_67, %c0_68] : memref<2x18x18x8xf32, #tpu.memory_space<vmem>>, vector<2x16x16x8xf32>
    %c0_69 = arith.constant 0 : index
    %c0_70 = arith.constant 0 : index
    %c0_71 = arith.constant 0 : index
    %c32 = arith.constant 32 : index
    %53 = vector.load %arg10[%c0_69, %c0_70, %c0_71, %c32] : memref<2x16x16x72xf32, #tpu.memory_space<vmem>>, vector<2x16x16x8xf32>
    tpu.vector_store %arg10[%c0_69, %c0_70, %c0_71, %c32], %52 {strides = array<i32>} : memref<2x16x16x72xf32, #tpu.memory_space<vmem>>, vector<2x16x16x8xf32>,
    %c0_72 = arith.constant 0 : index
    %c1_73 = arith.constant 1 : index
    %c2_74 = arith.constant 2 : index
    %c0_75 = arith.constant 0 : index
    %54 = vector.load %arg9[%c0_72, %c1_73, %c2_74, %c0_75] : memref<2x18x18x8xf32, #tpu.memory_space<vmem>>, vector<2x16x16x8xf32>
    %c0_76 = arith.constant 0 : index
    %c0_77 = arith.constant 0 : index
    %c0_78 = arith.constant 0 : index
    %c40 = arith.constant 40 : index
    %55 = vector.load %arg10[%c0_76, %c0_77, %c0_78, %c40] : memref<2x16x16x72xf32, #tpu.memory_space<vmem>>, vector<2x16x16x8xf32>
    tpu.vector_store %arg10[%c0_76, %c0_77, %c0_78, %c40], %54 {strides = array<i32>} : memref<2x16x16x72xf32, #tpu.memory_space<vmem>>, vector<2x16x16x8xf32>,
    %c0_79 = arith.constant 0 : index
    %c2_80 = arith.constant 2 : index
    %c0_81 = arith.constant 0 : index
    %c0_82 = arith.constant 0 : index
    %56 = vector.load %arg9[%c0_79, %c2_80, %c0_81, %c0_82] : memref<2x18x18x8xf32, #tpu.memory_space<vmem>>, vector<2x16x16x8xf32>
    %c0_83 = arith.constant 0 : index
    %c0_84 = arith.constant 0 : index
    %c0_85 = arith.constant 0 : index
    %c48 = arith.constant 48 : index
    %57 = vector.load %arg10[%c0_83, %c0_84, %c0_85, %c48] : memref<2x16x16x72xf32, #tpu.memory_space<vmem>>, vector<2x16x16x8xf32>
    tpu.vector_store %arg10[%c0_83, %c0_84, %c0_85, %c48], %56 {strides = array<i32>} : memref<2x16x16x72xf32, #tpu.memory_space<vmem>>, vector<2x16x16x8xf32>,
    %c0_86 = arith.constant 0 : index
    %c2_87 = arith.constant 2 : index
    %c1_88 = arith.constant 1 : index
    %c0_89 = arith.constant 0 : index
    %58 = vector.load %arg9[%c0_86, %c2_87, %c1_88, %c0_89] : memref<2x18x18x8xf32, #tpu.memory_space<vmem>>, vector<2x16x16x8xf32>
    %c0_90 = arith.constant 0 : index
    %c0_91 = arith.constant 0 : index
    %c0_92 = arith.constant 0 : index
    %c56 = arith.constant 56 : index
    %59 = vector.load %arg10[%c0_90, %c0_91, %c0_92, %c56] : memref<2x16x16x72xf32, #tpu.memory_space<vmem>>, vector<2x16x16x8xf32>
    tpu.vector_store %arg10[%c0_90, %c0_91, %c0_92, %c56], %58 {strides = array<i32>} : memref<2x16x16x72xf32, #tpu.memory_space<vmem>>, vector<2x16x16x8xf32>,
    %c0_93 = arith.constant 0 : index
    %c2_94 = arith.constant 2 : index
    %c2_95 = arith.constant 2 : index
    %c0_96 = arith.constant 0 : index
    %60 = vector.load %arg9[%c0_93, %c2_94, %c2_95, %c0_96] : memref<2x18x18x8xf32, #tpu.memory_space<vmem>>, vector<2x16x16x8xf32>
    %c0_97 = arith.constant 0 : index
    %c0_98 = arith.constant 0 : index
    %c0_99 = arith.constant 0 : index
    %c64 = arith.constant 64 : index
    %61 = vector.load %arg10[%c0_97, %c0_98, %c0_99, %c64] : memref<2x16x16x72xf32, #tpu.memory_space<vmem>>, vector<2x16x16x8xf32>
    tpu.vector_store %arg10[%c0_97, %c0_98, %c0_99, %c64], %60 {strides = array<i32>} : memref<2x16x16x72xf32, #tpu.memory_space<vmem>>, vector<2x16x16x8xf32>,
    %c0_100 = arith.constant 0 : index
    %c0_101 = arith.constant 0 : index
    %c0_102 = arith.constant 0 : index
    %c0_103 = arith.constant 0 : index
    %62 = vector.load %arg10[%c0_100, %c0_101, %c0_102, %c0_103] : memref<2x16x16x72xf32, #tpu.memory_space<vmem>>, vector<2x16x16x72xf32>
    %63 = vector.shape_cast %62 : vector<2x16x16x72xf32> to vector<512x72xf32>
    %c0_104 = arith.constant 0 : index
    %c0_105 = arith.constant 0 : index
    %64 = vector.load %arg6[%c0_104, %c0_105] : memref<8x72xf32, #tpu.memory_space<vmem>>, vector<8x72xf32>
    %cst_106 = arith.constant dense<0.000000e+00> : vector<8x512xf32>
    %65 = tpu.matmul %64, %63, %cst_106 {dimension_numbers = #tpu.dot_dimension_numbers<[1], [1], [0], [0], [0, 0, 1, 0], [], []>} : vector<8x72xf32>, vector<512x72xf32>, vector<8x512xf32> -> vector<8x512xf32>
    %c0_107 = arith.constant 0 : index
    %c0_108 = arith.constant 0 : index
    %66 = vector.load %arg7[%c0_107, %c0_108] : memref<8x1xf32, #tpu.memory_space<vmem>>, vector<8x1xf32>
    %67 = vector.broadcast %66 : vector<8x1xf32> to vector<8x512xf32>
    %68 = arith.addf %65, %67 : vector<8x512xf32>
    %c0_109 = arith.constant 0 : index
    %c0_110 = arith.constant 0 : index
    %69 = vector.load %arg8[%c0_109, %c0_110] : memref<8x512xf32, #tpu.memory_space<vmem>>, vector<8x512xf32>
    tpu.vector_store %arg8[%c0_109, %c0_110], %68 {strides = array<i32>} : memref<8x512xf32, #tpu.memory_space<vmem>>, vector<8x512xf32>,
    return
  }
  func.func @transform_0(%arg0: i32) -> (i32, i32, i32, i32) {
    %c0_i32 = arith.constant 0 : i32
    %c0_i32_0 = arith.constant 0 : i32
    %c0_i32_1 = arith.constant 0 : i32
    %c0_i32_2 = arith.constant 0 : i32
    return %arg0, %c0_i32, %c0_i32_0, %c0_i32_1 : i32, i32, i32, i32
  }
  func.func @transform_1(%arg0: i32) -> (i32, i32) {
    %c0_i32 = arith.constant 0 : i32
    %c0_i32_0 = arith.constant 0 : i32
    %c0_i32_1 = arith.constant 0 : i32
    return %c0_i32, %c0_i32_0 : i32, i32
  }
  func.func @transform_2(%arg0: i32) -> (i32, i32) {
    %c0_i32 = arith.constant 0 : i32
    %c0_i32_0 = arith.constant 0 : i32
    %c0_i32_1 = arith.constant 0 : i32
    return %c0_i32, %c0_i32_0 : i32, i32
  }
  func.func @transform_3(%arg0: i32) -> (i32, i32) {
    %c0_i32 = arith.constant 0 : i32
    %c0_i32_0 = arith.constant 0 : i32
    %c0_i32_1 = arith.constant 0 : i32
    return %c0_i32, %c0_i32_0 : i32, i32
  }
  func.func @transform_4(%arg0: i32) -> (i32, i32) {
    %c0_i32 = arith.constant 0 : i32
    %c0_i32_0 = arith.constant 0 : i32
    %c0_i32_1 = arith.constant 0 : i32
    return %c0_i32, %c0_i32_0 : i32, i32
  }
  func.func @transform_5(%arg0: i32) -> (i32, i32) {
    %c0_i32 = arith.constant 0 : i32
    %c0_i32_0 = arith.constant 0 : i32
    %c0_i32_1 = arith.constant 0 : i32
    return %c0_i32, %c0_i32_0 : i32, i32
  }
  func.func @transform_6(%arg0: i32) -> (i32, i32) {
    %c0_i32 = arith.constant 0 : i32
    %c0_i32_0 = arith.constant 0 : i32
    %c0_i32_1 = arith.constant 0 : i32
    return %c0_i32, %c0_i32_0 : i32, i32
  }
  func.func @transform_7(%arg0: i32) -> (i32, i32) {
    %c0_i32 = arith.constant 0 : i32
    %c0_i32_0 = arith.constant 0 : i32
    return %c0_i32, %arg0 : i32, i32
  }
}

</mosaic_0001>

<llo_original>
// kernel: neg.1
$region0: #{neg.1}
  #allocation0 [shape = 's32[1]{0}', space=sflag, size = 0x4, scoped, tag = 'scoped memory for neg.1']
  %s0 = inlined_call_operand.vmem [shape: f32[3,3,4,4], index: 0, kind: input, shape index: {}]
  %s1 = inlined_call_operand.vmem [shape: f32[3,3,4,4], index: 1, kind: output, shape index: {}]
  %v2 = vld [vmem:[%s0] sm:$0xf]
  %3 = xla_tuple %v2
  %4 = xla_tuple %3
  %v5 = vxor.u32 %v2, 2147483648
  %6 = xla_tuple %v5
  %7 = vst [vmem:[%s1] sm:$0xf] %v5
  %s8 = scalar_lea.vmem %s0, 12
  %v9 = vld [vmem:[%s8] sm:$0xf]
  %10 = xla_tuple %v9
  %11 = xla_tuple %10
  %v12 = vxor.u32 %v9, 2147483648
  %13 = xla_tuple %v12
  %s14 = scalar_lea.vmem %s1, 12
  %15 = vst [vmem:[%s14] sm:$0xf] %v12
  %s16 = scalar_lea.vmem %s0, 24
  %v17 = vld [vmem:[%s16] sm:$0xf]
  %18 = xla_tuple %v17
  %19 = xla_tuple %18
  %v20 = vxor.u32 %v17, 2147483648
  %21 = xla_tuple %v20
  %s22 = scalar_lea.vmem %s1, 24
  %23 = vst [vmem:[%s22] sm:$0xf] %v20
  %s24 = scalar_lea.vmem %s0, 4
  %v25 = vld [vmem:[%s24] sm:$0xf]
  %26 = xla_tuple %v25
  %27 = xla_tuple %26
  %v28 = vxor.u32 %v25, 2147483648
  %29 = xla_tuple %v28
  %s30 = scalar_lea.vmem %s1, 4
  %31 = vst [vmem:[%s30] sm:$0xf] %v28
  %s32 = scalar_lea.vmem %s0, 16
  %v33 = vld [vmem:[%s32] sm:$0xf]
  %34 = xla_tuple %v33
  %35 = xla_tuple %34
  %v36 = vxor.u32 %v33, 2147483648
  %37 = xla_tuple %v36
  %s38 = scalar_lea.vmem %s1, 16
  %39 = vst [vmem:[%s38] sm:$0xf] %v36
  %s40 = scalar_lea.vmem %s0, 28
  %v41 = vld [vmem:[%s40] sm:$0xf]
  %42 = xla_tuple %v41
  %43 = xla_tuple %42
  %v44 = vxor.u32 %v41, 2147483648
  %45 = xla_tuple %v44
  %s46 = scalar_lea.vmem %s1, 28
  %47 = vst [vmem:[%s46] sm:$0xf] %v44
  %s48 = scalar_lea.vmem %s0, 8
  %v49 = vld [vmem:[%s48] sm:$0xf]
  %50 = xla_tuple %v49
  %51 = xla_tuple %50
  %v52 = vxor.u32 %v49, 2147483648
  %53 = xla_tuple %v52
  %s54 = scalar_lea.vmem %s1, 8
  %55 = vst [vmem:[%s54] sm:$0xf] %v52
  %s56 = scalar_lea.vmem %s0, 20
  %v57 = vld [vmem:[%s56] sm:$0xf]
  %58 = xla_tuple %v57
  %59 = xla_tuple %58
  %v60 = vxor.u32 %v57, 2147483648
  %61 = xla_tuple %v60
  %s62 = scalar_lea.vmem %s1, 20
  %63 = vst [vmem:[%s62] sm:$0xf] %v60
  %s64 = scalar_lea.vmem %s0, 32
  %v65 = vld [vmem:[%s64] sm:$0xf]
  %66 = xla_tuple %v65
  %67 = xla_tuple %66
  %v68 = vxor.u32 %v65, 2147483648
  %69 = xla_tuple %v68
  %s70 = scalar_lea.vmem %s1, 32
  %71 = vst [vmem:[%s70] sm:$0xf] %v68

// kernel: cbam_forward.1
$region0: #{cbam_forward.1}
  #allocation0 [shape = 'u32[]', space=smem, size = 0x4, offset = 0x4, fixed_abs, tag = 'smem constant byte address 0x4 - core index']
  #allocation1 [shape = 'u32[144,128]{1,0:T(1,128)}', space=vmem, size = 0x12000, scoped, tag = 'internal scratch']
  #allocation2 [shape = 'f32[2,18,18,8]{3,2,1,0:T(8,128)}', space=vmem, size = 0x6c000, scoped, tag = 'scratch operand']
  #allocation3 [shape = 'f32[2,16,16,72]{3,2,1,0:T(8,128)}', space=vmem, size = 0x40000, scoped, tag = 'scratch operand']
  %s0 = inlined_call_operand.vmem [shape: f32[2,16,16,8], index: 0, kind: input, shape index: {}]
  %s1 = inlined_call_operand.vmem [shape: f32[4,2], index: 1, kind: input, shape index: {}]
  %s2 = inlined_call_operand.vmem [shape: f32[1,2], index: 2, kind: input, shape index: {}]
  %s3 = inlined_call_operand.vmem [shape: f32[2,4], index: 3, kind: input, shape index: {}]
  %s4 = inlined_call_operand.vmem [shape: f32[1,4], index: 4, kind: input, shape index: {}]
  %s5 = inlined_call_operand.vmem [shape: f32[8,72], index: 5, kind: input, shape index: {}]
  %s6 = inlined_call_operand.vmem [shape: f32[8,1], index: 6, kind: input, shape index: {}]
  %s7 = inlined_call_operand.vmem [shape: f32[8,512], index: 7, kind: output, shape index: {}]
  %s8 = sld [smem:[#allocation0]]
  $region38: #{cbam_forward.1} parent=0
    _
  %s10 = ssub.s32 1, %s8
  %s11 = scalar_select 0, %s10, %s8
  // Predicated region
  $region2: #{cbam_forward.1} parent=0 // pred_check
    _
  $region3: #{cbam_forward.1} parent=0 // pred_check_branch
    %13 = sbr.rel (0) target = $region5
  $region4: #{cbam_forward.1} parent=0 // pred_region
    _
  $region5: #{cbam_forward.1} parent=0 // pred_fallthru
    _
  // Predicated region
  $region6: #{cbam_forward.1} parent=0 // pred_check
    _
  $region7: #{cbam_forward.1} parent=0 // pred_check_branch
    %15 = sbr.rel (0) target = $region9
  $region8: #{cbam_forward.1} parent=0 // pred_region
    _
  $region9: #{cbam_forward.1} parent=0 // pred_fallthru
    _
  // Predicated region
  $region10: #{cbam_forward.1} parent=0 // pred_check
    _
  $region11: #{cbam_forward.1} parent=0 // pred_check_branch
    %17 = sbr.rel (0) target = $region13
  $region12: #{cbam_forward.1} parent=0 // pred_region
    _
  $region13: #{cbam_forward.1} parent=0 // pred_fallthru
    _
  // Predicated region
  $region14: #{cbam_forward.1} parent=0 // pred_check
    _
  $region15: #{cbam_forward.1} parent=0 // pred_check_branch
    %19 = sbr.rel (0) target = $region17
  $region16: #{cbam_forward.1} parent=0 // pred_region
    _
  $region17: #{cbam_forward.1} parent=0 // pred_fallthru
    _
  // Predicated region
  $region18: #{cbam_forward.1} parent=0 // pred_check
    _
  $region19: #{cbam_forward.1} parent=0 // pred_check_branch
    %21 = sbr.rel (0) target = $region21
  $region20: #{cbam_forward.1} parent=0 // pred_region
    _
  $region21: #{cbam_forward.1} parent=0 // pred_fallthru
    _
  // Predicated region
  $region22: #{cbam_forward.1} parent=0 // pred_check
    _
  $region23: #{cbam_forward.1} parent=0 // pred_check_branch
    %23 = sbr.rel (0) target = $region25
  $region24: #{cbam_forward.1} parent=0 // pred_region
    _
  $region25: #{cbam_forward.1} parent=0 // pred_fallthru
    _
  // Predicated region
  $region26: #{cbam_forward.1} parent=0 // pred_check
    _
  $region27: #{cbam_forward.1} parent=0 // pred_check_branch
    %25 = sbr.rel (0) target = $region29
  $region28: #{cbam_forward.1} parent=0 // pred_region
    _
  $region29: #{cbam_forward.1} parent=0 // pred_fallthru
    _
  %v26 = vld [vmem:[%s0] sm:$0xff]
  %v27 = vld [vmem:[%s0 + $0x8] sm:$0xff]
  %v28 = vld [vmem:[%s0 + $0x10] sm:$0xff]
  %v29 = vld [vmem:[%s0 + $0x18] sm:$0xff]
  %v30 = vld [vmem:[%s0 + $0x20] sm:$0xff]
  %v31 = vld [vmem:[%s0 + $0x28] sm:$0xff]
  %v32 = vld [vmem:[%s0 + $0x30] sm:$0xff]
  %v33 = vld [vmem:[%s0 + $0x38] sm:$0xff]
  %v34 = vld [vmem:[%s0 + $0x40] sm:$0xff]
  %v35 = vld [vmem:[%s0 + $0x48] sm:$0xff]
  %v36 = vld [vmem:[%s0 + $0x50] sm:$0xff]
  %v37 = vld [vmem:[%s0 + $0x58] sm:$0xff]
  %v38 = vld [vmem:[%s0 + $0x60] sm:$0xff]
  %v39 = vld [vmem:[%s0 + $0x68] sm:$0xff]
  %v40 = vld [vmem:[%s0 + $0x70] sm:$0xff]
  %v41 = vld [vmem:[%s0 + $0x78] sm:$0xff]
  %v42 = vld [vmem:[%s0 + $0x80] sm:$0xff]
  %v43 = vld [vmem:[%s0 + $0x88] sm:$0xff]
  %v44 = vld [vmem:[%s0 + $0x90] sm:$0xff]
  %v45 = vld [vmem:[%s0 + $0x98] sm:$0xff]
  %v46 = vld [vmem:[%s0 + $0xa0] sm:$0xff]
  %v47 = vld [vmem:[%s0 + $0xa8] sm:$0xff]
  %v48 = vld [vmem:[%s0 + $0xb0] sm:$0xff]
  %v49 = vld [vmem:[%s0 + $0xb8] sm:$0xff]
  %v50 = vld [vmem:[%s0 + $0xc0] sm:$0xff]
  %v51 = vld [vmem:[%s0 + $0xc8] sm:$0xff]
  %v52 = vld [vmem:[%s0 + $0xd0] sm:$0xff]
  %v53 = vld [vmem:[%s0 + $0xd8] sm:$0xff]
  %v54 = vld [vmem:[%s0 + $0xe0] sm:$0xff]
  %v55 = vld [vmem:[%s0 + $0xe8] sm:$0xff]
  %v56 = vld [vmem:[%s0 + $0xf0] sm:$0xff]
  %v57 = vld [vmem:[%s0 + $0xf8] sm:$0xff]
  %v58 = vld [vmem:[%s0 + $0x100] sm:$0xff]
  %v59 = vld [vmem:[%s0 + $0x108] sm:$0xff]
  %v60 = vld [vmem:[%s0 + $0x110] sm:$0xff]
  %v61 = vld [vmem:[%s0 + $0x118] sm:$0xff]
  %v62 = vld [vmem:[%s0 + $0x120] sm:$0xff]
  %v63 = vld [vmem:[%s0 + $0x128] sm:$0xff]
  %v64 = vld [vmem:[%s0 + $0x130] sm:$0xff]
  %v65 = vld [vmem:[%s0 + $0x138] sm:$0xff]
  %v66 = vld [vmem:[%s0 + $0x140] sm:$0xff]
  %v67 = vld [vmem:[%s0 + $0x148] sm:$0xff]
  %v68 = vld [vmem:[%s0 + $0x150] sm:$0xff]
  %v69 = vld [vmem:[%s0 + $0x158] sm:$0xff]
  %v70 = vld [vmem:[%s0 + $0x160] sm:$0xff]
  %v71 = vld [vmem:[%s0 + $0x168] sm:$0xff]
  %v72 = vld [vmem:[%s0 + $0x170] sm:$0xff]
  %v73 = vld [vmem:[%s0 + $0x178] sm:$0xff]
  %v74 = vld [vmem:[%s0 + $0x180] sm:$0xff]
  %v75 = vld [vmem:[%s0 + $0x188] sm:$0xff]
  %v76 = vld [vmem:[%s0 + $0x190] sm:$0xff]
  %v77 = vld [vmem:[%s0 + $0x198] sm:$0xff]
  %v78 = vld [vmem:[%s0 + $0x1a0] sm:$0xff]
  %v79 = vld [vmem:[%s0 + $0x1a8] sm:$0xff]
  %v80 = vld [vmem:[%s0 + $0x1b0] sm:$0xff]
  %v81 = vld [vmem:[%s0 + $0x1b8] sm:$0xff]
  %v82 = vld [vmem:[%s0 + $0x1c0] sm:$0xff]
  %v83 = vld [vmem:[%s0 + $0x1c8] sm:$0xff]
  %v84 = vld [vmem:[%s0 + $0x1d0] sm:$0xff]
  %v85 = vld [vmem:[%s0 + $0x1d8] sm:$0xff]
  %v86 = vld [vmem:[%s0 + $0x1e0] sm:$0xff]
  %v87 = vld [vmem:[%s0 + $0x1e8] sm:$0xff]
  %v88 = vld [vmem:[%s0 + $0x1f0] sm:$0xff]
  %v89 = vld [vmem:[%s0 + $0x1f8] sm:$0xff]
  %v90 = vmul.f32 %v26, %v26
  %v91 = vmul.f32 %v27, %v27
  %v92 = vmul.f32 %v28, %v28
  %v93 = vmul.f32 %v29, %v29
  %v94 = vmul.f32 %v30, %v30
  %v95 = vmul.f32 %v31, %v31
  %v96 = vmul.f32 %v32, %v32
  %v97 = vmul.f32 %v33, %v33
  %v98 = vmul.f32 %v34, %v34
  %v99 = vmul.f32 %v35, %v35
  %v100 = vmul.f32 %v36, %v36
  %v101 = vmul.f32 %v37, %v37
  %v102 = vmul.f32 %v38, %v38
  %v103 = vmul.f32 %v39, %v39
  %v104 = vmul.f32 %v40, %v40
  %v105 = vmul.f32 %v41, %v41
  %v106 = vmul.f32 %v42, %v42
  %v107 = vmul.f32 %v43, %v43
  %v108 = vmul.f32 %v44, %v44
  %v109 = vmul.f32 %v45, %v45
  %v110 = vmul.f32 %v46, %v46
  %v111 = vmul.f32 %v47, %v47
  %v112 = vmul.f32 %v48, %v48
  %v113 = vmul.f32 %v49, %v49
  %v114 = vmul.f32 %v50, %v50
  %v115 = vmul.f32 %v51, %v51
  %v116 = vmul.f32 %v52, %v52
  %v117 = vmul.f32 %v53, %v53
  %v118 = vmul.f32 %v54, %v54
  %v119 = vmul.f32 %v55, %v55
  %v120 = vmul.f32 %v56, %v56
  %v121 = vmul.f32 %v57, %v57
  %v122 = vmul.f32 %v58, %v58
  %v123 = vmul.f32 %v59, %v59
  %v124 = vmul.f32 %v60, %v60
  %v125 = vmul.f32 %v61, %v61
  %v126 = vmul.f32 %v62, %v62
  %v127 = vmul.f32 %v63, %v63
  %v128 = vmul.f32 %v64, %v64
  %v129 = vmul.f32 %v65, %v65
  %v130 = vmul.f32 %v66, %v66
  %v131 = vmul.f32 %v67, %v67
  %v132 = vmul.f32 %v68, %v68
  %v133 = vmul.f32 %v69, %v69
  %v134 = vmul.f32 %v70, %v70
  %v135 = vmul.f32 %v71, %v71
  %v136 = vmul.f32 %v72, %v72
  %v137 = vmul.f32 %v73, %v73
  %v138 = vmul.f32 %v74, %v74
  %v139 = vmul.f32 %v75, %v75
  %v140 = vmul.f32 %v76, %v76
  %v141 = vmul.f32 %v77, %v77
  %v142 = vmul.f32 %v78, %v78
  %v143 = vmul.f32 %v79, %v79
  %v144 = vmul.f32 %v80, %v80
  %v145 = vmul.f32 %v81, %v81
  %v146 = vmul.f32 %v82, %v82
  %v147 = vmul.f32 %v83, %v83
  %v148 = vmul.f32 %v84, %v84
  %v149 = vmul.f32 %v85, %v85
  %v150 = vmul.f32 %v86, %v86
  %v151 = vmul.f32 %v87, %v87
  %v152 = vmul.f32 %v88, %v88
  %v153 = vmul.f32 %v89, %v89
  %218 = vrot.lane.b32.xlu0 %v90, 124
  %v219 = vpop.permute.xlu0 %218
  %220 = vrot.lane.b32.xlu0 %v91, 124
  %v221 = vpop.permute.xlu0 %220
  %222 = vrot.lane.b32.xlu0 %v92, 124
  %v223 = vpop.permute.xlu0 %222
  %224 = vrot.lane.b32.xlu0 %v93, 124
  %v225 = vpop.permute.xlu0 %224
  %226 = vrot.lane.b32.xlu0 %v94, 124
  %v227 = vpop.permute.xlu0 %226
  %228 = vrot.lane.b32.xlu0 %v95, 124
  %v229 = vpop.permute.xlu0 %228
  %230 = vrot.lane.b32.xlu0 %v96, 124
  %v231 = vpop.permute.xlu0 %230
  %232 = vrot.lane.b32.xlu0 %v97, 124
  %v233 = vpop.permute.xlu0 %232
  %234 = vrot.lane.b32.xlu0 %v98, 124
  %v235 = vpop.permute.xlu0 %234
  %236 = vrot.lane.b32.xlu0 %v99, 124
  %v237 = vpop.permute.xlu0 %236
  %238 = vrot.lane.b32.xlu0 %v100, 124
  %v239 = vpop.permute.xlu0 %238
  %240 = vrot.lane.b32.xlu0 %v101, 124
  %v241 = vpop.permute.xlu0 %240
  %242 = vrot.lane.b32.xlu0 %v102, 124
  %v243 = vpop.permute.xlu0 %242
  %244 = vrot.lane.b32.xlu0 %v103, 124
  %v245 = vpop.permute.xlu0 %244
  %246 = vrot.lane.b32.xlu0 %v104, 124
  %v247 = vpop.permute.xlu0 %246
  %248 = vrot.lane.b32.xlu0 %v105, 124
  %v249 = vpop.permute.xlu0 %248
  %250 = vrot.lane.b32.xlu0 %v106, 124
  %v251 = vpop.permute.xlu0 %250
  %252 = vrot.lane.b32.xlu0 %v107, 124
  %v253 = vpop.permute.xlu0 %252
  %254 = vrot.lane.b32.xlu0 %v108, 124
  %v255 = vpop.permute.xlu0 %254
  %256 = vrot.lane.b32.xlu0 %v109, 124
  %v257 = vpop.permute.xlu0 %256
  %258 = vrot.lane.b32.xlu0 %v110, 124
  %v259 = vpop.permute.xlu0 %258
  %260 = vrot.lane.b32.xlu0 %v111, 124
  %v261 = vpop.permute.xlu0 %260
  %262 = vrot.lane.b32.xlu0 %v112, 124
  %v263 = vpop.permute.xlu0 %262
  %264 = vrot.lane.b32.xlu0 %v113, 124
  %v265 = vpop.permute.xlu0 %264
  %266 = vrot.lane.b32.xlu0 %v114, 124
  %v267 = vpop.permute.xlu0 %266
  %268 = vrot.lane.b32.xlu0 %v115, 124
  %v269 = vpop.permute.xlu0 %268
  %270 = vrot.lane.b32.xlu0 %v116, 124
  %v271 = vpop.permute.xlu0 %270
  %272 = vrot.lane.b32.xlu0 %v117, 124
  %v273 = vpop.permute.xlu0 %272
  %274 = vrot.lane.b32.xlu0 %v118, 124
  %v275 = vpop.permute.xlu0 %274
  %276 = vrot.lane.b32.xlu0 %v119, 124
  %v277 = vpop.permute.xlu0 %276
  %278 = vrot.lane.b32.xlu0 %v120, 124
  %v279 = vpop.permute.xlu0 %278
  %280 = vrot.lane.b32.xlu0 %v121, 124
  %v281 = vpop.permute.xlu0 %280
  %282 = vrot.lane.b32.xlu0 %v122, 124
  %v283 = vpop.permute.xlu0 %282
  %284 = vrot.lane.b32.xlu0 %v123, 124
  %v285 = vpop.permute.xlu0 %284
  %286 = vrot.lane.b32.xlu0 %v124, 124
  %v287 = vpop.permute.xlu0 %286
  %288 = vrot.lane.b32.xlu0 %v125, 124
  %v289 = vpop.permute.xlu0 %288
  %290 = vrot.lane.b32.xlu0 %v126, 124
  %v291 = vpop.permute.xlu0 %290
  %292 = vrot.lane.b32.xlu0 %v127, 124
  %v293 = vpop.permute.xlu0 %292
  %294 = vrot.lane.b32.xlu0 %v128, 124
  %v295 = vpop.permute.xlu0 %294
  %296 = vrot.lane.b32.xlu0 %v129, 124
  %v297 = vpop.permute.xlu0 %296
  %298 = vrot.lane.b32.xlu0 %v130, 124
  %v299 = vpop.permute.xlu0 %298
  %300 = vrot.lane.b32.xlu0 %v131, 124
  %v301 = vpop.permute.xlu0 %300
  %302 = vrot.lane.b32.xlu0 %v132, 124
  %v303 = vpop.permute.xlu0 %302
  %304 = vrot.lane.b32.xlu0 %v133, 124
  %v305 = vpop.permute.xlu0 %304
  %306 = vrot.lane.b32.xlu0 %v134, 124
  %v307 = vpop.permute.xlu0 %306
  %308 = vrot.lane.b32.xlu0 %v135, 124
  %v309 = vpop.permute.xlu0 %308
  %310 = vrot.lane.b32.xlu0 %v136, 124
  %v311 = vpop.permute.xlu0 %310
  %312 = vrot.lane.b32.xlu0 %v137, 124
  %v313 = vpop.permute.xlu0 %312
  %314 = vrot.lane.b32.xlu0 %v138, 124
  %v315 = vpop.permute.xlu0 %314
  %316 = vrot.lane.b32.xlu0 %v139, 124
  %v317 = vpop.permute.xlu0 %316
  %318 = vrot.lane.b32.xlu0 %v140, 124
  %v319 = vpop.permute.xlu0 %318
  %320 = vrot.lane.b32.xlu0 %v141, 124
  %v321 = vpop.permute.xlu0 %320
  %322 = vrot.lane.b32.xlu0 %v142, 124
  %v323 = vpop.permute.xlu0 %322
  %324 = vrot.lane.b32.xlu0 %v143, 124
  %v325 = vpop.permute.xlu0 %324
  %326 = vrot.lane.b32.xlu0 %v144, 124
  %v327 = vpop.permute.xlu0 %326
  %328 = vrot.lane.b32.xlu0 %v145, 124
  %v329 = vpop.permute.xlu0 %328
  %330 = vrot.lane.b32.xlu0 %v146, 124
  %v331 = vpop.permute.xlu0 %330
  %332 = vrot.lane.b32.xlu0 %v147, 124
  %v333 = vpop.permute.xlu0 %332
  %334 = vrot.lane.b32.xlu0 %v148, 124
  %v335 = vpop.permute.xlu0 %334
  %336 = vrot.lane.b32.xlu0 %v149, 124
  %v337 = vpop.permute.xlu0 %336
  %338 = vrot.lane.b32.xlu0 %v150, 124
  %v339 = vpop.permute.xlu0 %338
  %340 = vrot.lane.b32.xlu0 %v151, 124
  %v341 = vpop.permute.xlu0 %340
  %342 = vrot.lane.b32.xlu0 %v152, 124
  %v343 = vpop.permute.xlu0 %342
  %344 = vrot.lane.b32.xlu0 %v153, 124
  %v345 = vpop.permute.xlu0 %344
  %v410 = vadd.f32 %v90, %v219
  %v411 = vadd.f32 %v91, %v221
  %v412 = vadd.f32 %v92, %v223
  %v413 = vadd.f32 %v93, %v225
  %v414 = vadd.f32 %v94, %v227
  %v415 = vadd.f32 %v95, %v229
  %v416 = vadd.f32 %v96, %v231
  %v417 = vadd.f32 %v97, %v233
  %v418 = vadd.f32 %v98, %v235
  %v419 = vadd.f32 %v99, %v237
  %v420 = vadd.f32 %v100, %v239
  %v421 = vadd.f32 %v101, %v241
  %v422 = vadd.f32 %v102, %v243
  %v423 = vadd.f32 %v103, %v245
  %v424 = vadd.f32 %v104, %v247
  %v425 = vadd.f32 %v105, %v249
  %v426 = vadd.f32 %v106, %v251
  %v427 = vadd.f32 %v107, %v253
  %v428 = vadd.f32 %v108, %v255
  %v429 = vadd.f32 %v109, %v257
  %v430 = vadd.f32 %v110, %v259
  %v431 = vadd.f32 %v111, %v261
  %v432 = vadd.f32 %v112, %v263
  %v433 = vadd.f32 %v113, %v265
  %v434 = vadd.f32 %v114, %v267
  %v435 = vadd.f32 %v115, %v269
  %v436 = vadd.f32 %v116, %v271
  %v437 = vadd.f32 %v117, %v273
  %v438 = vadd.f32 %v118, %v275
  %v439 = vadd.f32 %v119, %v277
  %v440 = vadd.f32 %v120, %v279
  %v441 = vadd.f32 %v121, %v281
  %v442 = vadd.f32 %v122, %v283
  %v443 = vadd.f32 %v123, %v285
  %v444 = vadd.f32 %v124, %v287
  %v445 = vadd.f32 %v125, %v289
  %v446 = vadd.f32 %v126, %v291
  %v447 = vadd.f32 %v127, %v293
  %v448 = vadd.f32 %v128, %v295
  %v449 = vadd.f32 %v129, %v297
  %v450 = vadd.f32 %v130, %v299
  %v451 = vadd.f32 %v131, %v301
  %v452 = vadd.f32 %v132, %v303
  %v453 = vadd.f32 %v133, %v305
  %v454 = vadd.f32 %v134, %v307
  %v455 = vadd.f32 %v135, %v309
  %v456 = vadd.f32 %v136, %v311
  %v457 = vadd.f32 %v137, %v313
  %v458 = vadd.f32 %v138, %v315
  %v459 = vadd.f32 %v139, %v317
  %v460 = vadd.f32 %v140, %v319
  %v461 = vadd.f32 %v141, %v321
  %v462 = vadd.f32 %v142, %v323
  %v463 = vadd.f32 %v143, %v325
  %v464 = vadd.f32 %v144, %v327
  %v465 = vadd.f32 %v145, %v329
  %v466 = vadd.f32 %v146, %v331
  %v467 = vadd.f32 %v147, %v333
  %v468 = vadd.f32 %v148, %v335
  %v469 = vadd.f32 %v149, %v337
  %v470 = vadd.f32 %v150, %v339
  %v471 = vadd.f32 %v151, %v341
  %v472 = vadd.f32 %v152, %v343
  %v473 = vadd.f32 %v153, %v345
  %v474 = vrsqrt.pop %v410
  %v475 = vmul.f32 %v410, %v474
  %vm476 = vcmp.eq.f32.partialorder %v410, inf
  %v477 = vsel %vm476, %v410, %v475
  %vm478 = vcmp.eq.f32.partialorder %v410, 0.0
  %v479 = vand.u32 %v410, 2147483648
  %v480 = vsel %vm478, %v479, %v477
  %v481 = vrsqrt.pop %v411
  %v482 = vmul.f32 %v411, %v481
  %vm483 = vcmp.eq.f32.partialorder %v411, inf
  %v484 = vsel %vm483, %v411, %v482
  %vm485 = vcmp.eq.f32.partialorder %v411, 0.0
  %v486 = vand.u32 %v411, 2147483648
  %v487 = vsel %vm485, %v486, %v484
  %v488 = vrsqrt.pop %v412
  %v489 = vmul.f32 %v412, %v488
  %vm490 = vcmp.eq.f32.partialorder %v412, inf
  %v491 = vsel %vm490, %v412, %v489
  %vm492 = vcmp.eq.f32.partialorder %v412, 0.0
  %v493 = vand.u32 %v412, 2147483648
  %v494 = vsel %vm492, %v493, %v491
  %v495 = vrsqrt.pop %v413
  %v496 = vmul.f32 %v413, %v495
  %vm497 = vcmp.eq.f32.partialorder %v413, inf
  %v498 = vsel %vm497, %v413, %v496
  %vm499 = vcmp.eq.f32.partialorder %v413, 0.0
  %v500 = vand.u32 %v413, 2147483648
  %v501 = vsel %vm499, %v500, %v498
  %v502 = vrsqrt.pop %v414
  %v503 = vmul.f32 %v414, %v502
  %vm504 = vcmp.eq.f32.partialorder %v414, inf
  %v505 = vsel %vm504, %v414, %v503
  %vm506 = vcmp.eq.f32.partialorder %v414, 0.0
  %v507 = vand.u32 %v414, 2147483648
  %v508 = vsel %vm506, %v507, %v505
  %v509 = vrsqrt.pop %v415
  %v510 = vmul.f32 %v415, %v509
  %vm511 = vcmp.eq.f32.partialorder %v415, inf
  %v512 = vsel %vm511, %v415, %v510
  %vm513 = vcmp.eq.f32.partialorder %v415, 0.0
  %v514 = vand.u32 %v415, 2147483648
  %v515 = vsel %vm513, %v514, %v512
  %v516 = vrsqrt.pop %v416
  %v517 = vmul.f32 %v416, %v516
  %vm518 = vcmp.eq.f32.partialorder %v416, inf
  %v519 = vsel %vm518, %v416, %v517
  %vm520 = vcmp.eq.f32.partialorder %v416, 0.0
  %v521 = vand.u32 %v416, 2147483648
  %v522 = vsel %vm520, %v521, %v519
  %v523 = vrsqrt.pop %v417
  %v524 = vmul.f32 %v417, %v523
  %vm525 = vcmp.eq.f32.partialorder %v417, inf
  %v526 = vsel %vm525, %v417, %v524
  %vm527 = vcmp.eq.f32.partialorder %v417, 0.0
  %v528 = vand.u32 %v417, 2147483648
  %v529 = vsel %vm527, %v528, %v526
  %v530 = vrsqrt.pop %v418
  %v531 = vmul.f32 %v418, %v530
  %vm532 = vcmp.eq.f32.partialorder %v418, inf
  %v533 = vsel %vm532, %v418, %v531
  %vm534 = vcmp.eq.f32.partialorder %v418, 0.0
  %v535 = vand.u32 %v418, 2147483648
  %v536 = vsel %vm534, %v535, %v533
  %v537 = vrsqrt.pop %v419
  %v538 = vmul.f32 %v419, %v537
  %vm539 = vcmp.eq.f32.partialorder %v419, inf
  %v540 = vsel %vm539, %v419, %v538
  %vm541 = vcmp.eq.f32.partialorder %v419, 0.0
  %v542 = vand.u32 %v419, 2147483648
  %v543 = vsel %vm541, %v542, %v540
  %v544 = vrsqrt.pop %v420
  %v545 = vmul.f32 %v420, %v544
  %vm546 = vcmp.eq.f32.partialorder %v420, inf
  %v547 = vsel %vm546, %v420, %v545
  %vm548 = vcmp.eq.f32.partialorder %v420, 0.0
  %v549 = vand.u32 %v420, 2147483648
  %v550 = vsel %vm548, %v549, %v547
  %v551 = vrsqrt.pop %v421
  %v552 = vmul.f32 %v421, %v551
  %vm553 = vcmp.eq.f32.partialorder %v421, inf
  %v554 = vsel %vm553, %v421, %v552
  %vm555 = vcmp.eq.f32.partialorder %v421, 0.0
  %v556 = vand.u32 %v421, 2147483648
  %v557 = vsel %vm555, %v556, %v554
  %v558 = vrsqrt.pop %v422
  %v559 = vmul.f32 %v422, %v558
  %vm560 = vcmp.eq.f32.partialorder %v422, inf
  %v561 = vsel %vm560, %v422, %v559
  %vm562 = vcmp.eq.f32.partialorder %v422, 0.0
  %v563 = vand.u32 %v422, 2147483648
  %v564 = vsel %vm562, %v563, %v561
  %v565 = vrsqrt.pop %v423
  %v566 = vmul.f32 %v423, %v565
  %vm567 = vcmp.eq.f32.partialorder %v423, inf
  %v568 = vsel %vm567, %v423, %v566
  %vm569 = vcmp.eq.f32.partialorder %v423, 0.0
  %v570 = vand.u32 %v423, 2147483648
  %v571 = vsel %vm569, %v570, %v568
  %v572 = vrsqrt.pop %v424
  %v573 = vmul.f32 %v424, %v572
  %vm574 = vcmp.eq.f32.partialorder %v424, inf
  %v575 = vsel %vm574, %v424, %v573
  %vm576 = vcmp.eq.f32.partialorder %v424, 0.0
  %v577 = vand.u32 %v424, 2147483648
  %v578 = vsel %vm576, %v577, %v575
  %v579 = vrsqrt.pop %v425
  %v580 = vmul.f32 %v425, %v579
  %vm581 = vcmp.eq.f32.partialorder %v425, inf
  %v582 = vsel %vm581, %v425, %v580
  %vm583 = vcmp.eq.f32.partialorder %v425, 0.0
  %v584 = vand.u32 %v425, 2147483648
  %v585 = vsel %vm583, %v584, %v582
  %v586 = vrsqrt.pop %v426
  %v587 = vmul.f32 %v426, %v586
  %vm588 = vcmp.eq.f32.partialorder %v426, inf
  %v589 = vsel %vm588, %v426, %v587
  %vm590 = vcmp.eq.f32.partialorder %v426, 0.0
  %v591 = vand.u32 %v426, 2147483648
  %v592 = vsel %vm590, %v591, %v589
  %v593 = vrsqrt.pop %v427
  %v594 = vmul.f32 %v427, %v593
  %vm595 = vcmp.eq.f32.partialorder %v427, inf
  %v596 = vsel %vm595, %v427, %v594
  %vm597 = vcmp.eq.f32.partialorder %v427, 0.0
  %v598 = vand.u32 %v427, 2147483648
  %v599 = vsel %vm597, %v598, %v596
  %v600 = vrsqrt.pop %v428
  %v601 = vmul.f32 %v428, %v600
  %vm602 = vcmp.eq.f32.partialorder %v428, inf
  %v603 = vsel %vm602, %v428, %v601
  %vm604 = vcmp.eq.f32.partialorder %v428, 0.0
  %v605 = vand.u32 %v428, 2147483648
  %v606 = vsel %vm604, %v605, %v603
  %v607 = vrsqrt.pop %v429
  %v608 = vmul.f32 %v429, %v607
  %vm609 = vcmp.eq.f32.partialorder %v429, inf
  %v610 = vsel %vm609, %v429, %v608
  %vm611 = vcmp.eq.f32.partialorder %v429, 0.0
  %v612 = vand.u32 %v429, 2147483648
  %v613 = vsel %vm611, %v612, %v610
  %v614 = vrsqrt.pop %v430
  %v615 = vmul.f32 %v430, %v614
  %vm616 = vcmp.eq.f32.partialorder %v430, inf
  %v617 = vsel %vm616, %v430, %v615
  %vm618 = vcmp.eq.f32.partialorder %v430, 0.0
  %v619 = vand.u32 %v430, 2147483648
  %v620 = vsel %vm618, %v619, %v617
  %v621 = vrsqrt.pop %v431
  %v622 = vmul.f32 %v431, %v621
  %vm623 = vcmp.eq.f32.partialorder %v431, inf
  %v624 = vsel %vm623, %v431, %v622
  %vm625 = vcmp.eq.f32.partialorder %v431, 0.0
  %v626 = vand.u32 %v431, 2147483648
  %v627 = vsel %vm625, %v626, %v624
  %v628 = vrsqrt.pop %v432
  %v629 = vmul.f32 %v432, %v628
  %vm630 = vcmp.eq.f32.partialorder %v432, inf
  %v631 = vsel %vm630, %v432, %v629
  %vm632 = vcmp.eq.f32.partialorder %v432, 0.0
  %v633 = vand.u32 %v432, 2147483648
  %v634 = vsel %vm632, %v633, %v631
  %v635 = vrsqrt.pop %v433
  %v636 = vmul.f32 %v433, %v635
  %vm637 = vcmp.eq.f32.partialorder %v433, inf
  %v638 = vsel %vm637, %v433, %v636
  %vm639 = vcmp.eq.f32.partialorder %v433, 0.0
  %v640 = vand.u32 %v433, 2147483648
  %v641 = vsel %vm639, %v640, %v638
  %v642 = vrsqrt.pop %v434
  %v643 = vmul.f32 %v434, %v642
  %vm644 = vcmp.eq.f32.partialorder %v434, inf
  %v645 = vsel %vm644, %v434, %v643
  %vm646 = vcmp.eq.f32.partialorder %v434, 0.0
  %v647 = vand.u32 %v434, 2147483648
  %v648 = vsel %vm646, %v647, %v645
  %v649 = vrsqrt.pop %v435
  %v650 = vmul.f32 %v435, %v649
  %vm651 = vcmp.eq.f32.partialorder %v435, inf
  %v652 = vsel %vm651, %v435, %v650
  %vm653 = vcmp.eq.f32.partialorder %v435, 0.0
  %v654 = vand.u32 %v435, 2147483648
  %v655 = vsel %vm653, %v654, %v652
  %v656 = vrsqrt.pop %v436
  %v657 = vmul.f32 %v436, %v656
  %vm658 = vcmp.eq.f32.partialorder %v436, inf
  %v659 = vsel %vm658, %v436, %v657
  %vm660 = vcmp.eq.f32.partialorder %v436, 0.0
  %v661 = vand.u32 %v436, 2147483648
  %v662 = vsel %vm660, %v661, %v659
  %v663 = vrsqrt.pop %v437
  %v664 = vmul.f32 %v437, %v663
  %vm665 = vcmp.eq.f32.partialorder %v437, inf
  %v666 = vsel %vm665, %v437, %v664
  %vm667 = vcmp.eq.f32.partialorder %v437, 0.0
  %v668 = vand.u32 %v437, 2147483648
  %v669 = vsel %vm667, %v668, %v666
  %v670 = vrsqrt.pop %v438
  %v671 = vmul.f32 %v438, %v670
  %vm672 = vcmp.eq.f32.partialorder %v438, inf
  %v673 = vsel %vm672, %v438, %v671
  %vm674 = vcmp.eq.f32.partialorder %v438, 0.0
  %v675 = vand.u32 %v438, 2147483648
  %v676 = vsel %vm674, %v675, %v673
  %v677 = vrsqrt.pop %v439
  %v678 = vmul.f32 %v439, %v677
  %vm679 = vcmp.eq.f32.partialorder %v439, inf
  %v680 = vsel %vm679, %v439, %v678
  %vm681 = vcmp.eq.f32.partialorder %v439, 0.0
  %v682 = vand.u32 %v439, 2147483648
  %v683 = vsel %vm681, %v682, %v680
  %v684 = vrsqrt.pop %v440
  %v685 = vmul.f32 %v440, %v684
  %vm686 = vcmp.eq.f32.partialorder %v440, inf
  %v687 = vsel %vm686, %v440, %v685
  %vm688 = vcmp.eq.f32.partialorder %v440, 0.0
  %v689 = vand.u32 %v440, 2147483648
  %v690 = vsel %vm688, %v689, %v687
  %v691 = vrsqrt.pop %v441
  %v692 = vmul.f32 %v441, %v691
  %vm693 = vcmp.eq.f32.partialorder %v441, inf
  %v694 = vsel %vm693, %v441, %v692
  %vm695 = vcmp.eq.f32.partialorder %v441, 0.0
  %v696 = vand.u32 %v441, 2147483648
  %v697 = vsel %vm695, %v696, %v694
  %v698 = vrsqrt.pop %v442
  %v699 = vmul.f32 %v442, %v698
  %vm700 = vcmp.eq.f32.partialorder %v442, inf
  %v701 = vsel %vm700, %v442, %v699
  %vm702 = vcmp.eq.f32.partialorder %v442, 0.0
  %v703 = vand.u32 %v442, 2147483648
  %v704 = vsel %vm702, %v703, %v701
  %v705 = vrsqrt.pop %v443
  %v706 = vmul.f32 %v443, %v705
  %vm707 = vcmp.eq.f32.partialorder %v443, inf
  %v708 = vsel %vm707, %v443, %v706
  %vm709 = vcmp.eq.f32.partialorder %v443, 0.0
  %v710 = vand.u32 %v443, 2147483648
  %v711 = vsel %vm709, %v710, %v708
  %v712 = vrsqrt.pop %v444
  %v713 = vmul.f32 %v444, %v712
  %vm714 = vcmp.eq.f32.partialorder %v444, inf
  %v715 = vsel %vm714, %v444, %v713
  %vm716 = vcmp.eq.f32.partialorder %v444, 0.0
  %v717 = vand.u32 %v444, 2147483648
  %v718 = vsel %vm716, %v717, %v715
  %v719 = vrsqrt.pop %v445
  %v720 = vmul.f32 %v445, %v719
  %vm721 = vcmp.eq.f32.partialorder %v445, inf
  %v722 = vsel %vm721, %v445, %v720
  %vm723 = vcmp.eq.f32.partialorder %v445, 0.0
  %v724 = vand.u32 %v445, 2147483648
  %v725 = vsel %vm723, %v724, %v722
  %v726 = vrsqrt.pop %v446
  %v727 = vmul.f32 %v446, %v726
  %vm728 = vcmp.eq.f32.partialorder %v446, inf
  %v729 = vsel %vm728, %v446, %v727
  %vm730 = vcmp.eq.f32.partialorder %v446, 0.0
  %v731 = vand.u32 %v446, 2147483648
  %v732 = vsel %vm730, %v731, %v729
  %v733 = vrsqrt.pop %v447
  %v734 = vmul.f32 %v447, %v733
  %vm735 = vcmp.eq.f32.partialorder %v447, inf
  %v736 = vsel %vm735, %v447, %v734
  %vm737 = vcmp.eq.f32.partialorder %v447, 0.0
  %v738 = vand.u32 %v447, 2147483648
  %v739 = vsel %vm737, %v738, %v736
  %v740 = vrsqrt.pop %v448
  %v741 = vmul.f32 %v448, %v740
  %vm742 = vcmp.eq.f32.partialorder %v448, inf
  %v743 = vsel %vm742, %v448, %v741
  %vm744 = vcmp.eq.f32.partialorder %v448, 0.0
  %v745 = vand.u32 %v448, 2147483648
  %v746 = vsel %vm744, %v745, %v743
  %v747 = vrsqrt.pop %v449
  %v748 = vmul.f32 %v449, %v747
  %vm749 = vcmp.eq.f32.partialorder %v449, inf
  %v750 = vsel %vm749, %v449, %v748
  %vm751 = vcmp.eq.f32.partialorder %v449, 0.0
  %v752 = vand.u32 %v449, 2147483648
  %v753 = vsel %vm751, %v752, %v750
  %v754 = vrsqrt.pop %v450
  %v755 = vmul.f32 %v450, %v754
  %vm756 = vcmp.eq.f32.partialorder %v450, inf
  %v757 = vsel %vm756, %v450, %v755
  %vm758 = vcmp.eq.f32.partialorder %v450, 0.0
  %v759 = vand.u32 %v450, 2147483648
  %v760 = vsel %vm758, %v759, %v757
  %v761 = vrsqrt.pop %v451
  %v762 = vmul.f32 %v451, %v761
  %vm763 = vcmp.eq.f32.partialorder %v451, inf
  %v764 = vsel %vm763, %v451, %v762
  %vm765 = vcmp.eq.f32.partialorder %v451, 0.0
  %v766 = vand.u32 %v451, 2147483648
  %v767 = vsel %vm765, %v766, %v764
  %v768 = vrsqrt.pop %v452
  %v769 = vmul.f32 %v452, %v768
  %vm770 = vcmp.eq.f32.partialorder %v452, inf
  %v771 = vsel %vm770, %v452, %v769
  %vm772 = vcmp.eq.f32.partialorder %v452, 0.0
  %v773 = vand.u32 %v452, 2147483648
  %v774 = vsel %vm772, %v773, %v771
  %v775 = vrsqrt.pop %v453
  %v776 = vmul.f32 %v453, %v775
  %vm777 = vcmp.eq.f32.partialorder %v453, inf
  %v778 = vsel %vm777, %v453, %v776
  %vm779 = vcmp.eq.f32.partialorder %v453, 0.0
  %v780 = vand.u32 %v453, 2147483648
  %v781 = vsel %vm779, %v780, %v778
  %v782 = vrsqrt.pop %v454
  %v783 = vmul.f32 %v454, %v782
  %vm784 = vcmp.eq.f32.partialorder %v454, inf
  %v785 = vsel %vm784, %v454, %v783
  %vm786 = vcmp.eq.f32.partialorder %v454, 0.0
  %v787 = vand.u32 %v454, 2147483648
  %v788 = vsel %vm786, %v787, %v785
  %v789 = vrsqrt.pop %v455
  %v790 = vmul.f32 %v455, %v789
  %vm791 = vcmp.eq.f32.partialorder %v455, inf
  %v792 = vsel %vm791, %v455, %v790
  %vm793 = vcmp.eq.f32.partialorder %v455, 0.0
  %v794 = vand.u32 %v455, 2147483648
  %v795 = vsel %vm793, %v794, %v792
  %v796 = vrsqrt.pop %v456
  %v797 = vmul.f32 %v456, %v796
  %vm798 = vcmp.eq.f32.partialorder %v456, inf
  %v799 = vsel %vm798, %v456, %v797
  %vm800 = vcmp.eq.f32.partialorder %v456, 0.0
  %v801 = vand.u32 %v456, 2147483648
  %v802 = vsel %vm800, %v801, %v799
  %v803 = vrsqrt.pop %v457
  %v804 = vmul.f32 %v457, %v803
  %vm805 = vcmp.eq.f32.partialorder %v457, inf
  %v806 = vsel %vm805, %v457, %v804
  %vm807 = vcmp.eq.f32.partialorder %v457, 0.0
  %v808 = vand.u32 %v457, 2147483648
  %v809 = vsel %vm807, %v808, %v806
  %v810 = vrsqrt.pop %v458
  %v811 = vmul.f32 %v458, %v810
  %vm812 = vcmp.eq.f32.partialorder %v458, inf
  %v813 = vsel %vm812, %v458, %v811
  %vm814 = vcmp.eq.f32.partialorder %v458, 0.0
  %v815 = vand.u32 %v458, 2147483648
  %v816 = vsel %vm814, %v815, %v813
  %v817 = vrsqrt.pop %v459
  %v818 = vmul.f32 %v459, %v817
  %vm819 = vcmp.eq.f32.partialorder %v459, inf
  %v820 = vsel %vm819, %v459, %v818
  %vm821 = vcmp.eq.f32.partialorder %v459, 0.0
  %v822 = vand.u32 %v459, 2147483648
  %v823 = vsel %vm821, %v822, %v820
  %v824 = vrsqrt.pop %v460
  %v825 = vmul.f32 %v460, %v824
  %vm826 = vcmp.eq.f32.partialorder %v460, inf
  %v827 = vsel %vm826, %v460, %v825
  %vm828 = vcmp.eq.f32.partialorder %v460, 0.0
  %v829 = vand.u32 %v460, 2147483648
  %v830 = vsel %vm828, %v829, %v827
  %v831 = vrsqrt.pop %v461
  %v832 = vmul.f32 %v461, %v831
  %vm833 = vcmp.eq.f32.partialorder %v461, inf
  %v834 = vsel %vm833, %v461, %v832
  %vm835 = vcmp.eq.f32.partialorder %v461, 0.0
  %v836 = vand.u32 %v461, 2147483648
  %v837 = vsel %vm835, %v836, %v834
  %v838 = vrsqrt.pop %v462
  %v839 = vmul.f32 %v462, %v838
  %vm840 = vcmp.eq.f32.partialorder %v462, inf
  %v841 = vsel %vm840, %v462, %v839
  %vm842 = vcmp.eq.f32.partialorder %v462, 0.0
  %v843 = vand.u32 %v462, 2147483648
  %v844 = vsel %vm842, %v843, %v841
  %v845 = vrsqrt.pop %v463
  %v846 = vmul.f32 %v463, %v845
  %vm847 = vcmp.eq.f32.partialorder %v463, inf
  %v848 = vsel %vm847, %v463, %v846
  %vm849 = vcmp.eq.f32.partialorder %v463, 0.0
  %v850 = vand.u32 %v463, 2147483648
  %v851 = vsel %vm849, %v850, %v848
  %v852 = vrsqrt.pop %v464
  %v853 = vmul.f32 %v464, %v852
  %vm854 = vcmp.eq.f32.partialorder %v464, inf
  %v855 = vsel %vm854, %v464, %v853
  %vm856 = vcmp.eq.f32.partialorder %v464, 0.0
  %v857 = vand.u32 %v464, 2147483648
  %v858 = vsel %vm856, %v857, %v855
  %v859 = vrsqrt.pop %v465
  %v860 = vmul.f32 %v465, %v859
  %vm861 = vcmp.eq.f32.partialorder %v465, inf
  %v862 = vsel %vm861, %v465, %v860
  %vm863 = vcmp.eq.f32.partialorder %v465, 0.0
  %v864 = vand.u32 %v465, 2147483648
  %v865 = vsel %vm863, %v864, %v862
  %v866 = vrsqrt.pop %v466
  %v867 = vmul.f32 %v466, %v866
  %vm868 = vcmp.eq.f32.partialorder %v466, inf
  %v869 = vsel %vm868, %v466, %v867
  %vm870 = vcmp.eq.f32.partialorder %v466, 0.0
  %v871 = vand.u32 %v466, 2147483648
  %v872 = vsel %vm870, %v871, %v869
  %v873 = vrsqrt.pop %v467
  %v874 = vmul.f32 %v467, %v873
  %vm875 = vcmp.eq.f32.partialorder %v467, inf
  %v876 = vsel %vm875, %v467, %v874
  %vm877 = vcmp.eq.f32.partialorder %v467, 0.0
  %v878 = vand.u32 %v467, 2147483648
  %v879 = vsel %vm877, %v878, %v876
  %v880 = vrsqrt.pop %v468
  %v881 = vmul.f32 %v468, %v880
  %vm882 = vcmp.eq.f32.partialorder %v468, inf
  %v883 = vsel %vm882, %v468, %v881
  %vm884 = vcmp.eq.f32.partialorder %v468, 0.0
  %v885 = vand.u32 %v468, 2147483648
  %v886 = vsel %vm884, %v885, %v883
  %v887 = vrsqrt.pop %v469
  %v888 = vmul.f32 %v469, %v887
  %vm889 = vcmp.eq.f32.partialorder %v469, inf
  %v890 = vsel %vm889, %v469, %v888
  %vm891 = vcmp.eq.f32.partialorder %v469, 0.0
  %v892 = vand.u32 %v469, 2147483648
  %v893 = vsel %vm891, %v892, %v890
  %v894 = vrsqrt.pop %v470
  %v895 = vmul.f32 %v470, %v894
  %vm896 = vcmp.eq.f32.partialorder %v470, inf
  %v897 = vsel %vm896, %v470, %v895
  %vm898 = vcmp.eq.f32.partialorder %v470, 0.0
  %v899 = vand.u32 %v470, 2147483648
  %v900 = vsel %vm898, %v899, %v897
  %v901 = vrsqrt.pop %v471
  %v902 = vmul.f32 %v471, %v901
  %vm903 = vcmp.eq.f32.partialorder %v471, inf
  %v904 = vsel %vm903, %v471, %v902
  %vm905 = vcmp.eq.f32.partialorder %v471, 0.0
  %v906 = vand.u32 %v471, 2147483648
  %v907 = vsel %vm905, %v906, %v904
  %v908 = vrsqrt.pop %v472
  %v909 = vmul.f32 %v472, %v908
  %vm910 = vcmp.eq.f32.partialorder %v472, inf
  %v911 = vsel %vm910, %v472, %v909
  %vm912 = vcmp.eq.f32.partialorder %v472, 0.0
  %v913 = vand.u32 %v472, 2147483648
  %v914 = vsel %vm912, %v913, %v911
  %v915 = vrsqrt.pop %v473
  %v916 = vmul.f32 %v473, %v915
  %vm917 = vcmp.eq.f32.partialorder %v473, inf
  %v918 = vsel %vm917, %v473, %v916
  %vm919 = vcmp.eq.f32.partialorder %v473, 0.0
  %v920 = vand.u32 %v473, 2147483648
  %v921 = vsel %vm919, %v920, %v918
  %922 = vmatprep.subr.mxu0 0.0
  %923 = vmatpush1.msra.mxu0 %v585
  %924 = vmatprep.subr.mxu0 0.0
  %925 = vmatpush1.msra.mxu0 %v578
  %926 = vmatprep.subr.mxu0 0.0
  %927 = vmatpush1.msra.mxu0 %v571
  %928 = vmatprep.subr.mxu0 0.0
  %929 = vmatpush1.msra.mxu0 %v564
  %930 = vmatprep.subr.mxu0 0.0
  %931 = vmatpush1.msra.mxu0 %v557
  %932 = vmatprep.subr.mxu0 0.0
  %933 = vmatpush1.msra.mxu0 %v550
  %934 = vmatprep.subr.mxu0 0.0
  %935 = vmatpush1.msra.mxu0 %v543
  %936 = vmatprep.subr.mxu0 0.0
  %937 = vmatpush1.msra.mxu0 %v536
  %938 = vmatprep.subr.mxu0 0.0
  %939 = vmatpush1.msra.mxu0 %v529
  %940 = vmatprep.subr.mxu0 0.0
  %941 = vmatpush1.msra.mxu0 %v522
  %942 = vmatprep.subr.mxu0 0.0
  %943 = vmatpush1.msra.mxu0 %v515
  %944 = vmatprep.subr.mxu0 0.0
  %945 = vmatpush1.msra.mxu0 %v508
  %946 = vmatprep.subr.mxu0 0.0
  %947 = vmatpush1.msra.mxu0 %v501
  %948 = vmatprep.subr.mxu0 0.0
  %949 = vmatpush1.msra.mxu0 %v494
  %950 = vmatprep.subr.mxu0 0.0
  %951 = vmatpush1.msra.mxu0 %v487
  %952 = vmatprep.subr.mxu0 0.0
  %953 = vmatpush1.msra.mxu0 %v480
  %954 = vmatprep.subr.mxu0 0.0
  %955 = vmatpush2.msra.mxu0 %v697
  %956 = vmatprep.subr.mxu0 0.0
  %957 = vmatpush2.msra.mxu0 %v690
  %958 = vmatprep.subr.mxu0 0.0
  %959 = vmatpush2.msra.mxu0 %v683
  %960 = vmatprep.subr.mxu0 0.0
  %961 = vmatpush2.msra.mxu0 %v676
  %962 = vmatprep.subr.mxu0 0.0
  %963 = vmatpush2.msra.mxu0 %v669
  %964 = vmatprep.subr.mxu0 0.0
  %965 = vmatpush2.msra.mxu0 %v662
  %966 = vmatprep.subr.mxu0 0.0
  %967 = vmatpush2.msra.mxu0 %v655
  %968 = vmatprep.subr.mxu0 0.0
  %969 = vmatpush2.msra.mxu0 %v648
  %970 = vmatprep.subr.mxu0 0.0
  %971 = vmatpush2.msra.mxu0 %v641
  %972 = vmatprep.subr.mxu0 0.0
  %973 = vmatpush2.msra.mxu0 %v634
  %974 = vmatprep.subr.mxu0 0.0
  %975 = vmatpush2.msra.mxu0 %v627
  %976 = vmatprep.subr.mxu0 0.0
  %977 = vmatpush2.msra.mxu0 %v620
  %978 = vmatprep.subr.mxu0 0.0
  %979 = vmatpush2.msra.mxu0 %v613
  %980 = vmatprep.subr.mxu0 0.0
  %981 = vmatpush2.msra.mxu0 %v606
  %982 = vmatprep.subr.mxu0 0.0
  %983 = vmatpush2.msra.mxu0 %v599
  %984 = vmatprep.subr.mxu0 0.0
  %985 = vmatpush2.msra.mxu0 %v592
  %986 = vmatprep.mubr.f32.mxu0 0.00390625
  %987 = vmatmul.mubr.f32.gmra.mxu0 0.00390625
  %v988 = vpop.f32.mrf.mxu0
  %v989 = vadd.f32 0.0, %v988
  %v990 = vpop.f32.mrf.mxu0
  %991 = vdwg.mxu0
  %992 = vmatprep.subr.mxu0 0.0
  %993 = vmatpush1.msra.mxu0 %v809
  %994 = vmatprep.subr.mxu0 0.0
  %995 = vmatpush1.msra.mxu0 %v802
  %996 = vmatprep.subr.mxu0 0.0
  %997 = vmatpush1.msra.mxu0 %v795
  %998 = vmatprep.subr.mxu0 0.0
  %999 = vmatpush1.msra.mxu0 %v788
  %1000 = vmatprep.subr.mxu0 0.0
  %1001 = vmatpush1.msra.mxu0 %v781
  %1002 = vmatprep.subr.mxu0 0.0
  %1003 = vmatpush1.msra.mxu0 %v774
  %1004 = vmatprep.subr.mxu0 0.0
  %1005 = vmatpush1.msra.mxu0 %v767
  %1006 = vmatprep.subr.mxu0 0.0
  %1007 = vmatpush1.msra.mxu0 %v760
  %1008 = vmatprep.subr.mxu0 0.0
  %1009 = vmatpush1.msra.mxu0 %v753
  %1010 = vmatprep.subr.mxu0 0.0
  %1011 = vmatpush1.msra.mxu0 %v746
  %1012 = vmatprep.subr.mxu0 0.0
  %1013 = vmatpush1.msra.mxu0 %v739
  %1014 = vmatprep.subr.mxu0 0.0
  %1015 = vmatpush1.msra.mxu0 %v732
  %1016 = vmatprep.subr.mxu0 0.0
  %1017 = vmatpush1.msra.mxu0 %v725
  %1018 = vmatprep.subr.mxu0 0.0
  %1019 = vmatpush1.msra.mxu0 %v718
  %1020 = vmatprep.subr.mxu0 0.0
  %1021 = vmatpush1.msra.mxu0 %v711
  %1022 = vmatprep.subr.mxu0 0.0
  %1023 = vmatpush1.msra.mxu0 %v704
  %1024 = vmatprep.subr.mxu0 0.0
  %1025 = vmatpush2.msra.mxu0 %v921
  %1026 = vmatprep.subr.mxu0 0.0
  %1027 = vmatpush2.msra.mxu0 %v914
  %1028 = vmatprep.subr.mxu0 0.0
  %1029 = vmatpush2.msra.mxu0 %v907
  %1030 = vmatprep.subr.mxu0 0.0
  %1031 = vmatpush2.msra.mxu0 %v900
  %1032 = vmatprep.subr.mxu0 0.0
  %1033 = vmatpush2.msra.mxu0 %v893
  %1034 = vmatprep.subr.mxu0 0.0
  %1035 = vmatpush2.msra.mxu0 %v886
  %1036 = vmatprep.subr.mxu0 0.0
  %1037 = vmatpush2.msra.mxu0 %v879
  %1038 = vmatprep.subr.mxu0 0.0
  %1039 = vmatpush2.msra.mxu0 %v872
  %1040 = vmatprep.subr.mxu0 0.0
  %1041 = vmatpush2.msra.mxu0 %v865
  %1042 = vmatprep.subr.mxu0 0.0
  %1043 = vmatpush2.msra.mxu0 %v858
  %1044 = vmatprep.subr.mxu0 0.0
  %1045 = vmatpush2.msra.mxu0 %v851
  %1046 = vmatprep.subr.mxu0 0.0
  %1047 = vmatpush2.msra.mxu0 %v844
  %1048 = vmatprep.subr.mxu0 0.0
  %1049 = vmatpush2.msra.mxu0 %v837
  %1050 = vmatprep.subr.mxu0 0.0
  %1051 = vmatpush2.msra.mxu0 %v830
  %1052 = vmatprep.subr.mxu0 0.0
  %1053 = vmatpush2.msra.mxu0 %v823
  %1054 = vmatprep.subr.mxu0 0.0
  %1055 = vmatpush2.msra.mxu0 %v816
  %1056 = vmatprep.mubr.f32.mxu0 0.00390625
  %1057 = vmatmul.mubr.f32.gmra.mxu0 0.00390625
  %v1058 = vpop.f32.mrf.mxu0
  %v1059 = vadd.f32 0.0, %v1058
  %v1060 = vpop.f32.mrf.mxu0
  %1061 = vdwg.mxu0
  %v1063 = vrot.slane %v1059, 7
  %vm1065 = vcmask 1040384
  %v1066 = vsel %vm1065, %v989, %v1063
  %v1067 = vld [vmem:[%s1] sm:$0xf]
  %v1068 = vld [vmem:[%s2] sm:$0x1]
  %v1070 = vlaneseq
  %v1071 = vshrl.u32 %v1070, 7
  %v1072 = vsub.s32 0, %v1071
  %v1073 = vrot.slane %v1068, %v1072
  %vm1075 = vcmask 31744
  %v1077 = vsel %vm1075, %v1066, 0
  %vm1079 = vcmask 1043456
  %v1081 = vsel %vm1079, %v1067, 0
  %1083 = vmatprep.subr.mxu0 0.0
  %1084 = vmatpush1.msra.mxu0 0.0
  %1085 = vmatprep.subr.mxu0 0.0
  %1086 = vmatpush1.msra.mxu0 0.0
  %1087 = vmatprep.subr.mxu0 0.0
  %1088 = vmatpush1.msra.mxu0 0.0
  %1089 = vmatprep.subr.mxu0 0.0
  %1090 = vmatpush1.msra.mxu0 0.0
  %1091 = vmatprep.subr.mxu0 0.0
  %1092 = vmatpush1.msra.mxu0 0.0
  %1093 = vmatprep.subr.mxu0 0.0
  %1094 = vmatpush1.msra.mxu0 0.0
  %1095 = vmatprep.subr.mxu0 0.0
  %1096 = vmatpush1.msra.mxu0 0.0
  %1097 = vmatprep.subr.mxu0 0.0
  %1098 = vmatpush1.msra.mxu0 0.0
  %1099 = vmatprep.subr.mxu0 0.0
  %1100 = vmatpush1.msra.mxu0 0.0
  %1101 = vmatprep.subr.mxu0 0.0
  %1102 = vmatpush1.msra.mxu0 0.0
  %1103 = vmatprep.subr.mxu0 0.0
  %1104 = vmatpush1.msra.mxu0 0.0
  %1105 = vmatprep.subr.mxu0 0.0
  %1106 = vmatpush1.msra.mxu0 0.0
  %1107 = vmatprep.subr.mxu0 0.0
  %1108 = vmatpush1.msra.mxu0 0.0
  %1109 = vmatprep.subr.mxu0 0.0
  %1110 = vmatpush1.msra.mxu0 0.0
  %1111 = vmatprep.subr.mxu0 0.0
  %1112 = vmatpush1.msra.mxu0 0.0
  %1113 = vmatprep.subr.mxu0 0.0
  %1114 = vmatpush1.msra.mxu0 %v1081
  %1115 = vmatprep.subr.mxu0 0.0
  %1116 = vmatpush2.msra.mxu0 0.0
  %1117 = vmatprep.subr.mxu0 0.0
  %1118 = vmatpush2.msra.mxu0 0.0
  %1119 = vmatprep.subr.mxu0 0.0
  %1120 = vmatpush2.msra.mxu0 0.0
  %1121 = vmatprep.subr.mxu0 0.0
  %1122 = vmatpush2.msra.mxu0 0.0
  %1123 = vmatprep.subr.mxu0 0.0
  %1124 = vmatpush2.msra.mxu0 0.0
  %1125 = vmatprep.subr.mxu0 0.0
  %1126 = vmatpush2.msra.mxu0 0.0
  %1127 = vmatprep.subr.mxu0 0.0
  %1128 = vmatpush2.msra.mxu0 0.0
  %1129 = vmatprep.subr.mxu0 0.0
  %1130 = vmatpush2.msra.mxu0 0.0
  %1131 = vmatprep.subr.mxu0 0.0
  %1132 = vmatpush2.msra.mxu0 0.0
  %1133 = vmatprep.subr.mxu0 0.0
  %1134 = vmatpush2.msra.mxu0 0.0
  %1135 = vmatprep.subr.mxu0 0.0
  %1136 = vmatpush2.msra.mxu0 0.0
  %1137 = vmatprep.subr.mxu0 0.0
  %1138 = vmatpush2.msra.mxu0 0.0
  %1139 = vmatprep.subr.mxu0 0.0
  %1140 = vmatpush2.msra.mxu0 0.0
  %1141 = vmatprep.subr.mxu0 0.0
  %1142 = vmatpush2.msra.mxu0 0.0
  %1143 = vmatprep.subr.mxu0 0.0
  %1144 = vmatpush2.msra.mxu0 0.0
  %1145 = vmatprep.subr.mxu0 0.0
  %1146 = vmatpush2.msra.mxu0 0.0
  %1147 = vmatprep.mubr.f32.mxu0 0.0
  %1148 = vmatmul.mubr.f32.gmra.mxu0 %v1077
  %v1149 = vpop.f32.mrf.mxu0
  %v1150 = vadd.f32 %v1073, %v1149
  %v1151 = vpop.f32.mrf.mxu0
  %1152 = vdwg.mxu0
  %v1153 = vmax.f32 %v1150, 0.0
  %v1154 = vld [vmem:[%s3] sm:$0x3]
  %v1155 = vld [vmem:[%s4] sm:$0x1]
  %v1157 = vlaneseq
  %v1158 = vshrl.u32 %v1157, 7
  %v1159 = vsub.s32 0, %v1158
  %v1160 = vrot.slane %v1155, %v1159
  %vm1162 = vcmask 15360
  %v1164 = vsel %vm1162, %v1153, 0
  %vm1166 = vcmask 1041408
  %v1168 = vsel %vm1166, %v1154, 0
  %1170 = vmatprep.subr.mxu0 0.0
  %1171 = vmatpush1.msra.mxu0 0.0
  %1172 = vmatprep.subr.mxu0 0.0
  %1173 = vmatpush1.msra.mxu0 0.0
  %1174 = vmatprep.subr.mxu0 0.0
  %1175 = vmatpush1.msra.mxu0 0.0
  %1176 = vmatprep.subr.mxu0 0.0
  %1177 = vmatpush1.msra.mxu0 0.0
  %1178 = vmatprep.subr.mxu0 0.0
  %1179 = vmatpush1.msra.mxu0 0.0
  %1180 = vmatprep.subr.mxu0 0.0
  %1181 = vmatpush1.msra.mxu0 0.0
  %1182 = vmatprep.subr.mxu0 0.0
  %1183 = vmatpush1.msra.mxu0 0.0
  %1184 = vmatprep.subr.mxu0 0.0
  %1185 = vmatpush1.msra.mxu0 0.0
  %1186 = vmatprep.subr.mxu0 0.0
  %1187 = vmatpush1.msra.mxu0 0.0
  %1188 = vmatprep.subr.mxu0 0.0
  %1189 = vmatpush1.msra.mxu0 0.0
  %1190 = vmatprep.subr.mxu0 0.0
  %1191 = vmatpush1.msra.mxu0 0.0
  %1192 = vmatprep.subr.mxu0 0.0
  %1193 = vmatpush1.msra.mxu0 0.0
  %1194 = vmatprep.subr.mxu0 0.0
  %1195 = vmatpush1.msra.mxu0 0.0
  %1196 = vmatprep.subr.mxu0 0.0
  %1197 = vmatpush1.msra.mxu0 0.0
  %1198 = vmatprep.subr.mxu0 0.0
  %1199 = vmatpush1.msra.mxu0 0.0
  %1200 = vmatprep.subr.mxu0 0.0
  %1201 = vmatpush1.msra.mxu0 %v1168
  %1202 = vmatprep.subr.mxu0 0.0
  %1203 = vmatpush2.msra.mxu0 0.0
  %1204 = vmatprep.subr.mxu0 0.0
  %1205 = vmatpush2.msra.mxu0 0.0
  %1206 = vmatprep.subr.mxu0 0.0
  %1207 = vmatpush2.msra.mxu0 0.0
  %1208 = vmatprep.subr.mxu0 0.0
  %1209 = vmatpush2.msra.mxu0 0.0
  %1210 = vmatprep.subr.mxu0 0.0
  %1211 = vmatpush2.msra.mxu0 0.0
  %1212 = vmatprep.subr.mxu0 0.0
  %1213 = vmatpush2.msra.mxu0 0.0
  %1214 = vmatprep.subr.mxu0 0.0
  %1215 = vmatpush2.msra.mxu0 0.0
  %1216 = vmatprep.subr.mxu0 0.0
  %1217 = vmatpush2.msra.mxu0 0.0
  %1218 = vmatprep.subr.mxu0 0.0
  %1219 = vmatpush2.msra.mxu0 0.0
  %1220 = vmatprep.subr.mxu0 0.0
  %1221 = vmatpush2.msra.mxu0 0.0
  %1222 = vmatprep.subr.mxu0 0.0
  %1223 = vmatpush2.msra.mxu0 0.0
  %1224 = vmatprep.subr.mxu0 0.0
  %1225 = vmatpush2.msra.mxu0 0.0
  %1226 = vmatprep.subr.mxu0 0.0
  %1227 = vmatpush2.msra.mxu0 0.0
  %1228 = vmatprep.subr.mxu0 0.0
  %1229 = vmatpush2.msra.mxu0 0.0
  %1230 = vmatprep.subr.mxu0 0.0
  %1231 = vmatpush2.msra.mxu0 0.0
  %1232 = vmatprep.subr.mxu0 0.0
  %1233 = vmatpush2.msra.mxu0 0.0
  %1234 = vmatprep.mubr.f32.mxu0 0.0
  %1235 = vmatmul.mubr.f32.gmra.mxu0 %v1164
  %v1236 = vpop.f32.mrf.mxu0
  %v1237 = vadd.f32 %v1160, %v1236
  %v1238 = vpop.f32.mrf.mxu0
  %1239 = vdwg.mxu0
  %v1240 = vxor.u32 %v1237, 2147483648
  %v1241 = vmul.f32 %v1240, 1.442695
  %v1242 = vpow.pop %v1241
  %v1243 = vadd.f32 %v1242, 1.0
  %v1244 = vrcp.pop %v1243
  %v1245 = vmul.f32 1.0, %v1244
  %1247 = vrot.lane.b32.xlu0 %v1245, 4
  %v1248 = vpop.permute.xlu0 %1247
  %v1250 = vsel %vm1075, %v1245, %v1248
  %vm1251 = vcmask 64512
  %1252 = vst.msk [vmem:[#allocation2] sm:$0xff] %vm1251, 0.0
  %1253 = vst.msk [vmem:[#allocation2 + $0x8] sm:$0xff] %vm1251, 0.0
  %vm1254 = vcmask 58368
  %1255 = vst.msk [vmem:[#allocation2 + $0x10] sm:$0x3] %vm1254, 0.0
  %1256 = vst.msk [vmem:[#allocation2 + $0x1b0] sm:$0xff] %vm1251, 0.0
  %1257 = vst.msk [vmem:[#allocation2 + $0x1b8] sm:$0xff] %vm1251, 0.0
  %1258 = vst.msk [vmem:[#allocation2 + $0x1c0] sm:$0x3] %vm1254, 0.0
  %s1259 = scalar_lea.vmem [#allocation2], 408
  %1260 = vst.msk [vmem:[%s1259] sm:$0xff] %vm1251, 0.0
  %1261 = vst.msk [vmem:[%s1259 + $0x8] sm:$0xff] %vm1251, 0.0
  %1262 = vst.msk [vmem:[%s1259 + $0x10] sm:$0x3] %vm1254, 0.0
  %1263 = vst.msk [vmem:[%s1259 + $0x1b0] sm:$0xff] %vm1251, 0.0
  %1264 = vst.msk [vmem:[%s1259 + $0x1b8] sm:$0xff] %vm1251, 0.0
  %1265 = vst.msk [vmem:[%s1259 + $0x1c0] sm:$0x3] %vm1254, 0.0
  %s1266 = scalar_lea.vmem [#allocation2], 24
  %vm1267 = vcmask 57344
  %1268 = vst.msk [vmem:[%s1266] sm:$0x1] %vm1267, 0.0
  %1269 = vst.msk [vmem:[%s1266 + $0x18] sm:$0x1] %vm1267, 0.0
  %1270 = vst.msk [vmem:[%s1266 + $0x30] sm:$0x1] %vm1267, 0.0
  %1271 = vst.msk [vmem:[%s1266 + $0x48] sm:$0x1] %vm1267, 0.0
  %1272 = vst.msk [vmem:[%s1266 + $0x60] sm:$0x1] %vm1267, 0.0
  %1273 = vst.msk [vmem:[%s1266 + $0x78] sm:$0x1] %vm1267, 0.0
  %1274 = vst.msk [vmem:[%s1266 + $0x90] sm:$0x1] %vm1267, 0.0
  %1275 = vst.msk [vmem:[%s1266 + $0xa8] sm:$0x1] %vm1267, 0.0
  %1276 = vst.msk [vmem:[%s1266 + $0xc0] sm:$0x1] %vm1267, 0.0
  %1277 = vst.msk [vmem:[%s1266 + $0xd8] sm:$0x1] %vm1267, 0.0
  %1278 = vst.msk [vmem:[%s1266 + $0xf0] sm:$0x1] %vm1267, 0.0
  %1279 = vst.msk [vmem:[%s1266 + $0x108] sm:$0x1] %vm1267, 0.0
  %1280 = vst.msk [vmem:[%s1266 + $0x120] sm:$0x1] %vm1267, 0.0
  %1281 = vst.msk [vmem:[%s1266 + $0x138] sm:$0x1] %vm1267, 0.0
  %1282 = vst.msk [vmem:[%s1266 + $0x150] sm:$0x1] %vm1267, 0.0
  %1283 = vst.msk [vmem:[%s1266 + $0x168] sm:$0x1] %vm1267, 0.0
  %1284 = vst.msk [vmem:[%s1266 + $0x1b0] sm:$0x1] %vm1267, 0.0
  %1285 = vst.msk [vmem:[%s1266 + $0x1c8] sm:$0x1] %vm1267, 0.0
  %1286 = vst.msk [vmem:[%s1266 + $0x1e0] sm:$0x1] %vm1267, 0.0
  %1287 = vst.msk [vmem:[%s1266 + $0x1f8] sm:$0x1] %vm1267, 0.0
  %1288 = vst.msk [vmem:[%s1266 + $0x210] sm:$0x1] %vm1267, 0.0
  %1289 = vst.msk [vmem:[%s1266 + $0x228] sm:$0x1] %vm1267, 0.0
  %1290 = vst.msk [vmem:[%s1266 + $0x240] sm:$0x1] %vm1267, 0.0
  %1291 = vst.msk [vmem:[%s1266 + $0x258] sm:$0x1] %vm1267, 0.0
  %1292 = vst.msk [vmem:[%s1266 + $0x270] sm:$0x1] %vm1267, 0.0
  %1293 = vst.msk [vmem:[%s1266 + $0x288] sm:$0x1] %vm1267, 0.0
  %1294 = vst.msk [vmem:[%s1266 + $0x2a0] sm:$0x1] %vm1267, 0.0
  %1295 = vst.msk [vmem:[%s1266 + $0x2b8] sm:$0x1] %vm1267, 0.0
  %1296 = vst.msk [vmem:[%s1266 + $0x2d0] sm:$0x1] %vm1267, 0.0
  %1297 = vst.msk [vmem:[%s1266 + $0x2e8] sm:$0x1] %vm1267, 0.0
  %1298 = vst.msk [vmem:[%s1266 + $0x300] sm:$0x1] %vm1267, 0.0
  %1299 = vst.msk [vmem:[%s1266 + $0x318] sm:$0x1] %vm1267, 0.0
  %1300 = vst.msk [vmem:[%s1266 + $0x11] sm:$0x1] %vm1267, 0.0
  %1301 = vst.msk [vmem:[%s1266 + $0x29] sm:$0x1] %vm1267, 0.0
  %1302 = vst.msk [vmem:[%s1266 + $0x41] sm:$0x1] %vm1267, 0.0
  %1303 = vst.msk [vmem:[%s1266 + $0x59] sm:$0x1] %vm1267, 0.0
  %1304 = vst.msk [vmem:[%s1266 + $0x71] sm:$0x1] %vm1267, 0.0
  %1305 = vst.msk [vmem:[%s1266 + $0x89] sm:$0x1] %vm1267, 0.0
  %1306 = vst.msk [vmem:[%s1266 + $0xa1] sm:$0x1] %vm1267, 0.0
  %1307 = vst.msk [vmem:[%s1266 + $0xb9] sm:$0x1] %vm1267, 0.0
  %1308 = vst.msk [vmem:[%s1266 + $0xd1] sm:$0x1] %vm1267, 0.0
  %1309 = vst.msk [vmem:[%s1266 + $0xe9] sm:$0x1] %vm1267, 0.0
  %1310 = vst.msk [vmem:[%s1266 + $0x101] sm:$0x1] %vm1267, 0.0
  %1311 = vst.msk [vmem:[%s1266 + $0x119] sm:$0x1] %vm1267, 0.0
  %1312 = vst.msk [vmem:[%s1266 + $0x131] sm:$0x1] %vm1267, 0.0
  %1313 = vst.msk [vmem:[%s1266 + $0x149] sm:$0x1] %vm1267, 0.0
  %1314 = vst.msk [vmem:[%s1266 + $0x161] sm:$0x1] %vm1267, 0.0
  %1315 = vst.msk [vmem:[%s1266 + $0x179] sm:$0x1] %vm1267, 0.0
  %1316 = vst.msk [vmem:[%s1266 + $0x1c1] sm:$0x1] %vm1267, 0.0
  %1317 = vst.msk [vmem:[%s1266 + $0x1d9] sm:$0x1] %vm1267, 0.0
  %1318 = vst.msk [vmem:[%s1266 + $0x1f1] sm:$0x1] %vm1267, 0.0
  %1319 = vst.msk [vmem:[%s1266 + $0x209] sm:$0x1] %vm1267, 0.0
  %1320 = vst.msk [vmem:[%s1266 + $0x221] sm:$0x1] %vm1267, 0.0
  %1321 = vst.msk [vmem:[%s1266 + $0x239] sm:$0x1] %vm1267, 0.0
  %1322 = vst.msk [vmem:[%s1266 + $0x251] sm:$0x1] %vm1267, 0.0
  %1323 = vst.msk [vmem:[%s1266 + $0x269] sm:$0x1] %vm1267, 0.0
  %1324 = vst.msk [vmem:[%s1266 + $0x281] sm:$0x1] %vm1267, 0.0
  %1325 = vst.msk [vmem:[%s1266 + $0x299] sm:$0x1] %vm1267, 0.0
  %1326 = vst.msk [vmem:[%s1266 + $0x2b1] sm:$0x1] %vm1267, 0.0
  %1327 = vst.msk [vmem:[%s1266 + $0x2c9] sm:$0x1] %vm1267, 0.0
  %1328 = vst.msk [vmem:[%s1266 + $0x2e1] sm:$0x1] %vm1267, 0.0
  %1329 = vst.msk [vmem:[%s1266 + $0x2f9] sm:$0x1] %vm1267, 0.0
  %1330 = vst.msk [vmem:[%s1266 + $0x311] sm:$0x1] %vm1267, 0.0
  %1331 = vst.msk [vmem:[%s1266 + $0x329] sm:$0x1] %vm1267, 0.0
  %v1334 = vunpack.c.l.s4 1966171168
  %v1335 = vunpack.c.0.s8 %v1334
  %v1336 = vlaneseq
  %v1337 = vshrl.u32 %v1336, 7
  %v1338 = vsub.s32 %v1335, %v1337
  %v1339 = vrot.slane %v1250, %v1338
  %v1340 = vcombine.high %v1339, %v1339
  %v1342 = vunpack.c.l.s4 1966171168
  %v1343 = vunpack.c.0.s8 %v1342
  %v1344 = vlaneseq
  %v1345 = vshrl.u32 %v1344, 7
  %v1346 = vsub.s32 %v1343, %v1345
  %v1347 = vrot.slane %v1339, %v1346
  %v1349 = vunpack.c.l.s4 1966171168
  %v1350 = vunpack.c.0.s8 %v1349
  %v1351 = vlaneseq
  %v1352 = vshrl.u32 %v1351, 7
  %v1353 = vsub.s32 %v1350, %v1352
  %v1354 = vrot.slane %v1340, %v1353
  %v1355 = vlaneseq
  %v1356 = vshrl.u32 %v1355, 7
  %v1357 = vsub.s32 0, %v1356
  %v1358 = vrot.slane %v1347, %v1357
  %v1359 = vlaneseq
  %v1360 = vshrl.u32 %v1359, 7
  %v1361 = vsub.s32 0, %v1360
  %v1362 = vrot.slane %v1354, %v1361
  %v1365 = vmul.f32 %v26, %v1358
  %v1366 = vmul.f32 %v27, %v1358
  %v1367 = vmul.f32 %v28, %v1358
  %v1368 = vmul.f32 %v29, %v1358
  %v1369 = vmul.f32 %v30, %v1358
  %v1370 = vmul.f32 %v31, %v1358
  %v1371 = vmul.f32 %v32, %v1358
  %v1372 = vmul.f32 %v33, %v1358
  %v1373 = vmul.f32 %v34, %v1358
  %v1374 = vmul.f32 %v35, %v1358
  %v1375 = vmul.f32 %v36, %v1358
  %v1376 = vmul.f32 %v37, %v1358
  %v1377 = vmul.f32 %v38, %v1358
  %v1378 = vmul.f32 %v39, %v1358
  %v1379 = vmul.f32 %v40, %v1358
  %v1380 = vmul.f32 %v41, %v1358
  %v1381 = vmul.f32 %v42, %v1358
  %v1382 = vmul.f32 %v43, %v1358
  %v1383 = vmul.f32 %v44, %v1358
  %v1384 = vmul.f32 %v45, %v1358
  %v1385 = vmul.f32 %v46, %v1358
  %v1386 = vmul.f32 %v47, %v1358
  %v1387 = vmul.f32 %v48, %v1358
  %v1388 = vmul.f32 %v49, %v1358
  %v1389 = vmul.f32 %v50, %v1358
  %v1390 = vmul.f32 %v51, %v1358
  %v1391 = vmul.f32 %v52, %v1358
  %v1392 = vmul.f32 %v53, %v1358
  %v1393 = vmul.f32 %v54, %v1358
  %v1394 = vmul.f32 %v55, %v1358
  %v1395 = vmul.f32 %v56, %v1358
  %v1396 = vmul.f32 %v57, %v1358
  %v1397 = vmul.f32 %v58, %v1362
  %v1398 = vmul.f32 %v59, %v1362
  %v1399 = vmul.f32 %v60, %v1362
  %v1400 = vmul.f32 %v61, %v1362
  %v1401 = vmul.f32 %v62, %v1362
  %v1402 = vmul.f32 %v63, %v1362
  %v1403 = vmul.f32 %v64, %v1362
  %v1404 = vmul.f32 %v65, %v1362
  %v1405 = vmul.f32 %v66, %v1362
  %v1406 = vmul.f32 %v67, %v1362
  %v1407 = vmul.f32 %v68, %v1362
  %v1408 = vmul.f32 %v69, %v1362
  %v1409 = vmul.f32 %v70, %v1362
  %v1410 = vmul.f32 %v71, %v1362
  %v1411 = vmul.f32 %v72, %v1362
  %v1412 = vmul.f32 %v73, %v1362
  %v1413 = vmul.f32 %v74, %v1362
  %v1414 = vmul.f32 %v75, %v1362
  %v1415 = vmul.f32 %v76, %v1362
  %v1416 = vmul.f32 %v77, %v1362
  %v1417 = vmul.f32 %v78, %v1362
  %v1418 = vmul.f32 %v79, %v1362
  %v1419 = vmul.f32 %v80, %v1362
  %v1420 = vmul.f32 %v81, %v1362
  %v1421 = vmul.f32 %v82, %v1362
  %v1422 = vmul.f32 %v83, %v1362
  %v1423 = vmul.f32 %v84, %v1362
  %v1424 = vmul.f32 %v85, %v1362
  %v1425 = vmul.f32 %v86, %v1362
  %v1426 = vmul.f32 %v87, %v1362
  %v1427 = vmul.f32 %v88, %v1362
  %v1428 = vmul.f32 %v89, %v1362
  %1429 = vst.msk [vmem:[%s1266 + $0x1] sm:$0xff] %vm1251, %v1365
  %1430 = vst.msk [vmem:[%s1266 + $0x9] sm:$0xff] %vm1251, %v1366
  %1431 = vst.msk [vmem:[%s1266 + $0x19] sm:$0xff] %vm1251, %v1367
  %1432 = vst.msk [vmem:[%s1266 + $0x21] sm:$0xff] %vm1251, %v1368
  %1433 = vst.msk [vmem:[%s1266 + $0x31] sm:$0xff] %vm1251, %v1369
  %1434 = vst.msk [vmem:[%s1266 + $0x39] sm:$0xff] %vm1251, %v1370
  %1435 = vst.msk [vmem:[%s1266 + $0x49] sm:$0xff] %vm1251, %v1371
  %1436 = vst.msk [vmem:[%s1266 + $0x51] sm:$0xff] %vm1251, %v1372
  %1437 = vst.msk [vmem:[%s1266 + $0x61] sm:$0xff] %vm1251, %v1373
  %1438 = vst.msk [vmem:[%s1266 + $0x69] sm:$0xff] %vm1251, %v1374
  %1439 = vst.msk [vmem:[%s1266 + $0x79] sm:$0xff] %vm1251, %v1375
  %1440 = vst.msk [vmem:[%s1266 + $0x81] sm:$0xff] %vm1251, %v1376
  %1441 = vst.msk [vmem:[%s1266 + $0x91] sm:$0xff] %vm1251, %v1377
  %1442 = vst.msk [vmem:[%s1266 + $0x99] sm:$0xff] %vm1251, %v1378
  %1443 = vst.msk [vmem:[%s1266 + $0xa9] sm:$0xff] %vm1251, %v1379
  %1444 = vst.msk [vmem:[%s1266 + $0xb1] sm:$0xff] %vm1251, %v1380
  %1445 = vst.msk [vmem:[%s1266 + $0xc1] sm:$0xff] %vm1251, %v1381
  %1446 = vst.msk [vmem:[%s1266 + $0xc9] sm:$0xff] %vm1251, %v1382
  %1447 = vst.msk [vmem:[%s1266 + $0xd9] sm:$0xff] %vm1251, %v1383
  %1448 = vst.msk [vmem:[%s1266 + $0xe1] sm:$0xff] %vm1251, %v1384
  %1449 = vst.msk [vmem:[%s1266 + $0xf1] sm:$0xff] %vm1251, %v1385
  %1450 = vst.msk [vmem:[%s1266 + $0xf9] sm:$0xff] %vm1251, %v1386
  %1451 = vst.msk [vmem:[%s1266 + $0x109] sm:$0xff] %vm1251, %v1387
  %1452 = vst.msk [vmem:[%s1266 + $0x111] sm:$0xff] %vm1251, %v1388
  %1453 = vst.msk [vmem:[%s1266 + $0x121] sm:$0xff] %vm1251, %v1389
  %1454 = vst.msk [vmem:[%s1266 + $0x129] sm:$0xff] %vm1251, %v1390
  %1455 = vst.msk [vmem:[%s1266 + $0x139] sm:$0xff] %vm1251, %v1391
  %1456 = vst.msk [vmem:[%s1266 + $0x141] sm:$0xff] %vm1251, %v1392
  %1457 = vst.msk [vmem:[%s1266 + $0x151] sm:$0xff] %vm1251, %v1393
  %1458 = vst.msk [vmem:[%s1266 + $0x159] sm:$0xff] %vm1251, %v1394
  %1459 = vst.msk [vmem:[%s1266 + $0x169] sm:$0xff] %vm1251, %v1395
  %1460 = vst.msk [vmem:[%s1266 + $0x171] sm:$0xff] %vm1251, %v1396
  %1461 = vst.msk [vmem:[%s1266 + $0x1b1] sm:$0xff] %vm1251, %v1397
  %1462 = vst.msk [vmem:[%s1266 + $0x1b9] sm:$0xff] %vm1251, %v1398
  %1463 = vst.msk [vmem:[%s1266 + $0x1c9] sm:$0xff] %vm1251, %v1399
  %1464 = vst.msk [vmem:[%s1266 + $0x1d1] sm:$0xff] %vm1251, %v1400
  %1465 = vst.msk [vmem:[%s1266 + $0x1e1] sm:$0xff] %vm1251, %v1401
  %1466 = vst.msk [vmem:[%s1266 + $0x1e9] sm:$0xff] %vm1251, %v1402
  %1467 = vst.msk [vmem:[%s1266 + $0x1f9] sm:$0xff] %vm1251, %v1403
  %1468 = vst.msk [vmem:[%s1266 + $0x201] sm:$0xff] %vm1251, %v1404
  %1469 = vst.msk [vmem:[%s1266 + $0x211] sm:$0xff] %vm1251, %v1405
  %1470 = vst.msk [vmem:[%s1266 + $0x219] sm:$0xff] %vm1251, %v1406
  %1471 = vst.msk [vmem:[%s1266 + $0x229] sm:$0xff] %vm1251, %v1407
  %1472 = vst.msk [vmem:[%s1266 + $0x231] sm:$0xff] %vm1251, %v1408
  %1473 = vst.msk [vmem:[%s1266 + $0x241] sm:$0xff] %vm1251, %v1409
  %1474 = vst.msk [vmem:[%s1266 + $0x249] sm:$0xff] %vm1251, %v1410
  %1475 = vst.msk [vmem:[%s1266 + $0x259] sm:$0xff] %vm1251, %v1411
  %1476 = vst.msk [vmem:[%s1266 + $0x261] sm:$0xff] %vm1251, %v1412
  %1477 = vst.msk [vmem:[%s1266 + $0x271] sm:$0xff] %vm1251, %v1413
  %1478 = vst.msk [vmem:[%s1266 + $0x279] sm:$0xff] %vm1251, %v1414
  %1479 = vst.msk [vmem:[%s1266 + $0x289] sm:$0xff] %vm1251, %v1415
  %1480 = vst.msk [vmem:[%s1266 + $0x291] sm:$0xff] %vm1251, %v1416
  %1481 = vst.msk [vmem:[%s1266 + $0x2a1] sm:$0xff] %vm1251, %v1417
  %1482 = vst.msk [vmem:[%s1266 + $0x2a9] sm:$0xff] %vm1251, %v1418
  %1483 = vst.msk [vmem:[%s1266 + $0x2b9] sm:$0xff] %vm1251, %v1419
  %1484 = vst.msk [vmem:[%s1266 + $0x2c1] sm:$0xff] %vm1251, %v1420
  %1485 = vst.msk [vmem:[%s1266 + $0x2d1] sm:$0xff] %vm1251, %v1421
  %1486 = vst.msk [vmem:[%s1266 + $0x2d9] sm:$0xff] %vm1251, %v1422
  %1487 = vst.msk [vmem:[%s1266 + $0x2e9] sm:$0xff] %vm1251, %v1423
  %1488 = vst.msk [vmem:[%s1266 + $0x2f1] sm:$0xff] %vm1251, %v1424
  %1489 = vst.msk [vmem:[%s1266 + $0x301] sm:$0xff] %vm1251, %v1425
  %1490 = vst.msk [vmem:[%s1266 + $0x309] sm:$0xff] %vm1251, %v1426
  %1491 = vst.msk [vmem:[%s1266 + $0x319] sm:$0xff] %vm1251, %v1427
  %1492 = vst.msk [vmem:[%s1266 + $0x321] sm:$0xff] %vm1251, %v1428
  %v1493 = vld [vmem:[#allocation2] sm:$0xff]
  %v1494 = vld [vmem:[#allocation2 + $0x8] sm:$0xff]
  %v1495 = vld [vmem:[#allocation2 + $0x18] sm:$0xff]
  %v1496 = vld [vmem:[#allocation2 + $0x20] sm:$0xff]
  %v1497 = vld [vmem:[#allocation2 + $0x30] sm:$0xff]
  %v1498 = vld [vmem:[#allocation2 + $0x38] sm:$0xff]
  %v1499 = vld [vmem:[#allocation2 + $0x48] sm:$0xff]
  %v1500 = vld [vmem:[#allocation2 + $0x50] sm:$0xff]
  %v1501 = vld [vmem:[#allocation2 + $0x60] sm:$0xff]
  %v1502 = vld [vmem:[#allocation2 + $0x68] sm:$0xff]
  %v1503 = vld [vmem:[#allocation2 + $0x78] sm:$0xff]
  %v1504 = vld [vmem:[#allocation2 + $0x80] sm:$0xff]
  %v1505 = vld [vmem:[#allocation2 + $0x90] sm:$0xff]
  %v1506 = vld [vmem:[#allocation2 + $0x98] sm:$0xff]
  %v1507 = vld [vmem:[#allocation2 + $0xa8] sm:$0xff]
  %v1508 = vld [vmem:[#allocation2 + $0xb0] sm:$0xff]
  %v1509 = vld [vmem:[#allocation2 + $0xc0] sm:$0xff]
  %v1510 = vld [vmem:[#allocation2 + $0xc8] sm:$0xff]
  %v1511 = vld [vmem:[#allocation2 + $0xd8] sm:$0xff]
  %v1512 = vld [vmem:[#allocation2 + $0xe0] sm:$0xff]
  %v1513 = vld [vmem:[#allocation2 + $0xf0] sm:$0xff]
  %v1514 = vld [vmem:[#allocation2 + $0xf8] sm:$0xff]
  %v1515 = vld [vmem:[#allocation2 + $0x108] sm:$0xff]
  %v1516 = vld [vmem:[#allocation2 + $0x110] sm:$0xff]
  %v1517 = vld [vmem:[#allocation2 + $0x120] sm:$0xff]
  %v1518 = vld [vmem:[#allocation2 + $0x128] sm:$0xff]
  %v1519 = vld [vmem:[#allocation2 + $0x138] sm:$0xff]
  %v1520 = vld [vmem:[#allocation2 + $0x140] sm:$0xff]
  %v1521 = vld [vmem:[#allocation2 + $0x150] sm:$0xff]
  %v1522 = vld [vmem:[#allocation2 + $0x158] sm:$0xff]
  %v1523 = vld [vmem:[#allocation2 + $0x168] sm:$0xff]
  %v1524 = vld [vmem:[#allocation2 + $0x170] sm:$0xff]
  %v1525 = vld [vmem:[#allocation2 + $0x1b0] sm:$0xff]
  %v1526 = vld [vmem:[#allocation2 + $0x1b8] sm:$0xff]
  %v1527 = vld [vmem:[#allocation2 + $0x1c8] sm:$0xff]
  %v1528 = vld [vmem:[#allocation2 + $0x1d0] sm:$0xff]
  %v1529 = vld [vmem:[#allocation2 + $0x1e0] sm:$0xff]
  %v1530 = vld [vmem:[#allocation2 + $0x1e8] sm:$0xff]
  %v1531 = vld [vmem:[#allocation2 + $0x1f8] sm:$0xff]
  %v1532 = vld [vmem:[#allocation2 + $0x200] sm:$0xff]
  %v1533 = vld [vmem:[#allocation2 + $0x210] sm:$0xff]
  %v1534 = vld [vmem:[#allocation2 + $0x218] sm:$0xff]
  %v1535 = vld [vmem:[#allocation2 + $0x228] sm:$0xff]
  %v1536 = vld [vmem:[#allocation2 + $0x230] sm:$0xff]
  %v1537 = vld [vmem:[#allocation2 + $0x240] sm:$0xff]
  %v1538 = vld [vmem:[#allocation2 + $0x248] sm:$0xff]
  %v1539 = vld [vmem:[#allocation2 + $0x258] sm:$0xff]
  %v1540 = vld [vmem:[#allocation2 + $0x260] sm:$0xff]
  %v1541 = vld [vmem:[#allocation2 + $0x270] sm:$0xff]
  %v1542 = vld [vmem:[#allocation2 + $0x278] sm:$0xff]
  %v1543 = vld [vmem:[#allocation2 + $0x288] sm:$0xff]
  %v1544 = vld [vmem:[#allocation2 + $0x290] sm:$0xff]
  %v1545 = vld [vmem:[#allocation2 + $0x2a0] sm:$0xff]
  %v1546 = vld [vmem:[#allocation2 + $0x2a8] sm:$0xff]
  %v1547 = vld [vmem:[#allocation2 + $0x2b8] sm:$0xff]
  %v1548 = vld [vmem:[#allocation2 + $0x2c0] sm:$0xff]
  %v1549 = vld [vmem:[#allocation2 + $0x2d0] sm:$0xff]
  %v1550 = vld [vmem:[#allocation2 + $0x2d8] sm:$0xff]
  %v1551 = vld [vmem:[#allocation2 + $0x2e8] sm:$0xff]
  %v1552 = vld [vmem:[#allocation2 + $0x2f0] sm:$0xff]
  %v1553 = vld [vmem:[#allocation2 + $0x300] sm:$0xff]
  %v1554 = vld [vmem:[#allocation2 + $0x308] sm:$0xff]
  %v1555 = vld [vmem:[#allocation2 + $0x318] sm:$0xff]
  %v1556 = vld [vmem:[#allocation2 + $0x320] sm:$0xff]
  %1557 = vst.msk [vmem:[#allocation3] sm:$0xff] %vm1251, %v1493
  %1558 = vst.msk [vmem:[#allocation3 + $0x8] sm:$0xff] %vm1251, %v1494
  %1559 = vst.msk [vmem:[#allocation3 + $0x10] sm:$0xff] %vm1251, %v1495
  %1560 = vst.msk [vmem:[#allocation3 + $0x18] sm:$0xff] %vm1251, %v1496
  %1561 = vst.msk [vmem:[#allocation3 + $0x20] sm:$0xff] %vm1251, %v1497
  %1562 = vst.msk [vmem:[#allocation3 + $0x28] sm:$0xff] %vm1251, %v1498
  %1563 = vst.msk [vmem:[#allocation3 + $0x30] sm:$0xff] %vm1251, %v1499
  %1564 = vst.msk [vmem:[#allocation3 + $0x38] sm:$0xff] %vm1251, %v1500
  %1565 = vst.msk [vmem:[#allocation3 + $0x40] sm:$0xff] %vm1251, %v1501
  %1566 = vst.msk [vmem:[#allocation3 + $0x48] sm:$0xff] %vm1251, %v1502
  %1567 = vst.msk [vmem:[#allocation3 + $0x50] sm:$0xff] %vm1251, %v1503
  %1568 = vst.msk [vmem:[#allocation3 + $0x58] sm:$0xff] %vm1251, %v1504
  %1569 = vst.msk [vmem:[#allocation3 + $0x60] sm:$0xff] %vm1251, %v1505
  %1570 = vst.msk [vmem:[#allocation3 + $0x68] sm:$0xff] %vm1251, %v1506
  %1571 = vst.msk [vmem:[#allocation3 + $0x70] sm:$0xff] %vm1251, %v1507
  %1572 = vst.msk [vmem:[#allocation3 + $0x78] sm:$0xff] %vm1251, %v1508
  %1573 = vst.msk [vmem:[#allocation3 + $0x80] sm:$0xff] %vm1251, %v1509
  %1574 = vst.msk [vmem:[#allocation3 + $0x88] sm:$0xff] %vm1251, %v1510
  %1575 = vst.msk [vmem:[#allocation3 + $0x90] sm:$0xff] %vm1251, %v1511
  %1576 = vst.msk [vmem:[#allocation3 + $0x98] sm:$0xff] %vm1251, %v1512
  %1577 = vst.msk [vmem:[#allocation3 + $0xa0] sm:$0xff] %vm1251, %v1513
  %1578 = vst.msk [vmem:[#allocation3 + $0xa8] sm:$0xff] %vm1251, %v1514
  %1579 = vst.msk [vmem:[#allocation3 + $0xb0] sm:$0xff] %vm1251, %v1515
  %1580 = vst.msk [vmem:[#allocation3 + $0xb8] sm:$0xff] %vm1251, %v1516
  %1581 = vst.msk [vmem:[#allocation3 + $0xc0] sm:$0xff] %vm1251, %v1517
  %1582 = vst.msk [vmem:[#allocation3 + $0xc8] sm:$0xff] %vm1251, %v1518
  %1583 = vst.msk [vmem:[#allocation3 + $0xd0] sm:$0xff] %vm1251, %v1519
  %1584 = vst.msk [vmem:[#allocation3 + $0xd8] sm:$0xff] %vm1251, %v1520
  %1585 = vst.msk [vmem:[#allocation3 + $0xe0] sm:$0xff] %vm1251, %v1521
  %1586 = vst.msk [vmem:[#allocation3 + $0xe8] sm:$0xff] %vm1251, %v1522
  %1587 = vst.msk [vmem:[#allocation3 + $0xf0] sm:$0xff] %vm1251, %v1523
  %1588 = vst.msk [vmem:[#allocation3 + $0xf8] sm:$0xff] %vm1251, %v1524
  %1589 = vst.msk [vmem:[#allocation3 + $0x100] sm:$0xff] %vm1251, %v1525
  %1590 = vst.msk [vmem:[#allocation3 + $0x108] sm:$0xff] %vm1251, %v1526
  %1591 = vst.msk [vmem:[#allocation3 + $0x110] sm:$0xff] %vm1251, %v1527
  %1592 = vst.msk [vmem:[#allocation3 + $0x118] sm:$0xff] %vm1251, %v1528
  %1593 = vst.msk [vmem:[#allocation3 + $0x120] sm:$0xff] %vm1251, %v1529
  %1594 = vst.msk [vmem:[#allocation3 + $0x128] sm:$0xff] %vm1251, %v1530
  %1595 = vst.msk [vmem:[#allocation3 + $0x130] sm:$0xff] %vm1251, %v1531
  %1596 = vst.msk [vmem:[#allocation3 + $0x138] sm:$0xff] %vm1251, %v1532
  %1597 = vst.msk [vmem:[#allocation3 + $0x140] sm:$0xff] %vm1251, %v1533
  %1598 = vst.msk [vmem:[#allocation3 + $0x148] sm:$0xff] %vm1251, %v1534
  %1599 = vst.msk [vmem:[#allocation3 + $0x150] sm:$0xff] %vm1251, %v1535
  %1600 = vst.msk [vmem:[#allocation3 + $0x158] sm:$0xff] %vm1251, %v1536
  %1601 = vst.msk [vmem:[#allocation3 + $0x160] sm:$0xff] %vm1251, %v1537
  %1602 = vst.msk [vmem:[#allocation3 + $0x168] sm:$0xff] %vm1251, %v1538
  %1603 = vst.msk [vmem:[#allocation3 + $0x170] sm:$0xff] %vm1251, %v1539
  %1604 = vst.msk [vmem:[#allocation3 + $0x178] sm:$0xff] %vm1251, %v1540
  %1605 = vst.msk [vmem:[#allocation3 + $0x180] sm:$0xff] %vm1251, %v1541
  %1606 = vst.msk [vmem:[#allocation3 + $0x188] sm:$0xff] %vm1251, %v1542
  %1607 = vst.msk [vmem:[#allocation3 + $0x190] sm:$0xff] %vm1251, %v1543
  %1608 = vst.msk [vmem:[#allocation3 + $0x198] sm:$0xff] %vm1251, %v1544
  %1609 = vst.msk [vmem:[#allocation3 + $0x1a0] sm:$0xff] %vm1251, %v1545
  %1610 = vst.msk [vmem:[#allocation3 + $0x1a8] sm:$0xff] %vm1251, %v1546
  %1611 = vst.msk [vmem:[#allocation3 + $0x1b0] sm:$0xff] %vm1251, %v1547
  %1612 = vst.msk [vmem:[#allocation3 + $0x1b8] sm:$0xff] %vm1251, %v1548
  %1613 = vst.msk [vmem:[#allocation3 + $0x1c0] sm:$0xff] %vm1251, %v1549
  %1614 = vst.msk [vmem:[#allocation3 + $0x1c8] sm:$0xff] %vm1251, %v1550
  %1615 = vst.msk [vmem:[#allocation3 + $0x1d0] sm:$0xff] %vm1251, %v1551
  %1616 = vst.msk [vmem:[#allocation3 + $0x1d8] sm:$0xff] %vm1251, %v1552
  %1617 = vst.msk [vmem:[#allocation3 + $0x1e0] sm:$0xff] %vm1251, %v1553
  %1618 = vst.msk [vmem:[#allocation3 + $0x1e8] sm:$0xff] %vm1251, %v1554
  %1619 = vst.msk [vmem:[#allocation3 + $0x1f0] sm:$0xff] %vm1251, %v1555
  %1620 = vst.msk [vmem:[#allocation3 + $0x1f8] sm:$0xff] %vm1251, %v1556
  %v1621 = vld [vmem:[#allocation2 + $0x1] sm:$0xff]
  %v1622 = vld [vmem:[#allocation2 + $0x9] sm:$0xff]
  %v1623 = vld [vmem:[#allocation2 + $0x19] sm:$0xff]
  %v1624 = vld [vmem:[#allocation2 + $0x21] sm:$0xff]
  %v1625 = vld [vmem:[#allocation2 + $0x31] sm:$0xff]
  %v1626 = vld [vmem:[#allocation2 + $0x39] sm:$0xff]
  %v1627 = vld [vmem:[#allocation2 + $0x49] sm:$0xff]
  %v1628 = vld [vmem:[#allocation2 + $0x51] sm:$0xff]
  %v1629 = vld [vmem:[#allocation2 + $0x61] sm:$0xff]
  %v1630 = vld [vmem:[#allocation2 + $0x69] sm:$0xff]
  %v1631 = vld [vmem:[#allocation2 + $0x79] sm:$0xff]
  %v1632 = vld [vmem:[#allocation2 + $0x81] sm:$0xff]
  %v1633 = vld [vmem:[#allocation2 + $0x91] sm:$0xff]
  %v1634 = vld [vmem:[#allocation2 + $0x99] sm:$0xff]
  %v1635 = vld [vmem:[#allocation2 + $0xa9] sm:$0xff]
  %v1636 = vld [vmem:[#allocation2 + $0xb1] sm:$0xff]
  %v1637 = vld [vmem:[#allocation2 + $0xc1] sm:$0xff]
  %v1638 = vld [vmem:[#allocation2 + $0xc9] sm:$0xff]
  %v1639 = vld [vmem:[#allocation2 + $0xd9] sm:$0xff]
  %v1640 = vld [vmem:[#allocation2 + $0xe1] sm:$0xff]
  %v1641 = vld [vmem:[#allocation2 + $0xf1] sm:$0xff]
  %v1642 = vld [vmem:[#allocation2 + $0xf9] sm:$0xff]
  %v1643 = vld [vmem:[#allocation2 + $0x109] sm:$0xff]
  %v1644 = vld [vmem:[#allocation2 + $0x111] sm:$0xff]
  %v1645 = vld [vmem:[#allocation2 + $0x121] sm:$0xff]
  %v1646 = vld [vmem:[#allocation2 + $0x129] sm:$0xff]
  %v1647 = vld [vmem:[#allocation2 + $0x139] sm:$0xff]
  %v1648 = vld [vmem:[#allocation2 + $0x141] sm:$0xff]
  %v1649 = vld [vmem:[#allocation2 + $0x151] sm:$0xff]
  %v1650 = vld [vmem:[#allocation2 + $0x159] sm:$0xff]
  %v1651 = vld [vmem:[#allocation2 + $0x169] sm:$0xff]
  %v1652 = vld [vmem:[#allocation2 + $0x171] sm:$0xff]
  %v1653 = vld [vmem:[#allocation2 + $0x1b1] sm:$0xff]
  %v1654 = vld [vmem:[#allocation2 + $0x1b9] sm:$0xff]
  %v1655 = vld [vmem:[#allocation2 + $0x1c9] sm:$0xff]
  %v1656 = vld [vmem:[#allocation2 + $0x1d1] sm:$0xff]
  %v1657 = vld [vmem:[#allocation2 + $0x1e1] sm:$0xff]
  %v1658 = vld [vmem:[#allocation2 + $0x1e9] sm:$0xff]
  %v1659 = vld [vmem:[#allocation2 + $0x1f9] sm:$0xff]
  %v1660 = vld [vmem:[#allocation2 + $0x201] sm:$0xff]
  %v1661 = vld [vmem:[#allocation2 + $0x211] sm:$0xff]
  %v1662 = vld [vmem:[#allocation2 + $0x219] sm:$0xff]
  %v1663 = vld [vmem:[#allocation2 + $0x229] sm:$0xff]
  %v1664 = vld [vmem:[#allocation2 + $0x231] sm:$0xff]
  %v1665 = vld [vmem:[#allocation2 + $0x241] sm:$0xff]
  %v1666 = vld [vmem:[#allocation2 + $0x249] sm:$0xff]
  %v1667 = vld [vmem:[#allocation2 + $0x259] sm:$0xff]
  %v1668 = vld [vmem:[#allocation2 + $0x261] sm:$0xff]
  %v1669 = vld [vmem:[#allocation2 + $0x271] sm:$0xff]
  %v1670 = vld [vmem:[#allocation2 + $0x279] sm:$0xff]
  %v1671 = vld [vmem:[#allocation2 + $0x289] sm:$0xff]
  %v1672 = vld [vmem:[#allocation2 + $0x291] sm:$0xff]
  %v1673 = vld [vmem:[#allocation2 + $0x2a1] sm:$0xff]
  %v1674 = vld [vmem:[#allocation2 + $0x2a9] sm:$0xff]
  %v1675 = vld [vmem:[#allocation2 + $0x2b9] sm:$0xff]
  %v1676 = vld [vmem:[#allocation2 + $0x2c1] sm:$0xff]
  %v1677 = vld [vmem:[#allocation2 + $0x2d1] sm:$0xff]
  %v1678 = vld [vmem:[#allocation2 + $0x2d9] sm:$0xff]
  %v1679 = vld [vmem:[#allocation2 + $0x2e9] sm:$0xff]
  %v1680 = vld [vmem:[#allocation2 + $0x2f1] sm:$0xff]
  %v1681 = vld [vmem:[#allocation2 + $0x301] sm:$0xff]
  %v1682 = vld [vmem:[#allocation2 + $0x309] sm:$0xff]
  %v1683 = vld [vmem:[#allocation2 + $0x319] sm:$0xff]
  %v1684 = vld [vmem:[#allocation2 + $0x321] sm:$0xff]
  %1749 = vrot.lane.b32.xlu0 %v1621, 8
  %v1750 = vpop.permute.xlu0 %1749
  %1751 = vrot.lane.b32.xlu0 %v1622, 8
  %v1752 = vpop.permute.xlu0 %1751
  %1753 = vrot.lane.b32.xlu0 %v1623, 8
  %v1754 = vpop.permute.xlu0 %1753
  %1755 = vrot.lane.b32.xlu0 %v1624, 8
  %v1756 = vpop.permute.xlu0 %1755
  %1757 = vrot.lane.b32.xlu0 %v1625, 8
  %v1758 = vpop.permute.xlu0 %1757
  %1759 = vrot.lane.b32.xlu0 %v1626, 8
  %v1760 = vpop.permute.xlu0 %1759
  %1761 = vrot.lane.b32.xlu0 %v1627, 8
  %v1762 = vpop.permute.xlu0 %1761
  %1763 = vrot.lane.b32.xlu0 %v1628, 8
  %v1764 = vpop.permute.xlu0 %1763
  %1765 = vrot.lane.b32.xlu0 %v1629, 8
  %v1766 = vpop.permute.xlu0 %1765
  %1767 = vrot.lane.b32.xlu0 %v1630, 8
  %v1768 = vpop.permute.xlu0 %1767
  %1769 = vrot.lane.b32.xlu0 %v1631, 8
  %v1770 = vpop.permute.xlu0 %1769
  %1771 = vrot.lane.b32.xlu0 %v1632, 8
  %v1772 = vpop.permute.xlu0 %1771
  %1773 = vrot.lane.b32.xlu0 %v1633, 8
  %v1774 = vpop.permute.xlu0 %1773
  %1775 = vrot.lane.b32.xlu0 %v1634, 8
  %v1776 = vpop.permute.xlu0 %1775
  %1777 = vrot.lane.b32.xlu0 %v1635, 8
  %v1778 = vpop.permute.xlu0 %1777
  %1779 = vrot.lane.b32.xlu0 %v1636, 8
  %v1780 = vpop.permute.xlu0 %1779
  %1781 = vrot.lane.b32.xlu0 %v1637, 8
  %v1782 = vpop.permute.xlu0 %1781
  %1783 = vrot.lane.b32.xlu0 %v1638, 8
  %v1784 = vpop.permute.xlu0 %1783
  %1785 = vrot.lane.b32.xlu0 %v1639, 8
  %v1786 = vpop.permute.xlu0 %1785
  %1787 = vrot.lane.b32.xlu0 %v1640, 8
  %v1788 = vpop.permute.xlu0 %1787
  %1789 = vrot.lane.b32.xlu0 %v1641, 8
  %v1790 = vpop.permute.xlu0 %1789
  %1791 = vrot.lane.b32.xlu0 %v1642, 8
  %v1792 = vpop.permute.xlu0 %1791
  %1793 = vrot.lane.b32.xlu0 %v1643, 8
  %v1794 = vpop.permute.xlu0 %1793
  %1795 = vrot.lane.b32.xlu0 %v1644, 8
  %v1796 = vpop.permute.xlu0 %1795
  %1797 = vrot.lane.b32.xlu0 %v1645, 8
  %v1798 = vpop.permute.xlu0 %1797
  %1799 = vrot.lane.b32.xlu0 %v1646, 8
  %v1800 = vpop.permute.xlu0 %1799
  %1801 = vrot.lane.b32.xlu0 %v1647, 8
  %v1802 = vpop.permute.xlu0 %1801
  %1803 = vrot.lane.b32.xlu0 %v1648, 8
  %v1804 = vpop.permute.xlu0 %1803
  %1805 = vrot.lane.b32.xlu0 %v1649, 8
  %v1806 = vpop.permute.xlu0 %1805
  %1807 = vrot.lane.b32.xlu0 %v1650, 8
  %v1808 = vpop.permute.xlu0 %1807
  %1809 = vrot.lane.b32.xlu0 %v1651, 8
  %v1810 = vpop.permute.xlu0 %1809
  %1811 = vrot.lane.b32.xlu0 %v1652, 8
  %v1812 = vpop.permute.xlu0 %1811
  %1813 = vrot.lane.b32.xlu0 %v1653, 8
  %v1814 = vpop.permute.xlu0 %1813
  %1815 = vrot.lane.b32.xlu0 %v1654, 8
  %v1816 = vpop.permute.xlu0 %1815
  %1817 = vrot.lane.b32.xlu0 %v1655, 8
  %v1818 = vpop.permute.xlu0 %1817
  %1819 = vrot.lane.b32.xlu0 %v1656, 8
  %v1820 = vpop.permute.xlu0 %1819
  %1821 = vrot.lane.b32.xlu0 %v1657, 8
  %v1822 = vpop.permute.xlu0 %1821
  %1823 = vrot.lane.b32.xlu0 %v1658, 8
  %v1824 = vpop.permute.xlu0 %1823
  %1825 = vrot.lane.b32.xlu0 %v1659, 8
  %v1826 = vpop.permute.xlu0 %1825
  %1827 = vrot.lane.b32.xlu0 %v1660, 8
  %v1828 = vpop.permute.xlu0 %1827
  %1829 = vrot.lane.b32.xlu0 %v1661, 8
  %v1830 = vpop.permute.xlu0 %1829
  %1831 = vrot.lane.b32.xlu0 %v1662, 8
  %v1832 = vpop.permute.xlu0 %1831
  %1833 = vrot.lane.b32.xlu0 %v1663, 8
  %v1834 = vpop.permute.xlu0 %1833
  %1835 = vrot.lane.b32.xlu0 %v1664, 8
  %v1836 = vpop.permute.xlu0 %1835
  %1837 = vrot.lane.b32.xlu0 %v1665, 8
  %v1838 = vpop.permute.xlu0 %1837
  %1839 = vrot.lane.b32.xlu0 %v1666, 8
  %v1840 = vpop.permute.xlu0 %1839
  %1841 = vrot.lane.b32.xlu0 %v1667, 8
  %v1842 = vpop.permute.xlu0 %1841
  %1843 = vrot.lane.b32.xlu0 %v1668, 8
  %v1844 = vpop.permute.xlu0 %1843
  %1845 = vrot.lane.b32.xlu0 %v1669, 8
  %v1846 = vpop.permute.xlu0 %1845
  %1847 = vrot.lane.b32.xlu0 %v1670, 8
  %v1848 = vpop.permute.xlu0 %1847
  %1849 = vrot.lane.b32.xlu0 %v1671, 8
  %v1850 = vpop.permute.xlu0 %1849
  %1851 = vrot.lane.b32.xlu0 %v1672, 8
  %v1852 = vpop.permute.xlu0 %1851
  %1853 = vrot.lane.b32.xlu0 %v1673, 8
  %v1854 = vpop.permute.xlu0 %1853
  %1855 = vrot.lane.b32.xlu0 %v1674, 8
  %v1856 = vpop.permute.xlu0 %1855
  %1857 = vrot.lane.b32.xlu0 %v1675, 8
  %v1858 = vpop.permute.xlu0 %1857
  %1859 = vrot.lane.b32.xlu0 %v1676, 8
  %v1860 = vpop.permute.xlu0 %1859
  %1861 = vrot.lane.b32.xlu0 %v1677, 8
  %v1862 = vpop.permute.xlu0 %1861
  %1863 = vrot.lane.b32.xlu0 %v1678, 8
  %v1864 = vpop.permute.xlu0 %1863
  %1865 = vrot.lane.b32.xlu0 %v1679, 8
  %v1866 = vpop.permute.xlu0 %1865
  %1867 = vrot.lane.b32.xlu0 %v1680, 8
  %v1868 = vpop.permute.xlu0 %1867
  %1869 = vrot.lane.b32.xlu0 %v1681, 8
  %v1870 = vpop.permute.xlu0 %1869
  %1871 = vrot.lane.b32.xlu0 %v1682, 8
  %v1872 = vpop.permute.xlu0 %1871
  %1873 = vrot.lane.b32.xlu0 %v1683, 8
  %v1874 = vpop.permute.xlu0 %1873
  %1875 = vrot.lane.b32.xlu0 %v1684, 8
  %v1876 = vpop.permute.xlu0 %1875
  %vm1941 = vcmask 130112
  %1942 = vst.msk [vmem:[#allocation3] sm:$0xff] %vm1941, %v1750
  %1943 = vst.msk [vmem:[#allocation3 + $0x8] sm:$0xff] %vm1941, %v1752
  %1944 = vst.msk [vmem:[#allocation3 + $0x10] sm:$0xff] %vm1941, %v1754
  %1945 = vst.msk [vmem:[#allocation3 + $0x18] sm:$0xff] %vm1941, %v1756
  %1946 = vst.msk [vmem:[#allocation3 + $0x20] sm:$0xff] %vm1941, %v1758
  %1947 = vst.msk [vmem:[#allocation3 + $0x28] sm:$0xff] %vm1941, %v1760
  %1948 = vst.msk [vmem:[#allocation3 + $0x30] sm:$0xff] %vm1941, %v1762
  %1949 = vst.msk [vmem:[#allocation3 + $0x38] sm:$0xff] %vm1941, %v1764
  %1950 = vst.msk [vmem:[#allocation3 + $0x40] sm:$0xff] %vm1941, %v1766
  %1951 = vst.msk [vmem:[#allocation3 + $0x48] sm:$0xff] %vm1941, %v1768
  %1952 = vst.msk [vmem:[#allocation3 + $0x50] sm:$0xff] %vm1941, %v1770
  %1953 = vst.msk [vmem:[#allocation3 + $0x58] sm:$0xff] %vm1941, %v1772
  %1954 = vst.msk [vmem:[#allocation3 + $0x60] sm:$0xff] %vm1941, %v1774
  %1955 = vst.msk [vmem:[#allocation3 + $0x68] sm:$0xff] %vm1941, %v1776
  %1956 = vst.msk [vmem:[#allocation3 + $0x70] sm:$0xff] %vm1941, %v1778
  %1957 = vst.msk [vmem:[#allocation3 + $0x78] sm:$0xff] %vm1941, %v1780
  %1958 = vst.msk [vmem:[#allocation3 + $0x80] sm:$0xff] %vm1941, %v1782
  %1959 = vst.msk [vmem:[#allocation3 + $0x88] sm:$0xff] %vm1941, %v1784
  %1960 = vst.msk [vmem:[#allocation3 + $0x90] sm:$0xff] %vm1941, %v1786
  %1961 = vst.msk [vmem:[#allocation3 + $0x98] sm:$0xff] %vm1941, %v1788
  %1962 = vst.msk [vmem:[#allocation3 + $0xa0] sm:$0xff] %vm1941, %v1790
  %1963 = vst.msk [vmem:[#allocation3 + $0xa8] sm:$0xff] %vm1941, %v1792
  %1964 = vst.msk [vmem:[#allocation3 + $0xb0] sm:$0xff] %vm1941, %v1794
  %1965 = vst.msk [vmem:[#allocation3 + $0xb8] sm:$0xff] %vm1941, %v1796
  %1966 = vst.msk [vmem:[#allocation3 + $0xc0] sm:$0xff] %vm1941, %v1798
  %1967 = vst.msk [vmem:[#allocation3 + $0xc8] sm:$0xff] %vm1941, %v1800
  %1968 = vst.msk [vmem:[#allocation3 + $0xd0] sm:$0xff] %vm1941, %v1802
  %1969 = vst.msk [vmem:[#allocation3 + $0xd8] sm:$0xff] %vm1941, %v1804
  %1970 = vst.msk [vmem:[#allocation3 + $0xe0] sm:$0xff] %vm1941, %v1806
  %1971 = vst.msk [vmem:[#allocation3 + $0xe8] sm:$0xff] %vm1941, %v1808
  %1972 = vst.msk [vmem:[#allocation3 + $0xf0] sm:$0xff] %vm1941, %v1810
  %1973 = vst.msk [vmem:[#allocation3 + $0xf8] sm:$0xff] %vm1941, %v1812
  %1974 = vst.msk [vmem:[#allocation3 + $0x100] sm:$0xff] %vm1941, %v1814
  %1975 = vst.msk [vmem:[#allocation3 + $0x108] sm:$0xff] %vm1941, %v1816
  %1976 = vst.msk [vmem:[#allocation3 + $0x110] sm:$0xff] %vm1941, %v1818
  %1977 = vst.msk [vmem:[#allocation3 + $0x118] sm:$0xff] %vm1941, %v1820
  %1978 = vst.msk [vmem:[#allocation3 + $0x120] sm:$0xff] %vm1941, %v1822
  %1979 = vst.msk [vmem:[#allocation3 + $0x128] sm:$0xff] %vm1941, %v1824
  %1980 = vst.msk [vmem:[#allocation3 + $0x130] sm:$0xff] %vm1941, %v1826
  %1981 = vst.msk [vmem:[#allocation3 + $0x138] sm:$0xff] %vm1941, %v1828
  %1982 = vst.msk [vmem:[#allocation3 + $0x140] sm:$0xff] %vm1941, %v1830
  %1983 = vst.msk [vmem:[#allocation3 + $0x148] sm:$0xff] %vm1941, %v1832
  %1984 = vst.msk [vmem:[#allocation3 + $0x150] sm:$0xff] %vm1941, %v1834
  %1985 = vst.msk [vmem:[#allocation3 + $0x158] sm:$0xff] %vm1941, %v1836
  %1986 = vst.msk [vmem:[#allocation3 + $0x160] sm:$0xff] %vm1941, %v1838
  %1987 = vst.msk [vmem:[#allocation3 + $0x168] sm:$0xff] %vm1941, %v1840
  %1988 = vst.msk [vmem:[#allocation3 + $0x170] sm:$0xff] %vm1941, %v1842
  %1989 = vst.msk [vmem:[#allocation3 + $0x178] sm:$0xff] %vm1941, %v1844
  %1990 = vst.msk [vmem:[#allocation3 + $0x180] sm:$0xff] %vm1941, %v1846
  %1991 = vst.msk [vmem:[#allocation3 + $0x188] sm:$0xff] %vm1941, %v1848
  %1992 = vst.msk [vmem:[#allocation3 + $0x190] sm:$0xff] %vm1941, %v1850
  %1993 = vst.msk [vmem:[#allocation3 + $0x198] sm:$0xff] %vm1941, %v1852
  %1994 = vst.msk [vmem:[#allocation3 + $0x1a0] sm:$0xff] %vm1941, %v1854
  %1995 = vst.msk [vmem:[#allocation3 + $0x1a8] sm:$0xff] %vm1941, %v1856
  %1996 = vst.msk [vmem:[#allocation3 + $0x1b0] sm:$0xff] %vm1941, %v1858
  %1997 = vst.msk [vmem:[#allocation3 + $0x1b8] sm:$0xff] %vm1941, %v1860
  %1998 = vst.msk [vmem:[#allocation3 + $0x1c0] sm:$0xff] %vm1941, %v1862
  %1999 = vst.msk [vmem:[#allocation3 + $0x1c8] sm:$0xff] %vm1941, %v1864
  %2000 = vst.msk [vmem:[#allocation3 + $0x1d0] sm:$0xff] %vm1941, %v1866
  %2001 = vst.msk [vmem:[#allocation3 + $0x1d8] sm:$0xff] %vm1941, %v1868
  %2002 = vst.msk [vmem:[#allocation3 + $0x1e0] sm:$0xff] %vm1941, %v1870
  %2003 = vst.msk [vmem:[#allocation3 + $0x1e8] sm:$0xff] %vm1941, %v1872
  %2004 = vst.msk [vmem:[#allocation3 + $0x1f0] sm:$0xff] %vm1941, %v1874
  %2005 = vst.msk [vmem:[#allocation3 + $0x1f8] sm:$0xff] %vm1941, %v1876
  %v2006 = vld [vmem:[#allocation2 + $0x2] sm:$0xff]
  %v2007 = vld [vmem:[#allocation2 + $0xa] sm:$0xff]
  %v2008 = vld [vmem:[#allocation2 + $0x1a] sm:$0xff]
  %v2009 = vld [vmem:[#allocation2 + $0x22] sm:$0xff]
  %v2010 = vld [vmem:[#allocation2 + $0x32] sm:$0xff]
  %v2011 = vld [vmem:[#allocation2 + $0x3a] sm:$0xff]
  %v2012 = vld [vmem:[#allocation2 + $0x4a] sm:$0xff]
  %v2013 = vld [vmem:[#allocation2 + $0x52] sm:$0xff]
  %v2014 = vld [vmem:[#allocation2 + $0x62] sm:$0xff]
  %v2015 = vld [vmem:[#allocation2 + $0x6a] sm:$0xff]
  %v2016 = vld [vmem:[#allocation2 + $0x7a] sm:$0xff]
  %v2017 = vld [vmem:[#allocation2 + $0x82] sm:$0xff]
  %v2018 = vld [vmem:[#allocation2 + $0x92] sm:$0xff]
  %v2019 = vld [vmem:[#allocation2 + $0x9a] sm:$0xff]
  %v2020 = vld [vmem:[#allocation2 + $0xaa] sm:$0xff]
  %v2021 = vld [vmem:[#allocation2 + $0xb2] sm:$0xff]
  %v2022 = vld [vmem:[#allocation2 + $0xc2] sm:$0xff]
  %v2023 = vld [vmem:[#allocation2 + $0xca] sm:$0xff]
  %v2024 = vld [vmem:[#allocation2 + $0xda] sm:$0xff]
  %v2025 = vld [vmem:[#allocation2 + $0xe2] sm:$0xff]
  %v2026 = vld [vmem:[#allocation2 + $0xf2] sm:$0xff]
  %v2027 = vld [vmem:[#allocation2 + $0xfa] sm:$0xff]
  %v2028 = vld [vmem:[#allocation2 + $0x10a] sm:$0xff]
  %v2029 = vld [vmem:[#allocation2 + $0x112] sm:$0xff]
  %v2030 = vld [vmem:[#allocation2 + $0x122] sm:$0xff]
  %v2031 = vld [vmem:[#allocation2 + $0x12a] sm:$0xff]
  %v2032 = vld [vmem:[#allocation2 + $0x13a] sm:$0xff]
  %v2033 = vld [vmem:[#allocation2 + $0x142] sm:$0xff]
  %v2034 = vld [vmem:[#allocation2 + $0x152] sm:$0xff]
  %v2035 = vld [vmem:[#allocation2 + $0x15a] sm:$0xff]
  %v2036 = vld [vmem:[#allocation2 + $0x16a] sm:$0xff]
  %v2037 = vld [vmem:[#allocation2 + $0x172] sm:$0xff]
  %v2038 = vld [vmem:[#allocation2 + $0x1b2] sm:$0xff]
  %v2039 = vld [vmem:[#allocation2 + $0x1ba] sm:$0xff]
  %v2040 = vld [vmem:[#allocation2 + $0x1ca] sm:$0xff]
  %v2041 = vld [vmem:[#allocation2 + $0x1d2] sm:$0xff]
  %v2042 = vld [vmem:[#allocation2 + $0x1e2] sm:$0xff]
  %v2043 = vld [vmem:[#allocation2 + $0x1ea] sm:$0xff]
  %v2044 = vld [vmem:[#allocation2 + $0x1fa] sm:$0xff]
  %v2045 = vld [vmem:[#allocation2 + $0x202] sm:$0xff]
  %v2046 = vld [vmem:[#allocation2 + $0x212] sm:$0xff]
  %v2047 = vld [vmem:[#allocation2 + $0x21a] sm:$0xff]
  %v2048 = vld [vmem:[#allocation2 + $0x22a] sm:$0xff]
  %v2049 = vld [vmem:[#allocation2 + $0x232] sm:$0xff]
  %v2050 = vld [vmem:[#allocation2 + $0x242] sm:$0xff]
  %v2051 = vld [vmem:[#allocation2 + $0x24a] sm:$0xff]
  %v2052 = vld [vmem:[#allocation2 + $0x25a] sm:$0xff]
  %v2053 = vld [vmem:[#allocation2 + $0x262] sm:$0xff]
  %v2054 = vld [vmem:[#allocation2 + $0x272] sm:$0xff]
  %v2055 = vld [vmem:[#allocation2 + $0x27a] sm:$0xff]
  %v2056 = vld [vmem:[#allocation2 + $0x28a] sm:$0xff]
  %v2057 = vld [vmem:[#allocation2 + $0x292] sm:$0xff]
  %v2058 = vld [vmem:[#allocation2 + $0x2a2] sm:$0xff]
  %v2059 = vld [vmem:[#allocation2 + $0x2aa] sm:$0xff]
  %v2060 = vld [vmem:[#allocation2 + $0x2ba] sm:$0xff]
  %v2061 = vld [vmem:[#allocation2 + $0x2c2] sm:$0xff]
  %v2062 = vld [vmem:[#allocation2 + $0x2d2] sm:$0xff]
  %v2063 = vld [vmem:[#allocation2 + $0x2da] sm:$0xff]
  %v2064 = vld [vmem:[#allocation2 + $0x2ea] sm:$0xff]
  %v2065 = vld [vmem:[#allocation2 + $0x2f2] sm:$0xff]
  %v2066 = vld [vmem:[#allocation2 + $0x302] sm:$0xff]
  %v2067 = vld [vmem:[#allocation2 + $0x30a] sm:$0xff]
  %v2068 = vld [vmem:[#allocation2 + $0x31a] sm:$0xff]
  %v2069 = vld [vmem:[#allocation2 + $0x322] sm:$0xff]
  %2134 = vrot.lane.b32.xlu0 %v2006, 16
  %v2135 = vpop.permute.xlu0 %2134
  %2136 = vrot.lane.b32.xlu0 %v2007, 16
  %v2137 = vpop.permute.xlu0 %2136
  %2138 = vrot.lane.b32.xlu0 %v2008, 16
  %v2139 = vpop.permute.xlu0 %2138
  %2140 = vrot.lane.b32.xlu0 %v2009, 16
  %v2141 = vpop.permute.xlu0 %2140
  %2142 = vrot.lane.b32.xlu0 %v2010, 16
  %v2143 = vpop.permute.xlu0 %2142
  %2144 = vrot.lane.b32.xlu0 %v2011, 16
  %v2145 = vpop.permute.xlu0 %2144
  %2146 = vrot.lane.b32.xlu0 %v2012, 16
  %v2147 = vpop.permute.xlu0 %2146
  %2148 = vrot.lane.b32.xlu0 %v2013, 16
  %v2149 = vpop.permute.xlu0 %2148
  %2150 = vrot.lane.b32.xlu0 %v2014, 16
  %v2151 = vpop.permute.xlu0 %2150
  %2152 = vrot.lane.b32.xlu0 %v2015, 16
  %v2153 = vpop.permute.xlu0 %2152
  %2154 = vrot.lane.b32.xlu0 %v2016, 16
  %v2155 = vpop.permute.xlu0 %2154
  %2156 = vrot.lane.b32.xlu0 %v2017, 16
  %v2157 = vpop.permute.xlu0 %2156
  %2158 = vrot.lane.b32.xlu0 %v2018, 16
  %v2159 = vpop.permute.xlu0 %2158
  %2160 = vrot.lane.b32.xlu0 %v2019, 16
  %v2161 = vpop.permute.xlu0 %2160
  %2162 = vrot.lane.b32.xlu0 %v2020, 16
  %v2163 = vpop.permute.xlu0 %2162
  %2164 = vrot.lane.b32.xlu0 %v2021, 16
  %v2165 = vpop.permute.xlu0 %2164
  %2166 = vrot.lane.b32.xlu0 %v2022, 16
  %v2167 = vpop.permute.xlu0 %2166
  %2168 = vrot.lane.b32.xlu0 %v2023, 16
  %v2169 = vpop.permute.xlu0 %2168
  %2170 = vrot.lane.b32.xlu0 %v2024, 16
  %v2171 = vpop.permute.xlu0 %2170
  %2172 = vrot.lane.b32.xlu0 %v2025, 16
  %v2173 = vpop.permute.xlu0 %2172
  %2174 = vrot.lane.b32.xlu0 %v2026, 16
  %v2175 = vpop.permute.xlu0 %2174
  %2176 = vrot.lane.b32.xlu0 %v2027, 16
  %v2177 = vpop.permute.xlu0 %2176
  %2178 = vrot.lane.b32.xlu0 %v2028, 16
  %v2179 = vpop.permute.xlu0 %2178
  %2180 = vrot.lane.b32.xlu0 %v2029, 16
  %v2181 = vpop.permute.xlu0 %2180
  %2182 = vrot.lane.b32.xlu0 %v2030, 16
  %v2183 = vpop.permute.xlu0 %2182
  %2184 = vrot.lane.b32.xlu0 %v2031, 16
  %v2185 = vpop.permute.xlu0 %2184
  %2186 = vrot.lane.b32.xlu0 %v2032, 16
  %v2187 = vpop.permute.xlu0 %2186
  %2188 = vrot.lane.b32.xlu0 %v2033, 16
  %v2189 = vpop.permute.xlu0 %2188
  %2190 = vrot.lane.b32.xlu0 %v2034, 16
  %v2191 = vpop.permute.xlu0 %2190
  %2192 = vrot.lane.b32.xlu0 %v2035, 16
  %v2193 = vpop.permute.xlu0 %2192
  %2194 = vrot.lane.b32.xlu0 %v2036, 16
  %v2195 = vpop.permute.xlu0 %2194
  %2196 = vrot.lane.b32.xlu0 %v2037, 16
  %v2197 = vpop.permute.xlu0 %2196
  %2198 = vrot.lane.b32.xlu0 %v2038, 16
  %v2199 = vpop.permute.xlu0 %2198
  %2200 = vrot.lane.b32.xlu0 %v2039, 16
  %v2201 = vpop.permute.xlu0 %2200
  %2202 = vrot.lane.b32.xlu0 %v2040, 16
  %v2203 = vpop.permute.xlu0 %2202
  %2204 = vrot.lane.b32.xlu0 %v2041, 16
  %v2205 = vpop.permute.xlu0 %2204
  %2206 = vrot.lane.b32.xlu0 %v2042, 16
  %v2207 = vpop.permute.xlu0 %2206
  %2208 = vrot.lane.b32.xlu0 %v2043, 16
  %v2209 = vpop.permute.xlu0 %2208
  %2210 = vrot.lane.b32.xlu0 %v2044, 16
  %v2211 = vpop.permute.xlu0 %2210
  %2212 = vrot.lane.b32.xlu0 %v2045, 16
  %v2213 = vpop.permute.xlu0 %2212
  %2214 = vrot.lane.b32.xlu0 %v2046, 16
  %v2215 = vpop.permute.xlu0 %2214
  %2216 = vrot.lane.b32.xlu0 %v2047, 16
  %v2217 = vpop.permute.xlu0 %2216
  %2218 = vrot.lane.b32.xlu0 %v2048, 16
  %v2219 = vpop.permute.xlu0 %2218
  %2220 = vrot.lane.b32.xlu0 %v2049, 16
  %v2221 = vpop.permute.xlu0 %2220
  %2222 = vrot.lane.b32.xlu0 %v2050, 16
  %v2223 = vpop.permute.xlu0 %2222
  %2224 = vrot.lane.b32.xlu0 %v2051, 16
  %v2225 = vpop.permute.xlu0 %2224
  %2226 = vrot.lane.b32.xlu0 %v2052, 16
  %v2227 = vpop.permute.xlu0 %2226
  %2228 = vrot.lane.b32.xlu0 %v2053, 16
  %v2229 = vpop.permute.xlu0 %2228
  %2230 = vrot.lane.b32.xlu0 %v2054, 16
  %v2231 = vpop.permute.xlu0 %2230
  %2232 = vrot.lane.b32.xlu0 %v2055, 16
  %v2233 = vpop.permute.xlu0 %2232
  %2234 = vrot.lane.b32.xlu0 %v2056, 16
  %v2235 = vpop.permute.xlu0 %2234
  %2236 = vrot.lane.b32.xlu0 %v2057, 16
  %v2237 = vpop.permute.xlu0 %2236
  %2238 = vrot.lane.b32.xlu0 %v2058, 16
  %v2239 = vpop.permute.xlu0 %2238
  %2240 = vrot.lane.b32.xlu0 %v2059, 16
  %v2241 = vpop.permute.xlu0 %2240
  %2242 = vrot.lane.b32.xlu0 %v2060, 16
  %v2243 = vpop.permute.xlu0 %2242
  %2244 = vrot.lane.b32.xlu0 %v2061, 16
  %v2245 = vpop.permute.xlu0 %2244
  %2246 = vrot.lane.b32.xlu0 %v2062, 16
  %v2247 = vpop.permute.xlu0 %2246
  %2248 = vrot.lane.b32.xlu0 %v2063, 16
  %v2249 = vpop.permute.xlu0 %2248
  %2250 = vrot.lane.b32.xlu0 %v2064, 16
  %v2251 = vpop.permute.xlu0 %2250
  %2252 = vrot.lane.b32.xlu0 %v2065, 16
  %v2253 = vpop.permute.xlu0 %2252
  %2254 = vrot.lane.b32.xlu0 %v2066, 16
  %v2255 = vpop.permute.xlu0 %2254
  %2256 = vrot.lane.b32.xlu0 %v2067, 16
  %v2257 = vpop.permute.xlu0 %2256
  %2258 = vrot.lane.b32.xlu0 %v2068, 16
  %v2259 = vpop.permute.xlu0 %2258
  %2260 = vrot.lane.b32.xlu0 %v2069, 16
  %v2261 = vpop.permute.xlu0 %2260
  %vm2326 = vcmask 195712
  %2327 = vst.msk [vmem:[#allocation3] sm:$0xff] %vm2326, %v2135
  %2328 = vst.msk [vmem:[#allocation3 + $0x8] sm:$0xff] %vm2326, %v2137
  %2329 = vst.msk [vmem:[#allocation3 + $0x10] sm:$0xff] %vm2326, %v2139
  %2330 = vst.msk [vmem:[#allocation3 + $0x18] sm:$0xff] %vm2326, %v2141
  %2331 = vst.msk [vmem:[#allocation3 + $0x20] sm:$0xff] %vm2326, %v2143
  %2332 = vst.msk [vmem:[#allocation3 + $0x28] sm:$0xff] %vm2326, %v2145
  %2333 = vst.msk [vmem:[#allocation3 + $0x30] sm:$0xff] %vm2326, %v2147
  %2334 = vst.msk [vmem:[#allocation3 + $0x38] sm:$0xff] %vm2326, %v2149
  %2335 = vst.msk [vmem:[#allocation3 + $0x40] sm:$0xff] %vm2326, %v2151
  %2336 = vst.msk [vmem:[#allocation3 + $0x48] sm:$0xff] %vm2326, %v2153
  %2337 = vst.msk [vmem:[#allocation3 + $0x50] sm:$0xff] %vm2326, %v2155
  %2338 = vst.msk [vmem:[#allocation3 + $0x58] sm:$0xff] %vm2326, %v2157
  %2339 = vst.msk [vmem:[#allocation3 + $0x60] sm:$0xff] %vm2326, %v2159
  %2340 = vst.msk [vmem:[#allocation3 + $0x68] sm:$0xff] %vm2326, %v2161
  %2341 = vst.msk [vmem:[#allocation3 + $0x70] sm:$0xff] %vm2326, %v2163
  %2342 = vst.msk [vmem:[#allocation3 + $0x78] sm:$0xff] %vm2326, %v2165
  %2343 = vst.msk [vmem:[#allocation3 + $0x80] sm:$0xff] %vm2326, %v2167
  %2344 = vst.msk [vmem:[#allocation3 + $0x88] sm:$0xff] %vm2326, %v2169
  %2345 = vst.msk [vmem:[#allocation3 + $0x90] sm:$0xff] %vm2326, %v2171
  %2346 = vst.msk [vmem:[#allocation3 + $0x98] sm:$0xff] %vm2326, %v2173
  %2347 = vst.msk [vmem:[#allocation3 + $0xa0] sm:$0xff] %vm2326, %v2175
  %2348 = vst.msk [vmem:[#allocation3 + $0xa8] sm:$0xff] %vm2326, %v2177
  %2349 = vst.msk [vmem:[#allocation3 + $0xb0] sm:$0xff] %vm2326, %v2179
  %2350 = vst.msk [vmem:[#allocation3 + $0xb8] sm:$0xff] %vm2326, %v2181
  %2351 = vst.msk [vmem:[#allocation3 + $0xc0] sm:$0xff] %vm2326, %v2183
  %2352 = vst.msk [vmem:[#allocation3 + $0xc8] sm:$0xff] %vm2326, %v2185
  %2353 = vst.msk [vmem:[#allocation3 + $0xd0] sm:$0xff] %vm2326, %v2187
  %2354 = vst.msk [vmem:[#allocation3 + $0xd8] sm:$0xff] %vm2326, %v2189
  %2355 = vst.msk [vmem:[#allocation3 + $0xe0] sm:$0xff] %vm2326, %v2191
  %2356 = vst.msk [vmem:[#allocation3 + $0xe8] sm:$0xff] %vm2326, %v2193
  %2357 = vst.msk [vmem:[#allocation3 + $0xf0] sm:$0xff] %vm2326, %v2195
  %2358 = vst.msk [vmem:[#allocation3 + $0xf8] sm:$0xff] %vm2326, %v2197
  %2359 = vst.msk [vmem:[#allocation3 + $0x100] sm:$0xff] %vm2326, %v2199
  %2360 = vst.msk [vmem:[#allocation3 + $0x108] sm:$0xff] %vm2326, %v2201
  %2361 = vst.msk [vmem:[#allocation3 + $0x110] sm:$0xff] %vm2326, %v2203
  %2362 = vst.msk [vmem:[#allocation3 + $0x118] sm:$0xff] %vm2326, %v2205
  %2363 = vst.msk [vmem:[#allocation3 + $0x120] sm:$0xff] %vm2326, %v2207
  %2364 = vst.msk [vmem:[#allocation3 + $0x128] sm:$0xff] %vm2326, %v2209
  %2365 = vst.msk [vmem:[#allocation3 + $0x130] sm:$0xff] %vm2326, %v2211
  %2366 = vst.msk [vmem:[#allocation3 + $0x138] sm:$0xff] %vm2326, %v2213
  %2367 = vst.msk [vmem:[#allocation3 + $0x140] sm:$0xff] %vm2326, %v2215
  %2368 = vst.msk [vmem:[#allocation3 + $0x148] sm:$0xff] %vm2326, %v2217
  %2369 = vst.msk [vmem:[#allocation3 + $0x150] sm:$0xff] %vm2326, %v2219
  %2370 = vst.msk [vmem:[#allocation3 + $0x158] sm:$0xff] %vm2326, %v2221
  %2371 = vst.msk [vmem:[#allocation3 + $0x160] sm:$0xff] %vm2326, %v2223
  %2372 = vst.msk [vmem:[#allocation3 + $0x168] sm:$0xff] %vm2326, %v2225
  %2373 = vst.msk [vmem:[#allocation3 + $0x170] sm:$0xff] %vm2326, %v2227
  %2374 = vst.msk [vmem:[#allocation3 + $0x178] sm:$0xff] %vm2326, %v2229
  %2375 = vst.msk [vmem:[#allocation3 + $0x180] sm:$0xff] %vm2326, %v2231
  %2376 = vst.msk [vmem:[#allocation3 + $0x188] sm:$0xff] %vm2326, %v2233
  %2377 = vst.msk [vmem:[#allocation3 + $0x190] sm:$0xff] %vm2326, %v2235
  %2378 = vst.msk [vmem:[#allocation3 + $0x198] sm:$0xff] %vm2326, %v2237
  %2379 = vst.msk [vmem:[#allocation3 + $0x1a0] sm:$0xff] %vm2326, %v2239
  %2380 = vst.msk [vmem:[#allocation3 + $0x1a8] sm:$0xff] %vm2326, %v2241
  %2381 = vst.msk [vmem:[#allocation3 + $0x1b0] sm:$0xff] %vm2326, %v2243
  %2382 = vst.msk [vmem:[#allocation3 + $0x1b8] sm:$0xff] %vm2326, %v2245
  %2383 = vst.msk [vmem:[#allocation3 + $0x1c0] sm:$0xff] %vm2326, %v2247
  %2384 = vst.msk [vmem:[#allocation3 + $0x1c8] sm:$0xff] %vm2326, %v2249
  %2385 = vst.msk [vmem:[#allocation3 + $0x1d0] sm:$0xff] %vm2326, %v2251
  %2386 = vst.msk [vmem:[#allocation3 + $0x1d8] sm:$0xff] %vm2326, %v2253
  %2387 = vst.msk [vmem:[#allocation3 + $0x1e0] sm:$0xff] %vm2326, %v2255
  %2388 = vst.msk [vmem:[#allocation3 + $0x1e8] sm:$0xff] %vm2326, %v2257
  %2389 = vst.msk [vmem:[#allocation3 + $0x1f0] sm:$0xff] %vm2326, %v2259
  %2390 = vst.msk [vmem:[#allocation3 + $0x1f8] sm:$0xff] %vm2326, %v2261
  %v2391 = vld [vmem:[%s1266] sm:$0xff]
  %v2392 = vld [vmem:[%s1266 + $0x8] sm:$0xff]
  %v2393 = vld [vmem:[%s1266 + $0x18] sm:$0xff]
  %v2394 = vld [vmem:[%s1266 + $0x20] sm:$0xff]
  %v2395 = vld [vmem:[%s1266 + $0x30] sm:$0xff]
  %v2396 = vld [vmem:[%s1266 + $0x38] sm:$0xff]
  %v2397 = vld [vmem:[%s1266 + $0x48] sm:$0xff]
  %v2398 = vld [vmem:[%s1266 + $0x50] sm:$0xff]
  %v2399 = vld [vmem:[%s1266 + $0x60] sm:$0xff]
  %v2400 = vld [vmem:[%s1266 + $0x68] sm:$0xff]
  %v2401 = vld [vmem:[%s1266 + $0x78] sm:$0xff]
  %v2402 = vld [vmem:[%s1266 + $0x80] sm:$0xff]
  %v2403 = vld [vmem:[%s1266 + $0x90] sm:$0xff]
  %v2404 = vld [vmem:[%s1266 + $0x98] sm:$0xff]
  %v2405 = vld [vmem:[%s1266 + $0xa8] sm:$0xff]
  %v2406 = vld [vmem:[%s1266 + $0xb0] sm:$0xff]
  %v2407 = vld [vmem:[%s1266 + $0xc0] sm:$0xff]
  %v2408 = vld [vmem:[%s1266 + $0xc8] sm:$0xff]
  %v2409 = vld [vmem:[%s1266 + $0xd8] sm:$0xff]
  %v2410 = vld [vmem:[%s1266 + $0xe0] sm:$0xff]
  %v2411 = vld [vmem:[%s1266 + $0xf0] sm:$0xff]
  %v2412 = vld [vmem:[%s1266 + $0xf8] sm:$0xff]
  %v2413 = vld [vmem:[%s1266 + $0x108] sm:$0xff]
  %v2414 = vld [vmem:[%s1266 + $0x110] sm:$0xff]
  %v2415 = vld [vmem:[%s1266 + $0x120] sm:$0xff]
  %v2416 = vld [vmem:[%s1266 + $0x128] sm:$0xff]
  %v2417 = vld [vmem:[%s1266 + $0x138] sm:$0xff]
  %v2418 = vld [vmem:[%s1266 + $0x140] sm:$0xff]
  %v2419 = vld [vmem:[%s1266 + $0x150] sm:$0xff]
  %v2420 = vld [vmem:[%s1266 + $0x158] sm:$0xff]
  %v2421 = vld [vmem:[%s1266 + $0x168] sm:$0xff]
  %v2422 = vld [vmem:[%s1266 + $0x170] sm:$0xff]
  %v2423 = vld [vmem:[%s1266 + $0x1b0] sm:$0xff]
  %v2424 = vld [vmem:[%s1266 + $0x1b8] sm:$0xff]
  %v2425 = vld [vmem:[%s1266 + $0x1c8] sm:$0xff]
  %v2426 = vld [vmem:[%s1266 + $0x1d0] sm:$0xff]
  %v2427 = vld [vmem:[%s1266 + $0x1e0] sm:$0xff]
  %v2428 = vld [vmem:[%s1266 + $0x1e8] sm:$0xff]
  %v2429 = vld [vmem:[%s1266 + $0x1f8] sm:$0xff]
  %v2430 = vld [vmem:[%s1266 + $0x200] sm:$0xff]
  %v2431 = vld [vmem:[%s1266 + $0x210] sm:$0xff]
  %v2432 = vld [vmem:[%s1266 + $0x218] sm:$0xff]
  %v2433 = vld [vmem:[%s1266 + $0x228] sm:$0xff]
  %v2434 = vld [vmem:[%s1266 + $0x230] sm:$0xff]
  %v2435 = vld [vmem:[%s1266 + $0x240] sm:$0xff]
  %v2436 = vld [vmem:[%s1266 + $0x248] sm:$0xff]
  %v2437 = vld [vmem:[%s1266 + $0x258] sm:$0xff]
  %v2438 = vld [vmem:[%s1266 + $0x260] sm:$0xff]
  %v2439 = vld [vmem:[%s1266 + $0x270] sm:$0xff]
  %v2440 = vld [vmem:[%s1266 + $0x278] sm:$0xff]
  %v2441 = vld [vmem:[%s1266 + $0x288] sm:$0xff]
  %v2442 = vld [vmem:[%s1266 + $0x290] sm:$0xff]
  %v2443 = vld [vmem:[%s1266 + $0x2a0] sm:$0xff]
  %v2444 = vld [vmem:[%s1266 + $0x2a8] sm:$0xff]
  %v2445 = vld [vmem:[%s1266 + $0x2b8] sm:$0xff]
  %v2446 = vld [vmem:[%s1266 + $0x2c0] sm:$0xff]
  %v2447 = vld [vmem:[%s1266 + $0x2d0] sm:$0xff]
  %v2448 = vld [vmem:[%s1266 + $0x2d8] sm:$0xff]
  %v2449 = vld [vmem:[%s1266 + $0x2e8] sm:$0xff]
  %v2450 = vld [vmem:[%s1266 + $0x2f0] sm:$0xff]
  %v2451 = vld [vmem:[%s1266 + $0x300] sm:$0xff]
  %v2452 = vld [vmem:[%s1266 + $0x308] sm:$0xff]
  %v2453 = vld [vmem:[%s1266 + $0x318] sm:$0xff]
  %v2454 = vld [vmem:[%s1266 + $0x320] sm:$0xff]
  %2519 = vrot.lane.b32.xlu0 %v2391, 24
  %v2520 = vpop.permute.xlu0 %2519
  %2521 = vrot.lane.b32.xlu0 %v2392, 24
  %v2522 = vpop.permute.xlu0 %2521
  %2523 = vrot.lane.b32.xlu0 %v2393, 24
  %v2524 = vpop.permute.xlu0 %2523
  %2525 = vrot.lane.b32.xlu0 %v2394, 24
  %v2526 = vpop.permute.xlu0 %2525
  %2527 = vrot.lane.b32.xlu0 %v2395, 24
  %v2528 = vpop.permute.xlu0 %2527
  %2529 = vrot.lane.b32.xlu0 %v2396, 24
  %v2530 = vpop.permute.xlu0 %2529
  %2531 = vrot.lane.b32.xlu0 %v2397, 24
  %v2532 = vpop.permute.xlu0 %2531
  %2533 = vrot.lane.b32.xlu0 %v2398, 24
  %v2534 = vpop.permute.xlu0 %2533
  %2535 = vrot.lane.b32.xlu0 %v2399, 24
  %v2536 = vpop.permute.xlu0 %2535
  %2537 = vrot.lane.b32.xlu0 %v2400, 24
  %v2538 = vpop.permute.xlu0 %2537
  %2539 = vrot.lane.b32.xlu0 %v2401, 24
  %v2540 = vpop.permute.xlu0 %2539
  %2541 = vrot.lane.b32.xlu0 %v2402, 24
  %v2542 = vpop.permute.xlu0 %2541
  %2543 = vrot.lane.b32.xlu0 %v2403, 24
  %v2544 = vpop.permute.xlu0 %2543
  %2545 = vrot.lane.b32.xlu0 %v2404, 24
  %v2546 = vpop.permute.xlu0 %2545
  %2547 = vrot.lane.b32.xlu0 %v2405, 24
  %v2548 = vpop.permute.xlu0 %2547
  %2549 = vrot.lane.b32.xlu0 %v2406, 24
  %v2550 = vpop.permute.xlu0 %2549
  %2551 = vrot.lane.b32.xlu0 %v2407, 24
  %v2552 = vpop.permute.xlu0 %2551
  %2553 = vrot.lane.b32.xlu0 %v2408, 24
  %v2554 = vpop.permute.xlu0 %2553
  %2555 = vrot.lane.b32.xlu0 %v2409, 24
  %v2556 = vpop.permute.xlu0 %2555
  %2557 = vrot.lane.b32.xlu0 %v2410, 24
  %v2558 = vpop.permute.xlu0 %2557
  %2559 = vrot.lane.b32.xlu0 %v2411, 24
  %v2560 = vpop.permute.xlu0 %2559
  %2561 = vrot.lane.b32.xlu0 %v2412, 24
  %v2562 = vpop.permute.xlu0 %2561
  %2563 = vrot.lane.b32.xlu0 %v2413, 24
  %v2564 = vpop.permute.xlu0 %2563
  %2565 = vrot.lane.b32.xlu0 %v2414, 24
  %v2566 = vpop.permute.xlu0 %2565
  %2567 = vrot.lane.b32.xlu0 %v2415, 24
  %v2568 = vpop.permute.xlu0 %2567
  %2569 = vrot.lane.b32.xlu0 %v2416, 24
  %v2570 = vpop.permute.xlu0 %2569
  %2571 = vrot.lane.b32.xlu0 %v2417, 24
  %v2572 = vpop.permute.xlu0 %2571
  %2573 = vrot.lane.b32.xlu0 %v2418, 24
  %v2574 = vpop.permute.xlu0 %2573
  %2575 = vrot.lane.b32.xlu0 %v2419, 24
  %v2576 = vpop.permute.xlu0 %2575
  %2577 = vrot.lane.b32.xlu0 %v2420, 24
  %v2578 = vpop.permute.xlu0 %2577
  %2579 = vrot.lane.b32.xlu0 %v2421, 24
  %v2580 = vpop.permute.xlu0 %2579
  %2581 = vrot.lane.b32.xlu0 %v2422, 24
  %v2582 = vpop.permute.xlu0 %2581
  %2583 = vrot.lane.b32.xlu0 %v2423, 24
  %v2584 = vpop.permute.xlu0 %2583
  %2585 = vrot.lane.b32.xlu0 %v2424, 24
  %v2586 = vpop.permute.xlu0 %2585
  %2587 = vrot.lane.b32.xlu0 %v2425, 24
  %v2588 = vpop.permute.xlu0 %2587
  %2589 = vrot.lane.b32.xlu0 %v2426, 24
  %v2590 = vpop.permute.xlu0 %2589
  %2591 = vrot.lane.b32.xlu0 %v2427, 24
  %v2592 = vpop.permute.xlu0 %2591
  %2593 = vrot.lane.b32.xlu0 %v2428, 24
  %v2594 = vpop.permute.xlu0 %2593
  %2595 = vrot.lane.b32.xlu0 %v2429, 24
  %v2596 = vpop.permute.xlu0 %2595
  %2597 = vrot.lane.b32.xlu0 %v2430, 24
  %v2598 = vpop.permute.xlu0 %2597
  %2599 = vrot.lane.b32.xlu0 %v2431, 24
  %v2600 = vpop.permute.xlu0 %2599
  %2601 = vrot.lane.b32.xlu0 %v2432, 24
  %v2602 = vpop.permute.xlu0 %2601
  %2603 = vrot.lane.b32.xlu0 %v2433, 24
  %v2604 = vpop.permute.xlu0 %2603
  %2605 = vrot.lane.b32.xlu0 %v2434, 24
  %v2606 = vpop.permute.xlu0 %2605
  %2607 = vrot.lane.b32.xlu0 %v2435, 24
  %v2608 = vpop.permute.xlu0 %2607
  %2609 = vrot.lane.b32.xlu0 %v2436, 24
  %v2610 = vpop.permute.xlu0 %2609
  %2611 = vrot.lane.b32.xlu0 %v2437, 24
  %v2612 = vpop.permute.xlu0 %2611
  %2613 = vrot.lane.b32.xlu0 %v2438, 24
  %v2614 = vpop.permute.xlu0 %2613
  %2615 = vrot.lane.b32.xlu0 %v2439, 24
  %v2616 = vpop.permute.xlu0 %2615
  %2617 = vrot.lane.b32.xlu0 %v2440, 24
  %v2618 = vpop.permute.xlu0 %2617
  %2619 = vrot.lane.b32.xlu0 %v2441, 24
  %v2620 = vpop.permute.xlu0 %2619
  %2621 = vrot.lane.b32.xlu0 %v2442, 24
  %v2622 = vpop.permute.xlu0 %2621
  %2623 = vrot.lane.b32.xlu0 %v2443, 24
  %v2624 = vpop.permute.xlu0 %2623
  %2625 = vrot.lane.b32.xlu0 %v2444, 24
  %v2626 = vpop.permute.xlu0 %2625
  %2627 = vrot.lane.b32.xlu0 %v2445, 24
  %v2628 = vpop.permute.xlu0 %2627
  %2629 = vrot.lane.b32.xlu0 %v2446, 24
  %v2630 = vpop.permute.xlu0 %2629
  %2631 = vrot.lane.b32.xlu0 %v2447, 24
  %v2632 = vpop.permute.xlu0 %2631
  %2633 = vrot.lane.b32.xlu0 %v2448, 24
  %v2634 = vpop.permute.xlu0 %2633
  %2635 = vrot.lane.b32.xlu0 %v2449, 24
  %v2636 = vpop.permute.xlu0 %2635
  %2637 = vrot.lane.b32.xlu0 %v2450, 24
  %v2638 = vpop.permute.xlu0 %2637
  %2639 = vrot.lane.b32.xlu0 %v2451, 24
  %v2640 = vpop.permute.xlu0 %2639
  %2641 = vrot.lane.b32.xlu0 %v2452, 24
  %v2642 = vpop.permute.xlu0 %2641
  %2643 = vrot.lane.b32.xlu0 %v2453, 24
  %v2644 = vpop.permute.xlu0 %2643
  %2645 = vrot.lane.b32.xlu0 %v2454, 24
  %v2646 = vpop.permute.xlu0 %2645
  %vm2711 = vcmask 261312
  %2712 = vst.msk [vmem:[#allocation3] sm:$0xff] %vm2711, %v2520
  %2713 = vst.msk [vmem:[#allocation3 + $0x8] sm:$0xff] %vm2711, %v2522
  %2714 = vst.msk [vmem:[#allocation3 + $0x10] sm:$0xff] %vm2711, %v2524
  %2715 = vst.msk [vmem:[#allocation3 + $0x18] sm:$0xff] %vm2711, %v2526
  %2716 = vst.msk [vmem:[#allocation3 + $0x20] sm:$0xff] %vm2711, %v2528
  %2717 = vst.msk [vmem:[#allocation3 + $0x28] sm:$0xff] %vm2711, %v2530
  %2718 = vst.msk [vmem:[#allocation3 + $0x30] sm:$0xff] %vm2711, %v2532
  %2719 = vst.msk [vmem:[#allocation3 + $0x38] sm:$0xff] %vm2711, %v2534
  %2720 = vst.msk [vmem:[#allocation3 + $0x40] sm:$0xff] %vm2711, %v2536
  %2721 = vst.msk [vmem:[#allocation3 + $0x48] sm:$0xff] %vm2711, %v2538
  %2722 = vst.msk [vmem:[#allocation3 + $0x50] sm:$0xff] %vm2711, %v2540
  %2723 = vst.msk [vmem:[#allocation3 + $0x58] sm:$0xff] %vm2711, %v2542
  %2724 = vst.msk [vmem:[#allocation3 + $0x60] sm:$0xff] %vm2711, %v2544
  %2725 = vst.msk [vmem:[#allocation3 + $0x68] sm:$0xff] %vm2711, %v2546
  %2726 = vst.msk [vmem:[#allocation3 + $0x70] sm:$0xff] %vm2711, %v2548
  %2727 = vst.msk [vmem:[#allocation3 + $0x78] sm:$0xff] %vm2711, %v2550
  %2728 = vst.msk [vmem:[#allocation3 + $0x80] sm:$0xff] %vm2711, %v2552
  %2729 = vst.msk [vmem:[#allocation3 + $0x88] sm:$0xff] %vm2711, %v2554
  %2730 = vst.msk [vmem:[#allocation3 + $0x90] sm:$0xff] %vm2711, %v2556
  %2731 = vst.msk [vmem:[#allocation3 + $0x98] sm:$0xff] %vm2711, %v2558
  %2732 = vst.msk [vmem:[#allocation3 + $0xa0] sm:$0xff] %vm2711, %v2560
  %2733 = vst.msk [vmem:[#allocation3 + $0xa8] sm:$0xff] %vm2711, %v2562
  %2734 = vst.msk [vmem:[#allocation3 + $0xb0] sm:$0xff] %vm2711, %v2564
  %2735 = vst.msk [vmem:[#allocation3 + $0xb8] sm:$0xff] %vm2711, %v2566
  %2736 = vst.msk [vmem:[#allocation3 + $0xc0] sm:$0xff] %vm2711, %v2568
  %2737 = vst.msk [vmem:[#allocation3 + $0xc8] sm:$0xff] %vm2711, %v2570
  %2738 = vst.msk [vmem:[#allocation3 + $0xd0] sm:$0xff] %vm2711, %v2572
  %2739 = vst.msk [vmem:[#allocation3 + $0xd8] sm:$0xff] %vm2711, %v2574
  %2740 = vst.msk [vmem:[#allocation3 + $0xe0] sm:$0xff] %vm2711, %v2576
  %2741 = vst.msk [vmem:[#allocation3 + $0xe8] sm:$0xff] %vm2711, %v2578
  %2742 = vst.msk [vmem:[#allocation3 + $0xf0] sm:$0xff] %vm2711, %v2580
  %2743 = vst.msk [vmem:[#allocation3 + $0xf8] sm:$0xff] %vm2711, %v2582
  %2744 = vst.msk [vmem:[#allocation3 + $0x100] sm:$0xff] %vm2711, %v2584
  %2745 = vst.msk [vmem:[#allocation3 + $0x108] sm:$0xff] %vm2711, %v2586
  %2746 = vst.msk [vmem:[#allocation3 + $0x110] sm:$0xff] %vm2711, %v2588
  %2747 = vst.msk [vmem:[#allocation3 + $0x118] sm:$0xff] %vm2711, %v2590
  %2748 = vst.msk [vmem:[#allocation3 + $0x120] sm:$0xff] %vm2711, %v2592
  %2749 = vst.msk [vmem:[#allocation3 + $0x128] sm:$0xff] %vm2711, %v2594
  %2750 = vst.msk [vmem:[#allocation3 + $0x130] sm:$0xff] %vm2711, %v2596
  %2751 = vst.msk [vmem:[#allocation3 + $0x138] sm:$0xff] %vm2711, %v2598
  %2752 = vst.msk [vmem:[#allocation3 + $0x140] sm:$0xff] %vm2711, %v2600
  %2753 = vst.msk [vmem:[#allocation3 + $0x148] sm:$0xff] %vm2711, %v2602
  %2754 = vst.msk [vmem:[#allocation3 + $0x150] sm:$0xff] %vm2711, %v2604
  %2755 = vst.msk [vmem:[#allocation3 + $0x158] sm:$0xff] %vm2711, %v2606
  %2756 = vst.msk [vmem:[#allocation3 + $0x160] sm:$0xff] %vm2711, %v2608
  %2757 = vst.msk [vmem:[#allocation3 + $0x168] sm:$0xff] %vm2711, %v2610
  %2758 = vst.msk [vmem:[#allocation3 + $0x170] sm:$0xff] %vm2711, %v2612
  %2759 = vst.msk [vmem:[#allocation3 + $0x178] sm:$0xff] %vm2711, %v2614
  %2760 = vst.msk [vmem:[#allocation3 + $0x180] sm:$0xff] %vm2711, %v2616
  %2761 = vst.msk [vmem:[#allocation3 + $0x188] sm:$0xff] %vm2711, %v2618
  %2762 = vst.msk [vmem:[#allocation3 + $0x190] sm:$0xff] %vm2711, %v2620
  %2763 = vst.msk [vmem:[#allocation3 + $0x198] sm:$0xff] %vm2711, %v2622
  %2764 = vst.msk [vmem:[#allocation3 + $0x1a0] sm:$0xff] %vm2711, %v2624
  %2765 = vst.msk [vmem:[#allocation3 + $0x1a8] sm:$0xff] %vm2711, %v2626
  %2766 = vst.msk [vmem:[#allocation3 + $0x1b0] sm:$0xff] %vm2711, %v2628
  %2767 = vst.msk [vmem:[#allocation3 + $0x1b8] sm:$0xff] %vm2711, %v2630
  %2768 = vst.msk [vmem:[#allocation3 + $0x1c0] sm:$0xff] %vm2711, %v2632
  %2769 = vst.msk [vmem:[#allocation3 + $0x1c8] sm:$0xff] %vm2711, %v2634
  %2770 = vst.msk [vmem:[#allocation3 + $0x1d0] sm:$0xff] %vm2711, %v2636
  %2771 = vst.msk [vmem:[#allocation3 + $0x1d8] sm:$0xff] %vm2711, %v2638
  %2772 = vst.msk [vmem:[#allocation3 + $0x1e0] sm:$0xff] %vm2711, %v2640
  %2773 = vst.msk [vmem:[#allocation3 + $0x1e8] sm:$0xff] %vm2711, %v2642
  %2774 = vst.msk [vmem:[#allocation3 + $0x1f0] sm:$0xff] %vm2711, %v2644
  %2775 = vst.msk [vmem:[#allocation3 + $0x1f8] sm:$0xff] %vm2711, %v2646
  %v2776 = vld [vmem:[%s1266 + $0x1] sm:$0xff]
  %v2777 = vld [vmem:[%s1266 + $0x9] sm:$0xff]
  %v2778 = vld [vmem:[%s1266 + $0x19] sm:$0xff]
  %v2779 = vld [vmem:[%s1266 + $0x21] sm:$0xff]
  %v2780 = vld [vmem:[%s1266 + $0x31] sm:$0xff]
  %v2781 = vld [vmem:[%s1266 + $0x39] sm:$0xff]
  %v2782 = vld [vmem:[%s1266 + $0x49] sm:$0xff]
  %v2783 = vld [vmem:[%s1266 + $0x51] sm:$0xff]
  %v2784 = vld [vmem:[%s1266 + $0x61] sm:$0xff]
  %v2785 = vld [vmem:[%s1266 + $0x69] sm:$0xff]
  %v2786 = vld [vmem:[%s1266 + $0x79] sm:$0xff]
  %v2787 = vld [vmem:[%s1266 + $0x81] sm:$0xff]
  %v2788 = vld [vmem:[%s1266 + $0x91] sm:$0xff]
  %v2789 = vld [vmem:[%s1266 + $0x99] sm:$0xff]
  %v2790 = vld [vmem:[%s1266 + $0xa9] sm:$0xff]
  %v2791 = vld [vmem:[%s1266 + $0xb1] sm:$0xff]
  %v2792 = vld [vmem:[%s1266 + $0xc1] sm:$0xff]
  %v2793 = vld [vmem:[%s1266 + $0xc9] sm:$0xff]
  %v2794 = vld [vmem:[%s1266 + $0xd9] sm:$0xff]
  %v2795 = vld [vmem:[%s1266 + $0xe1] sm:$0xff]
  %v2796 = vld [vmem:[%s1266 + $0xf1] sm:$0xff]
  %v2797 = vld [vmem:[%s1266 + $0xf9] sm:$0xff]
  %v2798 = vld [vmem:[%s1266 + $0x109] sm:$0xff]
  %v2799 = vld [vmem:[%s1266 + $0x111] sm:$0xff]
  %v2800 = vld [vmem:[%s1266 + $0x121] sm:$0xff]
  %v2801 = vld [vmem:[%s1266 + $0x129] sm:$0xff]
  %v2802 = vld [vmem:[%s1266 + $0x139] sm:$0xff]
  %v2803 = vld [vmem:[%s1266 + $0x141] sm:$0xff]
  %v2804 = vld [vmem:[%s1266 + $0x151] sm:$0xff]
  %v2805 = vld [vmem:[%s1266 + $0x159] sm:$0xff]
  %v2806 = vld [vmem:[%s1266 + $0x169] sm:$0xff]
  %v2807 = vld [vmem:[%s1266 + $0x171] sm:$0xff]
  %v2808 = vld [vmem:[%s1266 + $0x1b1] sm:$0xff]
  %v2809 = vld [vmem:[%s1266 + $0x1b9] sm:$0xff]
  %v2810 = vld [vmem:[%s1266 + $0x1c9] sm:$0xff]
  %v2811 = vld [vmem:[%s1266 + $0x1d1] sm:$0xff]
  %v2812 = vld [vmem:[%s1266 + $0x1e1] sm:$0xff]
  %v2813 = vld [vmem:[%s1266 + $0x1e9] sm:$0xff]
  %v2814 = vld [vmem:[%s1266 + $0x1f9] sm:$0xff]
  %v2815 = vld [vmem:[%s1266 + $0x201] sm:$0xff]
  %v2816 = vld [vmem:[%s1266 + $0x211] sm:$0xff]
  %v2817 = vld [vmem:[%s1266 + $0x219] sm:$0xff]
  %v2818 = vld [vmem:[%s1266 + $0x229] sm:$0xff]
  %v2819 = vld [vmem:[%s1266 + $0x231] sm:$0xff]
  %v2820 = vld [vmem:[%s1266 + $0x241] sm:$0xff]
  %v2821 = vld [vmem:[%s1266 + $0x249] sm:$0xff]
  %v2822 = vld [vmem:[%s1266 + $0x259] sm:$0xff]
  %v2823 = vld [vmem:[%s1266 + $0x261] sm:$0xff]
  %v2824 = vld [vmem:[%s1266 + $0x271] sm:$0xff]
  %v2825 = vld [vmem:[%s1266 + $0x279] sm:$0xff]
  %v2826 = vld [vmem:[%s1266 + $0x289] sm:$0xff]
  %v2827 = vld [vmem:[%s1266 + $0x291] sm:$0xff]
  %v2828 = vld [vmem:[%s1266 + $0x2a1] sm:$0xff]
  %v2829 = vld [vmem:[%s1266 + $0x2a9] sm:$0xff]
  %v2830 = vld [vmem:[%s1266 + $0x2b9] sm:$0xff]
  %v2831 = vld [vmem:[%s1266 + $0x2c1] sm:$0xff]
  %v2832 = vld [vmem:[%s1266 + $0x2d1] sm:$0xff]
  %v2833 = vld [vmem:[%s1266 + $0x2d9] sm:$0xff]
  %v2834 = vld [vmem:[%s1266 + $0x2e9] sm:$0xff]
  %v2835 = vld [vmem:[%s1266 + $0x2f1] sm:$0xff]
  %v2836 = vld [vmem:[%s1266 + $0x301] sm:$0xff]
  %v2837 = vld [vmem:[%s1266 + $0x309] sm:$0xff]
  %v2838 = vld [vmem:[%s1266 + $0x319] sm:$0xff]
  %v2839 = vld [vmem:[%s1266 + $0x321] sm:$0xff]
  %2904 = vrot.lane.b32.xlu0 %v2776, 32
  %v2905 = vpop.permute.xlu0 %2904
  %2906 = vrot.lane.b32.xlu0 %v2777, 32
  %v2907 = vpop.permute.xlu0 %2906
  %2908 = vrot.lane.b32.xlu0 %v2778, 32
  %v2909 = vpop.permute.xlu0 %2908
  %2910 = vrot.lane.b32.xlu0 %v2779, 32
  %v2911 = vpop.permute.xlu0 %2910
  %2912 = vrot.lane.b32.xlu0 %v2780, 32
  %v2913 = vpop.permute.xlu0 %2912
  %2914 = vrot.lane.b32.xlu0 %v2781, 32
  %v2915 = vpop.permute.xlu0 %2914
  %2916 = vrot.lane.b32.xlu0 %v2782, 32
  %v2917 = vpop.permute.xlu0 %2916
  %2918 = vrot.lane.b32.xlu0 %v2783, 32
  %v2919 = vpop.permute.xlu0 %2918
  %2920 = vrot.lane.b32.xlu0 %v2784, 32
  %v2921 = vpop.permute.xlu0 %2920
  %2922 = vrot.lane.b32.xlu0 %v2785, 32
  %v2923 = vpop.permute.xlu0 %2922
  %2924 = vrot.lane.b32.xlu0 %v2786, 32
  %v2925 = vpop.permute.xlu0 %2924
  %2926 = vrot.lane.b32.xlu0 %v2787, 32
  %v2927 = vpop.permute.xlu0 %2926
  %2928 = vrot.lane.b32.xlu0 %v2788, 32
  %v2929 = vpop.permute.xlu0 %2928
  %2930 = vrot.lane.b32.xlu0 %v2789, 32
  %v2931 = vpop.permute.xlu0 %2930
  %2932 = vrot.lane.b32.xlu0 %v2790, 32
  %v2933 = vpop.permute.xlu0 %2932
  %2934 = vrot.lane.b32.xlu0 %v2791, 32
  %v2935 = vpop.permute.xlu0 %2934
  %2936 = vrot.lane.b32.xlu0 %v2792, 32
  %v2937 = vpop.permute.xlu0 %2936
  %2938 = vrot.lane.b32.xlu0 %v2793, 32
  %v2939 = vpop.permute.xlu0 %2938
  %2940 = vrot.lane.b32.xlu0 %v2794, 32
  %v2941 = vpop.permute.xlu0 %2940
  %2942 = vrot.lane.b32.xlu0 %v2795, 32
  %v2943 = vpop.permute.xlu0 %2942
  %2944 = vrot.lane.b32.xlu0 %v2796, 32
  %v2945 = vpop.permute.xlu0 %2944
  %2946 = vrot.lane.b32.xlu0 %v2797, 32
  %v2947 = vpop.permute.xlu0 %2946
  %2948 = vrot.lane.b32.xlu0 %v2798, 32
  %v2949 = vpop.permute.xlu0 %2948
  %2950 = vrot.lane.b32.xlu0 %v2799, 32
  %v2951 = vpop.permute.xlu0 %2950
  %2952 = vrot.lane.b32.xlu0 %v2800, 32
  %v2953 = vpop.permute.xlu0 %2952
  %2954 = vrot.lane.b32.xlu0 %v2801, 32
  %v2955 = vpop.permute.xlu0 %2954
  %2956 = vrot.lane.b32.xlu0 %v2802, 32
  %v2957 = vpop.permute.xlu0 %2956
  %2958 = vrot.lane.b32.xlu0 %v2803, 32
  %v2959 = vpop.permute.xlu0 %2958
  %2960 = vrot.lane.b32.xlu0 %v2804, 32
  %v2961 = vpop.permute.xlu0 %2960
  %2962 = vrot.lane.b32.xlu0 %v2805, 32
  %v2963 = vpop.permute.xlu0 %2962
  %2964 = vrot.lane.b32.xlu0 %v2806, 32
  %v2965 = vpop.permute.xlu0 %2964
  %2966 = vrot.lane.b32.xlu0 %v2807, 32
  %v2967 = vpop.permute.xlu0 %2966
  %2968 = vrot.lane.b32.xlu0 %v2808, 32
  %v2969 = vpop.permute.xlu0 %2968
  %2970 = vrot.lane.b32.xlu0 %v2809, 32
  %v2971 = vpop.permute.xlu0 %2970
  %2972 = vrot.lane.b32.xlu0 %v2810, 32
  %v2973 = vpop.permute.xlu0 %2972
  %2974 = vrot.lane.b32.xlu0 %v2811, 32
  %v2975 = vpop.permute.xlu0 %2974
  %2976 = vrot.lane.b32.xlu0 %v2812, 32
  %v2977 = vpop.permute.xlu0 %2976
  %2978 = vrot.lane.b32.xlu0 %v2813, 32
  %v2979 = vpop.permute.xlu0 %2978
  %2980 = vrot.lane.b32.xlu0 %v2814, 32
  %v2981 = vpop.permute.xlu0 %2980
  %2982 = vrot.lane.b32.xlu0 %v2815, 32
  %v2983 = vpop.permute.xlu0 %2982
  %2984 = vrot.lane.b32.xlu0 %v2816, 32
  %v2985 = vpop.permute.xlu0 %2984
  %2986 = vrot.lane.b32.xlu0 %v2817, 32
  %v2987 = vpop.permute.xlu0 %2986
  %2988 = vrot.lane.b32.xlu0 %v2818, 32
  %v2989 = vpop.permute.xlu0 %2988
  %2990 = vrot.lane.b32.xlu0 %v2819, 32
  %v2991 = vpop.permute.xlu0 %2990
  %2992 = vrot.lane.b32.xlu0 %v2820, 32
  %v2993 = vpop.permute.xlu0 %2992
  %2994 = vrot.lane.b32.xlu0 %v2821, 32
  %v2995 = vpop.permute.xlu0 %2994
  %2996 = vrot.lane.b32.xlu0 %v2822, 32
  %v2997 = vpop.permute.xlu0 %2996
  %2998 = vrot.lane.b32.xlu0 %v2823, 32
  %v2999 = vpop.permute.xlu0 %2998
  %3000 = vrot.lane.b32.xlu0 %v2824, 32
  %v3001 = vpop.permute.xlu0 %3000
  %3002 = vrot.lane.b32.xlu0 %v2825, 32
  %v3003 = vpop.permute.xlu0 %3002
  %3004 = vrot.lane.b32.xlu0 %v2826, 32
  %v3005 = vpop.permute.xlu0 %3004
  %3006 = vrot.lane.b32.xlu0 %v2827, 32
  %v3007 = vpop.permute.xlu0 %3006
  %3008 = vrot.lane.b32.xlu0 %v2828, 32
  %v3009 = vpop.permute.xlu0 %3008
  %3010 = vrot.lane.b32.xlu0 %v2829, 32
  %v3011 = vpop.permute.xlu0 %3010
  %3012 = vrot.lane.b32.xlu0 %v2830, 32
  %v3013 = vpop.permute.xlu0 %3012
  %3014 = vrot.lane.b32.xlu0 %v2831, 32
  %v3015 = vpop.permute.xlu0 %3014
  %3016 = vrot.lane.b32.xlu0 %v2832, 32
  %v3017 = vpop.permute.xlu0 %3016
  %3018 = vrot.lane.b32.xlu0 %v2833, 32
  %v3019 = vpop.permute.xlu0 %3018
  %3020 = vrot.lane.b32.xlu0 %v2834, 32
  %v3021 = vpop.permute.xlu0 %3020
  %3022 = vrot.lane.b32.xlu0 %v2835, 32
  %v3023 = vpop.permute.xlu0 %3022
  %3024 = vrot.lane.b32.xlu0 %v2836, 32
  %v3025 = vpop.permute.xlu0 %3024
  %3026 = vrot.lane.b32.xlu0 %v2837, 32
  %v3027 = vpop.permute.xlu0 %3026
  %3028 = vrot.lane.b32.xlu0 %v2838, 32
  %v3029 = vpop.permute.xlu0 %3028
  %3030 = vrot.lane.b32.xlu0 %v2839, 32
  %v3031 = vpop.permute.xlu0 %3030
  %vm3096 = vcmask 326912
  %3097 = vst.msk [vmem:[#allocation3] sm:$0xff] %vm3096, %v2905
  %3098 = vst.msk [vmem:[#allocation3 + $0x8] sm:$0xff] %vm3096, %v2907
  %3099 = vst.msk [vmem:[#allocation3 + $0x10] sm:$0xff] %vm3096, %v2909
  %3100 = vst.msk [vmem:[#allocation3 + $0x18] sm:$0xff] %vm3096, %v2911
  %3101 = vst.msk [vmem:[#allocation3 + $0x20] sm:$0xff] %vm3096, %v2913
  %3102 = vst.msk [vmem:[#allocation3 + $0x28] sm:$0xff] %vm3096, %v2915
  %3103 = vst.msk [vmem:[#allocation3 + $0x30] sm:$0xff] %vm3096, %v2917
  %3104 = vst.msk [vmem:[#allocation3 + $0x38] sm:$0xff] %vm3096, %v2919
  %3105 = vst.msk [vmem:[#allocation3 + $0x40] sm:$0xff] %vm3096, %v2921
  %3106 = vst.msk [vmem:[#allocation3 + $0x48] sm:$0xff] %vm3096, %v2923
  %3107 = vst.msk [vmem:[#allocation3 + $0x50] sm:$0xff] %vm3096, %v2925
  %3108 = vst.msk [vmem:[#allocation3 + $0x58] sm:$0xff] %vm3096, %v2927
  %3109 = vst.msk [vmem:[#allocation3 + $0x60] sm:$0xff] %vm3096, %v2929
  %3110 = vst.msk [vmem:[#allocation3 + $0x68] sm:$0xff] %vm3096, %v2931
  %3111 = vst.msk [vmem:[#allocation3 + $0x70] sm:$0xff] %vm3096, %v2933
  %3112 = vst.msk [vmem:[#allocation3 + $0x78] sm:$0xff] %vm3096, %v2935
  %3113 = vst.msk [vmem:[#allocation3 + $0x80] sm:$0xff] %vm3096, %v2937
  %3114 = vst.msk [vmem:[#allocation3 + $0x88] sm:$0xff] %vm3096, %v2939
  %3115 = vst.msk [vmem:[#allocation3 + $0x90] sm:$0xff] %vm3096, %v2941
  %3116 = vst.msk [vmem:[#allocation3 + $0x98] sm:$0xff] %vm3096, %v2943
  %3117 = vst.msk [vmem:[#allocation3 + $0xa0] sm:$0xff] %vm3096, %v2945
  %3118 = vst.msk [vmem:[#allocation3 + $0xa8] sm:$0xff] %vm3096, %v2947
  %3119 = vst.msk [vmem:[#allocation3 + $0xb0] sm:$0xff] %vm3096, %v2949
  %3120 = vst.msk [vmem:[#allocation3 + $0xb8] sm:$0xff] %vm3096, %v2951
  %3121 = vst.msk [vmem:[#allocation3 + $0xc0] sm:$0xff] %vm3096, %v2953
  %3122 = vst.msk [vmem:[#allocation3 + $0xc8] sm:$0xff] %vm3096, %v2955
  %3123 = vst.msk [vmem:[#allocation3 + $0xd0] sm:$0xff] %vm3096, %v2957
  %3124 = vst.msk [vmem:[#allocation3 + $0xd8] sm:$0xff] %vm3096, %v2959
  %3125 = vst.msk [vmem:[#allocation3 + $0xe0] sm:$0xff] %vm3096, %v2961
  %3126 = vst.msk [vmem:[#allocation3 + $0xe8] sm:$0xff] %vm3096, %v2963
  %3127 = vst.msk [vmem:[#allocation3 + $0xf0] sm:$0xff] %vm3096, %v2965
  %3128 = vst.msk [vmem:[#allocation3 + $0xf8] sm:$0xff] %vm3096, %v2967
  %3129 = vst.msk [vmem:[#allocation3 + $0x100] sm:$0xff] %vm3096, %v2969
  %3130 = vst.msk [vmem:[#allocation3 + $0x108] sm:$0xff] %vm3096, %v2971
  %3131 = vst.msk [vmem:[#allocation3 + $0x110] sm:$0xff] %vm3096, %v2973
  %3132 = vst.msk [vmem:[#allocation3 + $0x118] sm:$0xff] %vm3096, %v2975
  %3133 = vst.msk [vmem:[#allocation3 + $0x120] sm:$0xff] %vm3096, %v2977
  %3134 = vst.msk [vmem:[#allocation3 + $0x128] sm:$0xff] %vm3096, %v2979
  %3135 = vst.msk [vmem:[#allocation3 + $0x130] sm:$0xff] %vm3096, %v2981
  %3136 = vst.msk [vmem:[#allocation3 + $0x138] sm:$0xff] %vm3096, %v2983
  %3137 = vst.msk [vmem:[#allocation3 + $0x140] sm:$0xff] %vm3096, %v2985
  %3138 = vst.msk [vmem:[#allocation3 + $0x148] sm:$0xff] %vm3096, %v2987
  %3139 = vst.msk [vmem:[#allocation3 + $0x150] sm:$0xff] %vm3096, %v2989
  %3140 = vst.msk [vmem:[#allocation3 + $0x158] sm:$0xff] %vm3096, %v2991
  %3141 = vst.msk [vmem:[#allocation3 + $0x160] sm:$0xff] %vm3096, %v2993
  %3142 = vst.msk [vmem:[#allocation3 + $0x168] sm:$0xff] %vm3096, %v2995
  %3143 = vst.msk [vmem:[#allocation3 + $0x170] sm:$0xff] %vm3096, %v2997
  %3144 = vst.msk [vmem:[#allocation3 + $0x178] sm:$0xff] %vm3096, %v2999
  %3145 = vst.msk [vmem:[#allocation3 + $0x180] sm:$0xff] %vm3096, %v3001
  %3146 = vst.msk [vmem:[#allocation3 + $0x188] sm:$0xff] %vm3096, %v3003
  %3147 = vst.msk [vmem:[#allocation3 + $0x190] sm:$0xff] %vm3096, %v3005
  %3148 = vst.msk [vmem:[#allocation3 + $0x198] sm:$0xff] %vm3096, %v3007
  %3149 = vst.msk [vmem:[#allocation3 + $0x1a0] sm:$0xff] %vm3096, %v3009
  %3150 = vst.msk [vmem:[#allocation3 + $0x1a8] sm:$0xff] %vm3096, %v3011
  %3151 = vst.msk [vmem:[#allocation3 + $0x1b0] sm:$0xff] %vm3096, %v3013
  %3152 = vst.msk [vmem:[#allocation3 + $0x1b8] sm:$0xff] %vm3096, %v3015
  %3153 = vst.msk [vmem:[#allocation3 + $0x1c0] sm:$0xff] %vm3096, %v3017
  %3154 = vst.msk [vmem:[#allocation3 + $0x1c8] sm:$0xff] %vm3096, %v3019
  %3155 = vst.msk [vmem:[#allocation3 + $0x1d0] sm:$0xff] %vm3096, %v3021
  %3156 = vst.msk [vmem:[#allocation3 + $0x1d8] sm:$0xff] %vm3096, %v3023
  %3157 = vst.msk [vmem:[#allocation3 + $0x1e0] sm:$0xff] %vm3096, %v3025
  %3158 = vst.msk [vmem:[#allocation3 + $0x1e8] sm:$0xff] %vm3096, %v3027
  %3159 = vst.msk [vmem:[#allocation3 + $0x1f0] sm:$0xff] %vm3096, %v3029
  %3160 = vst.msk [vmem:[#allocation3 + $0x1f8] sm:$0xff] %vm3096, %v3031
  %v3161 = vld [vmem:[%s1266 + $0x2] sm:$0xff]
  %v3162 = vld [vmem:[%s1266 + $0xa] sm:$0xff]
  %v3163 = vld [vmem:[%s1266 + $0x1a] sm:$0xff]
  %v3164 = vld [vmem:[%s1266 + $0x22] sm:$0xff]
  %v3165 = vld [vmem:[%s1266 + $0x32] sm:$0xff]
  %v3166 = vld [vmem:[%s1266 + $0x3a] sm:$0xff]
  %v3167 = vld [vmem:[%s1266 + $0x4a] sm:$0xff]
  %v3168 = vld [vmem:[%s1266 + $0x52] sm:$0xff]
  %v3169 = vld [vmem:[%s1266 + $0x62] sm:$0xff]
  %v3170 = vld [vmem:[%s1266 + $0x6a] sm:$0xff]
  %v3171 = vld [vmem:[%s1266 + $0x7a] sm:$0xff]
  %v3172 = vld [vmem:[%s1266 + $0x82] sm:$0xff]
  %v3173 = vld [vmem:[%s1266 + $0x92] sm:$0xff]
  %v3174 = vld [vmem:[%s1266 + $0x9a] sm:$0xff]
  %v3175 = vld [vmem:[%s1266 + $0xaa] sm:$0xff]
  %v3176 = vld [vmem:[%s1266 + $0xb2] sm:$0xff]
  %v3177 = vld [vmem:[%s1266 + $0xc2] sm:$0xff]
  %v3178 = vld [vmem:[%s1266 + $0xca] sm:$0xff]
  %v3179 = vld [vmem:[%s1266 + $0xda] sm:$0xff]
  %v3180 = vld [vmem:[%s1266 + $0xe2] sm:$0xff]
  %v3181 = vld [vmem:[%s1266 + $0xf2] sm:$0xff]
  %v3182 = vld [vmem:[%s1266 + $0xfa] sm:$0xff]
  %v3183 = vld [vmem:[%s1266 + $0x10a] sm:$0xff]
  %v3184 = vld [vmem:[%s1266 + $0x112] sm:$0xff]
  %v3185 = vld [vmem:[%s1266 + $0x122] sm:$0xff]
  %v3186 = vld [vmem:[%s1266 + $0x12a] sm:$0xff]
  %v3187 = vld [vmem:[%s1266 + $0x13a] sm:$0xff]
  %v3188 = vld [vmem:[%s1266 + $0x142] sm:$0xff]
  %v3189 = vld [vmem:[%s1266 + $0x152] sm:$0xff]
  %v3190 = vld [vmem:[%s1266 + $0x15a] sm:$0xff]
  %v3191 = vld [vmem:[%s1266 + $0x16a] sm:$0xff]
  %v3192 = vld [vmem:[%s1266 + $0x172] sm:$0xff]
  %v3193 = vld [vmem:[%s1266 + $0x1b2] sm:$0xff]
  %v3194 = vld [vmem:[%s1266 + $0x1ba] sm:$0xff]
  %v3195 = vld [vmem:[%s1266 + $0x1ca] sm:$0xff]
  %v3196 = vld [vmem:[%s1266 + $0x1d2] sm:$0xff]
  %v3197 = vld [vmem:[%s1266 + $0x1e2] sm:$0xff]
  %v3198 = vld [vmem:[%s1266 + $0x1ea] sm:$0xff]
  %v3199 = vld [vmem:[%s1266 + $0x1fa] sm:$0xff]
  %v3200 = vld [vmem:[%s1266 + $0x202] sm:$0xff]
  %v3201 = vld [vmem:[%s1266 + $0x212] sm:$0xff]
  %v3202 = vld [vmem:[%s1266 + $0x21a] sm:$0xff]
  %v3203 = vld [vmem:[%s1266 + $0x22a] sm:$0xff]
  %v3204 = vld [vmem:[%s1266 + $0x232] sm:$0xff]
  %v3205 = vld [vmem:[%s1266 + $0x242] sm:$0xff]
  %v3206 = vld [vmem:[%s1266 + $0x24a] sm:$0xff]
  %v3207 = vld [vmem:[%s1266 + $0x25a] sm:$0xff]
  %v3208 = vld [vmem:[%s1266 + $0x262] sm:$0xff]
  %v3209 = vld [vmem:[%s1266 + $0x272] sm:$0xff]
  %v3210 = vld [vmem:[%s1266 + $0x27a] sm:$0xff]
  %v3211 = vld [vmem:[%s1266 + $0x28a] sm:$0xff]
  %v3212 = vld [vmem:[%s1266 + $0x292] sm:$0xff]
  %v3213 = vld [vmem:[%s1266 + $0x2a2] sm:$0xff]
  %v3214 = vld [vmem:[%s1266 + $0x2aa] sm:$0xff]
  %v3215 = vld [vmem:[%s1266 + $0x2ba] sm:$0xff]
  %v3216 = vld [vmem:[%s1266 + $0x2c2] sm:$0xff]
  %v3217 = vld [vmem:[%s1266 + $0x2d2] sm:$0xff]
  %v3218 = vld [vmem:[%s1266 + $0x2da] sm:$0xff]
  %v3219 = vld [vmem:[%s1266 + $0x2ea] sm:$0xff]
  %v3220 = vld [vmem:[%s1266 + $0x2f2] sm:$0xff]
  %v3221 = vld [vmem:[%s1266 + $0x302] sm:$0xff]
  %v3222 = vld [vmem:[%s1266 + $0x30a] sm:$0xff]
  %v3223 = vld [vmem:[%s1266 + $0x31a] sm:$0xff]
  %v3224 = vld [vmem:[%s1266 + $0x322] sm:$0xff]
  %3289 = vrot.lane.b32.xlu0 %v3161, 40
  %v3290 = vpop.permute.xlu0 %3289
  %3291 = vrot.lane.b32.xlu0 %v3162, 40
  %v3292 = vpop.permute.xlu0 %3291
  %3293 = vrot.lane.b32.xlu0 %v3163, 40
  %v3294 = vpop.permute.xlu0 %3293
  %3295 = vrot.lane.b32.xlu0 %v3164, 40
  %v3296 = vpop.permute.xlu0 %3295
  %3297 = vrot.lane.b32.xlu0 %v3165, 40
  %v3298 = vpop.permute.xlu0 %3297
  %3299 = vrot.lane.b32.xlu0 %v3166, 40
  %v3300 = vpop.permute.xlu0 %3299
  %3301 = vrot.lane.b32.xlu0 %v3167, 40
  %v3302 = vpop.permute.xlu0 %3301
  %3303 = vrot.lane.b32.xlu0 %v3168, 40
  %v3304 = vpop.permute.xlu0 %3303
  %3305 = vrot.lane.b32.xlu0 %v3169, 40
  %v3306 = vpop.permute.xlu0 %3305
  %3307 = vrot.lane.b32.xlu0 %v3170, 40
  %v3308 = vpop.permute.xlu0 %3307
  %3309 = vrot.lane.b32.xlu0 %v3171, 40
  %v3310 = vpop.permute.xlu0 %3309
  %3311 = vrot.lane.b32.xlu0 %v3172, 40
  %v3312 = vpop.permute.xlu0 %3311
  %3313 = vrot.lane.b32.xlu0 %v3173, 40
  %v3314 = vpop.permute.xlu0 %3313
  %3315 = vrot.lane.b32.xlu0 %v3174, 40
  %v3316 = vpop.permute.xlu0 %3315
  %3317 = vrot.lane.b32.xlu0 %v3175, 40
  %v3318 = vpop.permute.xlu0 %3317
  %3319 = vrot.lane.b32.xlu0 %v3176, 40
  %v3320 = vpop.permute.xlu0 %3319
  %3321 = vrot.lane.b32.xlu0 %v3177, 40
  %v3322 = vpop.permute.xlu0 %3321
  %3323 = vrot.lane.b32.xlu0 %v3178, 40
  %v3324 = vpop.permute.xlu0 %3323
  %3325 = vrot.lane.b32.xlu0 %v3179, 40
  %v3326 = vpop.permute.xlu0 %3325
  %3327 = vrot.lane.b32.xlu0 %v3180, 40
  %v3328 = vpop.permute.xlu0 %3327
  %3329 = vrot.lane.b32.xlu0 %v3181, 40
  %v3330 = vpop.permute.xlu0 %3329
  %3331 = vrot.lane.b32.xlu0 %v3182, 40
  %v3332 = vpop.permute.xlu0 %3331
  %3333 = vrot.lane.b32.xlu0 %v3183, 40
  %v3334 = vpop.permute.xlu0 %3333
  %3335 = vrot.lane.b32.xlu0 %v3184, 40
  %v3336 = vpop.permute.xlu0 %3335
  %3337 = vrot.lane.b32.xlu0 %v3185, 40
  %v3338 = vpop.permute.xlu0 %3337
  %3339 = vrot.lane.b32.xlu0 %v3186, 40
  %v3340 = vpop.permute.xlu0 %3339
  %3341 = vrot.lane.b32.xlu0 %v3187, 40
  %v3342 = vpop.permute.xlu0 %3341
  %3343 = vrot.lane.b32.xlu0 %v3188, 40
  %v3344 = vpop.permute.xlu0 %3343
  %3345 = vrot.lane.b32.xlu0 %v3189, 40
  %v3346 = vpop.permute.xlu0 %3345
  %3347 = vrot.lane.b32.xlu0 %v3190, 40
  %v3348 = vpop.permute.xlu0 %3347
  %3349 = vrot.lane.b32.xlu0 %v3191, 40
  %v3350 = vpop.permute.xlu0 %3349
  %3351 = vrot.lane.b32.xlu0 %v3192, 40
  %v3352 = vpop.permute.xlu0 %3351
  %3353 = vrot.lane.b32.xlu0 %v3193, 40
  %v3354 = vpop.permute.xlu0 %3353
  %3355 = vrot.lane.b32.xlu0 %v3194, 40
  %v3356 = vpop.permute.xlu0 %3355
  %3357 = vrot.lane.b32.xlu0 %v3195, 40
  %v3358 = vpop.permute.xlu0 %3357
  %3359 = vrot.lane.b32.xlu0 %v3196, 40
  %v3360 = vpop.permute.xlu0 %3359
  %3361 = vrot.lane.b32.xlu0 %v3197, 40
  %v3362 = vpop.permute.xlu0 %3361
  %3363 = vrot.lane.b32.xlu0 %v3198, 40
  %v3364 = vpop.permute.xlu0 %3363
  %3365 = vrot.lane.b32.xlu0 %v3199, 40
  %v3366 = vpop.permute.xlu0 %3365
  %3367 = vrot.lane.b32.xlu0 %v3200, 40
  %v3368 = vpop.permute.xlu0 %3367
  %3369 = vrot.lane.b32.xlu0 %v3201, 40
  %v3370 = vpop.permute.xlu0 %3369
  %3371 = vrot.lane.b32.xlu0 %v3202, 40
  %v3372 = vpop.permute.xlu0 %3371
  %3373 = vrot.lane.b32.xlu0 %v3203, 40
  %v3374 = vpop.permute.xlu0 %3373
  %3375 = vrot.lane.b32.xlu0 %v3204, 40
  %v3376 = vpop.permute.xlu0 %3375
  %3377 = vrot.lane.b32.xlu0 %v3205, 40
  %v3378 = vpop.permute.xlu0 %3377
  %3379 = vrot.lane.b32.xlu0 %v3206, 40
  %v3380 = vpop.permute.xlu0 %3379
  %3381 = vrot.lane.b32.xlu0 %v3207, 40
  %v3382 = vpop.permute.xlu0 %3381
  %3383 = vrot.lane.b32.xlu0 %v3208, 40
  %v3384 = vpop.permute.xlu0 %3383
  %3385 = vrot.lane.b32.xlu0 %v3209, 40
  %v3386 = vpop.permute.xlu0 %3385
  %3387 = vrot.lane.b32.xlu0 %v3210, 40
  %v3388 = vpop.permute.xlu0 %3387
  %3389 = vrot.lane.b32.xlu0 %v3211, 40
  %v3390 = vpop.permute.xlu0 %3389
  %3391 = vrot.lane.b32.xlu0 %v3212, 40
  %v3392 = vpop.permute.xlu0 %3391
  %3393 = vrot.lane.b32.xlu0 %v3213, 40
  %v3394 = vpop.permute.xlu0 %3393
  %3395 = vrot.lane.b32.xlu0 %v3214, 40
  %v3396 = vpop.permute.xlu0 %3395
  %3397 = vrot.lane.b32.xlu0 %v3215, 40
  %v3398 = vpop.permute.xlu0 %3397
  %3399 = vrot.lane.b32.xlu0 %v3216, 40
  %v3400 = vpop.permute.xlu0 %3399
  %3401 = vrot.lane.b32.xlu0 %v3217, 40
  %v3402 = vpop.permute.xlu0 %3401
  %3403 = vrot.lane.b32.xlu0 %v3218, 40
  %v3404 = vpop.permute.xlu0 %3403
  %3405 = vrot.lane.b32.xlu0 %v3219, 40
  %v3406 = vpop.permute.xlu0 %3405
  %3407 = vrot.lane.b32.xlu0 %v3220, 40
  %v3408 = vpop.permute.xlu0 %3407
  %3409 = vrot.lane.b32.xlu0 %v3221, 40
  %v3410 = vpop.permute.xlu0 %3409
  %3411 = vrot.lane.b32.xlu0 %v3222, 40
  %v3412 = vpop.permute.xlu0 %3411
  %3413 = vrot.lane.b32.xlu0 %v3223, 40
  %v3414 = vpop.permute.xlu0 %3413
  %3415 = vrot.lane.b32.xlu0 %v3224, 40
  %v3416 = vpop.permute.xlu0 %3415
  %vm3481 = vcmask 392512
  %3482 = vst.msk [vmem:[#allocation3] sm:$0xff] %vm3481, %v3290
  %3483 = vst.msk [vmem:[#allocation3 + $0x8] sm:$0xff] %vm3481, %v3292
  %3484 = vst.msk [vmem:[#allocation3 + $0x10] sm:$0xff] %vm3481, %v3294
  %3485 = vst.msk [vmem:[#allocation3 + $0x18] sm:$0xff] %vm3481, %v3296
  %3486 = vst.msk [vmem:[#allocation3 + $0x20] sm:$0xff] %vm3481, %v3298
  %3487 = vst.msk [vmem:[#allocation3 + $0x28] sm:$0xff] %vm3481, %v3300
  %3488 = vst.msk [vmem:[#allocation3 + $0x30] sm:$0xff] %vm3481, %v3302
  %3489 = vst.msk [vmem:[#allocation3 + $0x38] sm:$0xff] %vm3481, %v3304
  %3490 = vst.msk [vmem:[#allocation3 + $0x40] sm:$0xff] %vm3481, %v3306
  %3491 = vst.msk [vmem:[#allocation3 + $0x48] sm:$0xff] %vm3481, %v3308
  %3492 = vst.msk [vmem:[#allocation3 + $0x50] sm:$0xff] %vm3481, %v3310
  %3493 = vst.msk [vmem:[#allocation3 + $0x58] sm:$0xff] %vm3481, %v3312
  %3494 = vst.msk [vmem:[#allocation3 + $0x60] sm:$0xff] %vm3481, %v3314
  %3495 = vst.msk [vmem:[#allocation3 + $0x68] sm:$0xff] %vm3481, %v3316
  %3496 = vst.msk [vmem:[#allocation3 + $0x70] sm:$0xff] %vm3481, %v3318
  %3497 = vst.msk [vmem:[#allocation3 + $0x78] sm:$0xff] %vm3481, %v3320
  %3498 = vst.msk [vmem:[#allocation3 + $0x80] sm:$0xff] %vm3481, %v3322
  %3499 = vst.msk [vmem:[#allocation3 + $0x88] sm:$0xff] %vm3481, %v3324
  %3500 = vst.msk [vmem:[#allocation3 + $0x90] sm:$0xff] %vm3481, %v3326
  %3501 = vst.msk [vmem:[#allocation3 + $0x98] sm:$0xff] %vm3481, %v3328
  %3502 = vst.msk [vmem:[#allocation3 + $0xa0] sm:$0xff] %vm3481, %v3330
  %3503 = vst.msk [vmem:[#allocation3 + $0xa8] sm:$0xff] %vm3481, %v3332
  %3504 = vst.msk [vmem:[#allocation3 + $0xb0] sm:$0xff] %vm3481, %v3334
  %3505 = vst.msk [vmem:[#allocation3 + $0xb8] sm:$0xff] %vm3481, %v3336
  %3506 = vst.msk [vmem:[#allocation3 + $0xc0] sm:$0xff] %vm3481, %v3338
  %3507 = vst.msk [vmem:[#allocation3 + $0xc8] sm:$0xff] %vm3481, %v3340
  %3508 = vst.msk [vmem:[#allocation3 + $0xd0] sm:$0xff] %vm3481, %v3342
  %3509 = vst.msk [vmem:[#allocation3 + $0xd8] sm:$0xff] %vm3481, %v3344
  %3510 = vst.msk [vmem:[#allocation3 + $0xe0] sm:$0xff] %vm3481, %v3346
  %3511 = vst.msk [vmem:[#allocation3 + $0xe8] sm:$0xff] %vm3481, %v3348
  %3512 = vst.msk [vmem:[#allocation3 + $0xf0] sm:$0xff] %vm3481, %v3350
  %3513 = vst.msk [vmem:[#allocation3 + $0xf8] sm:$0xff] %vm3481, %v3352
  %3514 = vst.msk [vmem:[#allocation3 + $0x100] sm:$0xff] %vm3481, %v3354
  %3515 = vst.msk [vmem:[#allocation3 + $0x108] sm:$0xff] %vm3481, %v3356
  %3516 = vst.msk [vmem:[#allocation3 + $0x110] sm:$0xff] %vm3481, %v3358
  %3517 = vst.msk [vmem:[#allocation3 + $0x118] sm:$0xff] %vm3481, %v3360
  %3518 = vst.msk [vmem:[#allocation3 + $0x120] sm:$0xff] %vm3481, %v3362
  %3519 = vst.msk [vmem:[#allocation3 + $0x128] sm:$0xff] %vm3481, %v3364
  %3520 = vst.msk [vmem:[#allocation3 + $0x130] sm:$0xff] %vm3481, %v3366
  %3521 = vst.msk [vmem:[#allocation3 + $0x138] sm:$0xff] %vm3481, %v3368
  %3522 = vst.msk [vmem:[#allocation3 + $0x140] sm:$0xff] %vm3481, %v3370
  %3523 = vst.msk [vmem:[#allocation3 + $0x148] sm:$0xff] %vm3481, %v3372
  %3524 = vst.msk [vmem:[#allocation3 + $0x150] sm:$0xff] %vm3481, %v3374
  %3525 = vst.msk [vmem:[#allocation3 + $0x158] sm:$0xff] %vm3481, %v3376
  %3526 = vst.msk [vmem:[#allocation3 + $0x160] sm:$0xff] %vm3481, %v3378
  %3527 = vst.msk [vmem:[#allocation3 + $0x168] sm:$0xff] %vm3481, %v3380
  %3528 = vst.msk [vmem:[#allocation3 + $0x170] sm:$0xff] %vm3481, %v3382
  %3529 = vst.msk [vmem:[#allocation3 + $0x178] sm:$0xff] %vm3481, %v3384
  %3530 = vst.msk [vmem:[#allocation3 + $0x180] sm:$0xff] %vm3481, %v3386
  %3531 = vst.msk [vmem:[#allocation3 + $0x188] sm:$0xff] %vm3481, %v3388
  %3532 = vst.msk [vmem:[#allocation3 + $0x190] sm:$0xff] %vm3481, %v3390
  %3533 = vst.msk [vmem:[#allocation3 + $0x198] sm:$0xff] %vm3481, %v3392
  %3534 = vst.msk [vmem:[#allocation3 + $0x1a0] sm:$0xff] %vm3481, %v3394
  %3535 = vst.msk [vmem:[#allocation3 + $0x1a8] sm:$0xff] %vm3481, %v3396
  %3536 = vst.msk [vmem:[#allocation3 + $0x1b0] sm:$0xff] %vm3481, %v3398
  %3537 = vst.msk [vmem:[#allocation3 + $0x1b8] sm:$0xff] %vm3481, %v3400
  %3538 = vst.msk [vmem:[#allocation3 + $0x1c0] sm:$0xff] %vm3481, %v3402
  %3539 = vst.msk [vmem:[#allocation3 + $0x1c8] sm:$0xff] %vm3481, %v3404
  %3540 = vst.msk [vmem:[#allocation3 + $0x1d0] sm:$0xff] %vm3481, %v3406
  %3541 = vst.msk [vmem:[#allocation3 + $0x1d8] sm:$0xff] %vm3481, %v3408
  %3542 = vst.msk [vmem:[#allocation3 + $0x1e0] sm:$0xff] %vm3481, %v3410
  %3543 = vst.msk [vmem:[#allocation3 + $0x1e8] sm:$0xff] %vm3481, %v3412
  %3544 = vst.msk [vmem:[#allocation3 + $0x1f0] sm:$0xff] %vm3481, %v3414
  %3545 = vst.msk [vmem:[#allocation3 + $0x1f8] sm:$0xff] %vm3481, %v3416
  %s3546 = scalar_lea.vmem [#allocation2], 48
  %v3547 = vld [vmem:[%s3546] sm:$0xff]
  %v3548 = vld [vmem:[%s3546 + $0x8] sm:$0xff]
  %v3549 = vld [vmem:[%s3546 + $0x18] sm:$0xff]
  %v3550 = vld [vmem:[%s3546 + $0x20] sm:$0xff]
  %v3551 = vld [vmem:[%s3546 + $0x30] sm:$0xff]
  %v3552 = vld [vmem:[%s3546 + $0x38] sm:$0xff]
  %v3553 = vld [vmem:[%s3546 + $0x48] sm:$0xff]
  %v3554 = vld [vmem:[%s3546 + $0x50] sm:$0xff]
  %v3555 = vld [vmem:[%s3546 + $0x60] sm:$0xff]
  %v3556 = vld [vmem:[%s3546 + $0x68] sm:$0xff]
  %v3557 = vld [vmem:[%s3546 + $0x78] sm:$0xff]
  %v3558 = vld [vmem:[%s3546 + $0x80] sm:$0xff]
  %v3559 = vld [vmem:[%s3546 + $0x90] sm:$0xff]
  %v3560 = vld [vmem:[%s3546 + $0x98] sm:$0xff]
  %v3561 = vld [vmem:[%s3546 + $0xa8] sm:$0xff]
  %v3562 = vld [vmem:[%s3546 + $0xb0] sm:$0xff]
  %v3563 = vld [vmem:[%s3546 + $0xc0] sm:$0xff]
  %v3564 = vld [vmem:[%s3546 + $0xc8] sm:$0xff]
  %v3565 = vld [vmem:[%s3546 + $0xd8] sm:$0xff]
  %v3566 = vld [vmem:[%s3546 + $0xe0] sm:$0xff]
  %v3567 = vld [vmem:[%s3546 + $0xf0] sm:$0xff]
  %v3568 = vld [vmem:[%s3546 + $0xf8] sm:$0xff]
  %v3569 = vld [vmem:[%s3546 + $0x108] sm:$0xff]
  %v3570 = vld [vmem:[%s3546 + $0x110] sm:$0xff]
  %v3571 = vld [vmem:[%s3546 + $0x120] sm:$0xff]
  %v3572 = vld [vmem:[%s3546 + $0x128] sm:$0xff]
  %v3573 = vld [vmem:[%s3546 + $0x138] sm:$0xff]
  %v3574 = vld [vmem:[%s3546 + $0x140] sm:$0xff]
  %v3575 = vld [vmem:[%s3546 + $0x150] sm:$0xff]
  %v3576 = vld [vmem:[%s3546 + $0x158] sm:$0xff]
  %v3577 = vld [vmem:[%s3546 + $0x168] sm:$0xff]
  %v3578 = vld [vmem:[%s3546 + $0x170] sm:$0xff]
  %v3579 = vld [vmem:[%s3546 + $0x1b0] sm:$0xff]
  %v3580 = vld [vmem:[%s3546 + $0x1b8] sm:$0xff]
  %v3581 = vld [vmem:[%s3546 + $0x1c8] sm:$0xff]
  %v3582 = vld [vmem:[%s3546 + $0x1d0] sm:$0xff]
  %v3583 = vld [vmem:[%s3546 + $0x1e0] sm:$0xff]
  %v3584 = vld [vmem:[%s3546 + $0x1e8] sm:$0xff]
  %v3585 = vld [vmem:[%s3546 + $0x1f8] sm:$0xff]
  %v3586 = vld [vmem:[%s3546 + $0x200] sm:$0xff]
  %v3587 = vld [vmem:[%s3546 + $0x210] sm:$0xff]
  %v3588 = vld [vmem:[%s3546 + $0x218] sm:$0xff]
  %v3589 = vld [vmem:[%s3546 + $0x228] sm:$0xff]
  %v3590 = vld [vmem:[%s3546 + $0x230] sm:$0xff]
  %v3591 = vld [vmem:[%s3546 + $0x240] sm:$0xff]
  %v3592 = vld [vmem:[%s3546 + $0x248] sm:$0xff]
  %v3593 = vld [vmem:[%s3546 + $0x258] sm:$0xff]
  %v3594 = vld [vmem:[%s3546 + $0x260] sm:$0xff]
  %v3595 = vld [vmem:[%s3546 + $0x270] sm:$0xff]
  %v3596 = vld [vmem:[%s3546 + $0x278] sm:$0xff]
  %v3597 = vld [vmem:[%s3546 + $0x288] sm:$0xff]
  %v3598 = vld [vmem:[%s3546 + $0x290] sm:$0xff]
  %v3599 = vld [vmem:[%s3546 + $0x2a0] sm:$0xff]
  %v3600 = vld [vmem:[%s3546 + $0x2a8] sm:$0xff]
  %v3601 = vld [vmem:[%s3546 + $0x2b8] sm:$0xff]
  %v3602 = vld [vmem:[%s3546 + $0x2c0] sm:$0xff]
  %v3603 = vld [vmem:[%s3546 + $0x2d0] sm:$0xff]
  %v3604 = vld [vmem:[%s3546 + $0x2d8] sm:$0xff]
  %v3605 = vld [vmem:[%s3546 + $0x2e8] sm:$0xff]
  %v3606 = vld [vmem:[%s3546 + $0x2f0] sm:$0xff]
  %v3607 = vld [vmem:[%s3546 + $0x300] sm:$0xff]
  %v3608 = vld [vmem:[%s3546 + $0x308] sm:$0xff]
  %v3609 = vld [vmem:[%s3546 + $0x318] sm:$0xff]
  %v3610 = vld [vmem:[%s3546 + $0x320] sm:$0xff]
  %3675 = vrot.lane.b32.xlu0 %v3547, 48
  %v3676 = vpop.permute.xlu0 %3675
  %3677 = vrot.lane.b32.xlu0 %v3548, 48
  %v3678 = vpop.permute.xlu0 %3677
  %3679 = vrot.lane.b32.xlu0 %v3549, 48
  %v3680 = vpop.permute.xlu0 %3679
  %3681 = vrot.lane.b32.xlu0 %v3550, 48
  %v3682 = vpop.permute.xlu0 %3681
  %3683 = vrot.lane.b32.xlu0 %v3551, 48
  %v3684 = vpop.permute.xlu0 %3683
  %3685 = vrot.lane.b32.xlu0 %v3552, 48
  %v3686 = vpop.permute.xlu0 %3685
  %3687 = vrot.lane.b32.xlu0 %v3553, 48
  %v3688 = vpop.permute.xlu0 %3687
  %3689 = vrot.lane.b32.xlu0 %v3554, 48
  %v3690 = vpop.permute.xlu0 %3689
  %3691 = vrot.lane.b32.xlu0 %v3555, 48
  %v3692 = vpop.permute.xlu0 %3691
  %3693 = vrot.lane.b32.xlu0 %v3556, 48
  %v3694 = vpop.permute.xlu0 %3693
  %3695 = vrot.lane.b32.xlu0 %v3557, 48
  %v3696 = vpop.permute.xlu0 %3695
  %3697 = vrot.lane.b32.xlu0 %v3558, 48
  %v3698 = vpop.permute.xlu0 %3697
  %3699 = vrot.lane.b32.xlu0 %v3559, 48
  %v3700 = vpop.permute.xlu0 %3699
  %3701 = vrot.lane.b32.xlu0 %v3560, 48
  %v3702 = vpop.permute.xlu0 %3701
  %3703 = vrot.lane.b32.xlu0 %v3561, 48
  %v3704 = vpop.permute.xlu0 %3703
  %3705 = vrot.lane.b32.xlu0 %v3562, 48
  %v3706 = vpop.permute.xlu0 %3705
  %3707 = vrot.lane.b32.xlu0 %v3563, 48
  %v3708 = vpop.permute.xlu0 %3707
  %3709 = vrot.lane.b32.xlu0 %v3564, 48
  %v3710 = vpop.permute.xlu0 %3709
  %3711 = vrot.lane.b32.xlu0 %v3565, 48
  %v3712 = vpop.permute.xlu0 %3711
  %3713 = vrot.lane.b32.xlu0 %v3566, 48
  %v3714 = vpop.permute.xlu0 %3713
  %3715 = vrot.lane.b32.xlu0 %v3567, 48
  %v3716 = vpop.permute.xlu0 %3715
  %3717 = vrot.lane.b32.xlu0 %v3568, 48
  %v3718 = vpop.permute.xlu0 %3717
  %3719 = vrot.lane.b32.xlu0 %v3569, 48
  %v3720 = vpop.permute.xlu0 %3719
  %3721 = vrot.lane.b32.xlu0 %v3570, 48
  %v3722 = vpop.permute.xlu0 %3721
  %3723 = vrot.lane.b32.xlu0 %v3571, 48
  %v3724 = vpop.permute.xlu0 %3723
  %3725 = vrot.lane.b32.xlu0 %v3572, 48
  %v3726 = vpop.permute.xlu0 %3725
  %3727 = vrot.lane.b32.xlu0 %v3573, 48
  %v3728 = vpop.permute.xlu0 %3727
  %3729 = vrot.lane.b32.xlu0 %v3574, 48
  %v3730 = vpop.permute.xlu0 %3729
  %3731 = vrot.lane.b32.xlu0 %v3575, 48
  %v3732 = vpop.permute.xlu0 %3731
  %3733 = vrot.lane.b32.xlu0 %v3576, 48
  %v3734 = vpop.permute.xlu0 %3733
  %3735 = vrot.lane.b32.xlu0 %v3577, 48
  %v3736 = vpop.permute.xlu0 %3735
  %3737 = vrot.lane.b32.xlu0 %v3578, 48
  %v3738 = vpop.permute.xlu0 %3737
  %3739 = vrot.lane.b32.xlu0 %v3579, 48
  %v3740 = vpop.permute.xlu0 %3739
  %3741 = vrot.lane.b32.xlu0 %v3580, 48
  %v3742 = vpop.permute.xlu0 %3741
  %3743 = vrot.lane.b32.xlu0 %v3581, 48
  %v3744 = vpop.permute.xlu0 %3743
  %3745 = vrot.lane.b32.xlu0 %v3582, 48
  %v3746 = vpop.permute.xlu0 %3745
  %3747 = vrot.lane.b32.xlu0 %v3583, 48
  %v3748 = vpop.permute.xlu0 %3747
  %3749 = vrot.lane.b32.xlu0 %v3584, 48
  %v3750 = vpop.permute.xlu0 %3749
  %3751 = vrot.lane.b32.xlu0 %v3585, 48
  %v3752 = vpop.permute.xlu0 %3751
  %3753 = vrot.lane.b32.xlu0 %v3586, 48
  %v3754 = vpop.permute.xlu0 %3753
  %3755 = vrot.lane.b32.xlu0 %v3587, 48
  %v3756 = vpop.permute.xlu0 %3755
  %3757 = vrot.lane.b32.xlu0 %v3588, 48
  %v3758 = vpop.permute.xlu0 %3757
  %3759 = vrot.lane.b32.xlu0 %v3589, 48
  %v3760 = vpop.permute.xlu0 %3759
  %3761 = vrot.lane.b32.xlu0 %v3590, 48
  %v3762 = vpop.permute.xlu0 %3761
  %3763 = vrot.lane.b32.xlu0 %v3591, 48
  %v3764 = vpop.permute.xlu0 %3763
  %3765 = vrot.lane.b32.xlu0 %v3592, 48
  %v3766 = vpop.permute.xlu0 %3765
  %3767 = vrot.lane.b32.xlu0 %v3593, 48
  %v3768 = vpop.permute.xlu0 %3767
  %3769 = vrot.lane.b32.xlu0 %v3594, 48
  %v3770 = vpop.permute.xlu0 %3769
  %3771 = vrot.lane.b32.xlu0 %v3595, 48
  %v3772 = vpop.permute.xlu0 %3771
  %3773 = vrot.lane.b32.xlu0 %v3596, 48
  %v3774 = vpop.permute.xlu0 %3773
  %3775 = vrot.lane.b32.xlu0 %v3597, 48
  %v3776 = vpop.permute.xlu0 %3775
  %3777 = vrot.lane.b32.xlu0 %v3598, 48
  %v3778 = vpop.permute.xlu0 %3777
  %3779 = vrot.lane.b32.xlu0 %v3599, 48
  %v3780 = vpop.permute.xlu0 %3779
  %3781 = vrot.lane.b32.xlu0 %v3600, 48
  %v3782 = vpop.permute.xlu0 %3781
  %3783 = vrot.lane.b32.xlu0 %v3601, 48
  %v3784 = vpop.permute.xlu0 %3783
  %3785 = vrot.lane.b32.xlu0 %v3602, 48
  %v3786 = vpop.permute.xlu0 %3785
  %3787 = vrot.lane.b32.xlu0 %v3603, 48
  %v3788 = vpop.permute.xlu0 %3787
  %3789 = vrot.lane.b32.xlu0 %v3604, 48
  %v3790 = vpop.permute.xlu0 %3789
  %3791 = vrot.lane.b32.xlu0 %v3605, 48
  %v3792 = vpop.permute.xlu0 %3791
  %3793 = vrot.lane.b32.xlu0 %v3606, 48
  %v3794 = vpop.permute.xlu0 %3793
  %3795 = vrot.lane.b32.xlu0 %v3607, 48
  %v3796 = vpop.permute.xlu0 %3795
  %3797 = vrot.lane.b32.xlu0 %v3608, 48
  %v3798 = vpop.permute.xlu0 %3797
  %3799 = vrot.lane.b32.xlu0 %v3609, 48
  %v3800 = vpop.permute.xlu0 %3799
  %3801 = vrot.lane.b32.xlu0 %v3610, 48
  %v3802 = vpop.permute.xlu0 %3801
  %vm3867 = vcmask 458112
  %3868 = vst.msk [vmem:[#allocation3] sm:$0xff] %vm3867, %v3676
  %3869 = vst.msk [vmem:[#allocation3 + $0x8] sm:$0xff] %vm3867, %v3678
  %3870 = vst.msk [vmem:[#allocation3 + $0x10] sm:$0xff] %vm3867, %v3680
  %3871 = vst.msk [vmem:[#allocation3 + $0x18] sm:$0xff] %vm3867, %v3682
  %3872 = vst.msk [vmem:[#allocation3 + $0x20] sm:$0xff] %vm3867, %v3684
  %3873 = vst.msk [vmem:[#allocation3 + $0x28] sm:$0xff] %vm3867, %v3686
  %3874 = vst.msk [vmem:[#allocation3 + $0x30] sm:$0xff] %vm3867, %v3688
  %3875 = vst.msk [vmem:[#allocation3 + $0x38] sm:$0xff] %vm3867, %v3690
  %3876 = vst.msk [vmem:[#allocation3 + $0x40] sm:$0xff] %vm3867, %v3692
  %3877 = vst.msk [vmem:[#allocation3 + $0x48] sm:$0xff] %vm3867, %v3694
  %3878 = vst.msk [vmem:[#allocation3 + $0x50] sm:$0xff] %vm3867, %v3696
  %3879 = vst.msk [vmem:[#allocation3 + $0x58] sm:$0xff] %vm3867, %v3698
  %3880 = vst.msk [vmem:[#allocation3 + $0x60] sm:$0xff] %vm3867, %v3700
  %3881 = vst.msk [vmem:[#allocation3 + $0x68] sm:$0xff] %vm3867, %v3702
  %3882 = vst.msk [vmem:[#allocation3 + $0x70] sm:$0xff] %vm3867, %v3704
  %3883 = vst.msk [vmem:[#allocation3 + $0x78] sm:$0xff] %vm3867, %v3706
  %3884 = vst.msk [vmem:[#allocation3 + $0x80] sm:$0xff] %vm3867, %v3708
  %3885 = vst.msk [vmem:[#allocation3 + $0x88] sm:$0xff] %vm3867, %v3710
  %3886 = vst.msk [vmem:[#allocation3 + $0x90] sm:$0xff] %vm3867, %v3712
  %3887 = vst.msk [vmem:[#allocation3 + $0x98] sm:$0xff] %vm3867, %v3714
  %3888 = vst.msk [vmem:[#allocation3 + $0xa0] sm:$0xff] %vm3867, %v3716
  %3889 = vst.msk [vmem:[#allocation3 + $0xa8] sm:$0xff] %vm3867, %v3718
  %3890 = vst.msk [vmem:[#allocation3 + $0xb0] sm:$0xff] %vm3867, %v3720
  %3891 = vst.msk [vmem:[#allocation3 + $0xb8] sm:$0xff] %vm3867, %v3722
  %3892 = vst.msk [vmem:[#allocation3 + $0xc0] sm:$0xff] %vm3867, %v3724
  %3893 = vst.msk [vmem:[#allocation3 + $0xc8] sm:$0xff] %vm3867, %v3726
  %3894 = vst.msk [vmem:[#allocation3 + $0xd0] sm:$0xff] %vm3867, %v3728
  %3895 = vst.msk [vmem:[#allocation3 + $0xd8] sm:$0xff] %vm3867, %v3730
  %3896 = vst.msk [vmem:[#allocation3 + $0xe0] sm:$0xff] %vm3867, %v3732
  %3897 = vst.msk [vmem:[#allocation3 + $0xe8] sm:$0xff] %vm3867, %v3734
  %3898 = vst.msk [vmem:[#allocation3 + $0xf0] sm:$0xff] %vm3867, %v3736
  %3899 = vst.msk [vmem:[#allocation3 + $0xf8] sm:$0xff] %vm3867, %v3738
  %3900 = vst.msk [vmem:[#allocation3 + $0x100] sm:$0xff] %vm3867, %v3740
  %3901 = vst.msk [vmem:[#allocation3 + $0x108] sm:$0xff] %vm3867, %v3742
  %3902 = vst.msk [vmem:[#allocation3 + $0x110] sm:$0xff] %vm3867, %v3744
  %3903 = vst.msk [vmem:[#allocation3 + $0x118] sm:$0xff] %vm3867, %v3746
  %3904 = vst.msk [vmem:[#allocation3 + $0x120] sm:$0xff] %vm3867, %v3748
  %3905 = vst.msk [vmem:[#allocation3 + $0x128] sm:$0xff] %vm3867, %v3750
  %3906 = vst.msk [vmem:[#allocation3 + $0x130] sm:$0xff] %vm3867, %v3752
  %3907 = vst.msk [vmem:[#allocation3 + $0x138] sm:$0xff] %vm3867, %v3754
  %3908 = vst.msk [vmem:[#allocation3 + $0x140] sm:$0xff] %vm3867, %v3756
  %3909 = vst.msk [vmem:[#allocation3 + $0x148] sm:$0xff] %vm3867, %v3758
  %3910 = vst.msk [vmem:[#allocation3 + $0x150] sm:$0xff] %vm3867, %v3760
  %3911 = vst.msk [vmem:[#allocation3 + $0x158] sm:$0xff] %vm3867, %v3762
  %3912 = vst.msk [vmem:[#allocation3 + $0x160] sm:$0xff] %vm3867, %v3764
  %3913 = vst.msk [vmem:[#allocation3 + $0x168] sm:$0xff] %vm3867, %v3766
  %3914 = vst.msk [vmem:[#allocation3 + $0x170] sm:$0xff] %vm3867, %v3768
  %3915 = vst.msk [vmem:[#allocation3 + $0x178] sm:$0xff] %vm3867, %v3770
  %3916 = vst.msk [vmem:[#allocation3 + $0x180] sm:$0xff] %vm3867, %v3772
  %3917 = vst.msk [vmem:[#allocation3 + $0x188] sm:$0xff] %vm3867, %v3774
  %3918 = vst.msk [vmem:[#allocation3 + $0x190] sm:$0xff] %vm3867, %v3776
  %3919 = vst.msk [vmem:[#allocation3 + $0x198] sm:$0xff] %vm3867, %v3778
  %3920 = vst.msk [vmem:[#allocation3 + $0x1a0] sm:$0xff] %vm3867, %v3780
  %3921 = vst.msk [vmem:[#allocation3 + $0x1a8] sm:$0xff] %vm3867, %v3782
  %3922 = vst.msk [vmem:[#allocation3 + $0x1b0] sm:$0xff] %vm3867, %v3784
  %3923 = vst.msk [vmem:[#allocation3 + $0x1b8] sm:$0xff] %vm3867, %v3786
  %3924 = vst.msk [vmem:[#allocation3 + $0x1c0] sm:$0xff] %vm3867, %v3788
  %3925 = vst.msk [vmem:[#allocation3 + $0x1c8] sm:$0xff] %vm3867, %v3790
  %3926 = vst.msk [vmem:[#allocation3 + $0x1d0] sm:$0xff] %vm3867, %v3792
  %3927 = vst.msk [vmem:[#allocation3 + $0x1d8] sm:$0xff] %vm3867, %v3794
  %3928 = vst.msk [vmem:[#allocation3 + $0x1e0] sm:$0xff] %vm3867, %v3796
  %3929 = vst.msk [vmem:[#allocation3 + $0x1e8] sm:$0xff] %vm3867, %v3798
  %3930 = vst.msk [vmem:[#allocation3 + $0x1f0] sm:$0xff] %vm3867, %v3800
  %3931 = vst.msk [vmem:[#allocation3 + $0x1f8] sm:$0xff] %vm3867, %v3802
  %v3932 = vld [vmem:[%s3546 + $0x1] sm:$0xff]
  %v3933 = vld [vmem:[%s3546 + $0x9] sm:$0xff]
  %v3934 = vld [vmem:[%s3546 + $0x19] sm:$0xff]
  %v3935 = vld [vmem:[%s3546 + $0x21] sm:$0xff]
  %v3936 = vld [vmem:[%s3546 + $0x31] sm:$0xff]
  %v3937 = vld [vmem:[%s3546 + $0x39] sm:$0xff]
  %v3938 = vld [vmem:[%s3546 + $0x49] sm:$0xff]
  %v3939 = vld [vmem:[%s3546 + $0x51] sm:$0xff]
  %v3940 = vld [vmem:[%s3546 + $0x61] sm:$0xff]
  %v3941 = vld [vmem:[%s3546 + $0x69] sm:$0xff]
  %v3942 = vld [vmem:[%s3546 + $0x79] sm:$0xff]
  %v3943 = vld [vmem:[%s3546 + $0x81] sm:$0xff]
  %v3944 = vld [vmem:[%s3546 + $0x91] sm:$0xff]
  %v3945 = vld [vmem:[%s3546 + $0x99] sm:$0xff]
  %v3946 = vld [vmem:[%s3546 + $0xa9] sm:$0xff]
  %v3947 = vld [vmem:[%s3546 + $0xb1] sm:$0xff]
  %v3948 = vld [vmem:[%s3546 + $0xc1] sm:$0xff]
  %v3949 = vld [vmem:[%s3546 + $0xc9] sm:$0xff]
  %v3950 = vld [vmem:[%s3546 + $0xd9] sm:$0xff]
  %v3951 = vld [vmem:[%s3546 + $0xe1] sm:$0xff]
  %v3952 = vld [vmem:[%s3546 + $0xf1] sm:$0xff]
  %v3953 = vld [vmem:[%s3546 + $0xf9] sm:$0xff]
  %v3954 = vld [vmem:[%s3546 + $0x109] sm:$0xff]
  %v3955 = vld [vmem:[%s3546 + $0x111] sm:$0xff]
  %v3956 = vld [vmem:[%s3546 + $0x121] sm:$0xff]
  %v3957 = vld [vmem:[%s3546 + $0x129] sm:$0xff]
  %v3958 = vld [vmem:[%s3546 + $0x139] sm:$0xff]
  %v3959 = vld [vmem:[%s3546 + $0x141] sm:$0xff]
  %v3960 = vld [vmem:[%s3546 + $0x151] sm:$0xff]
  %v3961 = vld [vmem:[%s3546 + $0x159] sm:$0xff]
  %v3962 = vld [vmem:[%s3546 + $0x169] sm:$0xff]
  %v3963 = vld [vmem:[%s3546 + $0x171] sm:$0xff]
  %v3964 = vld [vmem:[%s3546 + $0x1b1] sm:$0xff]
  %v3965 = vld [vmem:[%s3546 + $0x1b9] sm:$0xff]
  %v3966 = vld [vmem:[%s3546 + $0x1c9] sm:$0xff]
  %v3967 = vld [vmem:[%s3546 + $0x1d1] sm:$0xff]
  %v3968 = vld [vmem:[%s3546 + $0x1e1] sm:$0xff]
  %v3969 = vld [vmem:[%s3546 + $0x1e9] sm:$0xff]
  %v3970 = vld [vmem:[%s3546 + $0x1f9] sm:$0xff]
  %v3971 = vld [vmem:[%s3546 + $0x201] sm:$0xff]
  %v3972 = vld [vmem:[%s3546 + $0x211] sm:$0xff]
  %v3973 = vld [vmem:[%s3546 + $0x219] sm:$0xff]
  %v3974 = vld [vmem:[%s3546 + $0x229] sm:$0xff]
  %v3975 = vld [vmem:[%s3546 + $0x231] sm:$0xff]
  %v3976 = vld [vmem:[%s3546 + $0x241] sm:$0xff]
  %v3977 = vld [vmem:[%s3546 + $0x249] sm:$0xff]
  %v3978 = vld [vmem:[%s3546 + $0x259] sm:$0xff]
  %v3979 = vld [vmem:[%s3546 + $0x261] sm:$0xff]
  %v3980 = vld [vmem:[%s3546 + $0x271] sm:$0xff]
  %v3981 = vld [vmem:[%s3546 + $0x279] sm:$0xff]
  %v3982 = vld [vmem:[%s3546 + $0x289] sm:$0xff]
  %v3983 = vld [vmem:[%s3546 + $0x291] sm:$0xff]
  %v3984 = vld [vmem:[%s3546 + $0x2a1] sm:$0xff]
  %v3985 = vld [vmem:[%s3546 + $0x2a9] sm:$0xff]
  %v3986 = vld [vmem:[%s3546 + $0x2b9] sm:$0xff]
  %v3987 = vld [vmem:[%s3546 + $0x2c1] sm:$0xff]
  %v3988 = vld [vmem:[%s3546 + $0x2d1] sm:$0xff]
  %v3989 = vld [vmem:[%s3546 + $0x2d9] sm:$0xff]
  %v3990 = vld [vmem:[%s3546 + $0x2e9] sm:$0xff]
  %v3991 = vld [vmem:[%s3546 + $0x2f1] sm:$0xff]
  %v3992 = vld [vmem:[%s3546 + $0x301] sm:$0xff]
  %v3993 = vld [vmem:[%s3546 + $0x309] sm:$0xff]
  %v3994 = vld [vmem:[%s3546 + $0x319] sm:$0xff]
  %v3995 = vld [vmem:[%s3546 + $0x321] sm:$0xff]
  %4060 = vrot.lane.b32.xlu0 %v3932, 56
  %v4061 = vpop.permute.xlu0 %4060
  %4062 = vrot.lane.b32.xlu0 %v3933, 56
  %v4063 = vpop.permute.xlu0 %4062
  %4064 = vrot.lane.b32.xlu0 %v3934, 56
  %v4065 = vpop.permute.xlu0 %4064
  %4066 = vrot.lane.b32.xlu0 %v3935, 56
  %v4067 = vpop.permute.xlu0 %4066
  %4068 = vrot.lane.b32.xlu0 %v3936, 56
  %v4069 = vpop.permute.xlu0 %4068
  %4070 = vrot.lane.b32.xlu0 %v3937, 56
  %v4071 = vpop.permute.xlu0 %4070
  %4072 = vrot.lane.b32.xlu0 %v3938, 56
  %v4073 = vpop.permute.xlu0 %4072
  %4074 = vrot.lane.b32.xlu0 %v3939, 56
  %v4075 = vpop.permute.xlu0 %4074
  %4076 = vrot.lane.b32.xlu0 %v3940, 56
  %v4077 = vpop.permute.xlu0 %4076
  %4078 = vrot.lane.b32.xlu0 %v3941, 56
  %v4079 = vpop.permute.xlu0 %4078
  %4080 = vrot.lane.b32.xlu0 %v3942, 56
  %v4081 = vpop.permute.xlu0 %4080
  %4082 = vrot.lane.b32.xlu0 %v3943, 56
  %v4083 = vpop.permute.xlu0 %4082
  %4084 = vrot.lane.b32.xlu0 %v3944, 56
  %v4085 = vpop.permute.xlu0 %4084
  %4086 = vrot.lane.b32.xlu0 %v3945, 56
  %v4087 = vpop.permute.xlu0 %4086
  %4088 = vrot.lane.b32.xlu0 %v3946, 56
  %v4089 = vpop.permute.xlu0 %4088
  %4090 = vrot.lane.b32.xlu0 %v3947, 56
  %v4091 = vpop.permute.xlu0 %4090
  %4092 = vrot.lane.b32.xlu0 %v3948, 56
  %v4093 = vpop.permute.xlu0 %4092
  %4094 = vrot.lane.b32.xlu0 %v3949, 56
  %v4095 = vpop.permute.xlu0 %4094
  %4096 = vrot.lane.b32.xlu0 %v3950, 56
  %v4097 = vpop.permute.xlu0 %4096
  %4098 = vrot.lane.b32.xlu0 %v3951, 56
  %v4099 = vpop.permute.xlu0 %4098
  %4100 = vrot.lane.b32.xlu0 %v3952, 56
  %v4101 = vpop.permute.xlu0 %4100
  %4102 = vrot.lane.b32.xlu0 %v3953, 56
  %v4103 = vpop.permute.xlu0 %4102
  %4104 = vrot.lane.b32.xlu0 %v3954, 56
  %v4105 = vpop.permute.xlu0 %4104
  %4106 = vrot.lane.b32.xlu0 %v3955, 56
  %v4107 = vpop.permute.xlu0 %4106
  %4108 = vrot.lane.b32.xlu0 %v3956, 56
  %v4109 = vpop.permute.xlu0 %4108
  %4110 = vrot.lane.b32.xlu0 %v3957, 56
  %v4111 = vpop.permute.xlu0 %4110
  %4112 = vrot.lane.b32.xlu0 %v3958, 56
  %v4113 = vpop.permute.xlu0 %4112
  %4114 = vrot.lane.b32.xlu0 %v3959, 56
  %v4115 = vpop.permute.xlu0 %4114
  %4116 = vrot.lane.b32.xlu0 %v3960, 56
  %v4117 = vpop.permute.xlu0 %4116
  %4118 = vrot.lane.b32.xlu0 %v3961, 56
  %v4119 = vpop.permute.xlu0 %4118
  %4120 = vrot.lane.b32.xlu0 %v3962, 56
  %v4121 = vpop.permute.xlu0 %4120
  %4122 = vrot.lane.b32.xlu0 %v3963, 56
  %v4123 = vpop.permute.xlu0 %4122
  %4124 = vrot.lane.b32.xlu0 %v3964, 56
  %v4125 = vpop.permute.xlu0 %4124
  %4126 = vrot.lane.b32.xlu0 %v3965, 56
  %v4127 = vpop.permute.xlu0 %4126
  %4128 = vrot.lane.b32.xlu0 %v3966, 56
  %v4129 = vpop.permute.xlu0 %4128
  %4130 = vrot.lane.b32.xlu0 %v3967, 56
  %v4131 = vpop.permute.xlu0 %4130
  %4132 = vrot.lane.b32.xlu0 %v3968, 56
  %v4133 = vpop.permute.xlu0 %4132
  %4134 = vrot.lane.b32.xlu0 %v3969, 56
  %v4135 = vpop.permute.xlu0 %4134
  %4136 = vrot.lane.b32.xlu0 %v3970, 56
  %v4137 = vpop.permute.xlu0 %4136
  %4138 = vrot.lane.b32.xlu0 %v3971, 56
  %v4139 = vpop.permute.xlu0 %4138
  %4140 = vrot.lane.b32.xlu0 %v3972, 56
  %v4141 = vpop.permute.xlu0 %4140
  %4142 = vrot.lane.b32.xlu0 %v3973, 56
  %v4143 = vpop.permute.xlu0 %4142
  %4144 = vrot.lane.b32.xlu0 %v3974, 56
  %v4145 = vpop.permute.xlu0 %4144
  %4146 = vrot.lane.b32.xlu0 %v3975, 56
  %v4147 = vpop.permute.xlu0 %4146
  %4148 = vrot.lane.b32.xlu0 %v3976, 56
  %v4149 = vpop.permute.xlu0 %4148
  %4150 = vrot.lane.b32.xlu0 %v3977, 56
  %v4151 = vpop.permute.xlu0 %4150
  %4152 = vrot.lane.b32.xlu0 %v3978, 56
  %v4153 = vpop.permute.xlu0 %4152
  %4154 = vrot.lane.b32.xlu0 %v3979, 56
  %v4155 = vpop.permute.xlu0 %4154
  %4156 = vrot.lane.b32.xlu0 %v3980, 56
  %v4157 = vpop.permute.xlu0 %4156
  %4158 = vrot.lane.b32.xlu0 %v3981, 56
  %v4159 = vpop.permute.xlu0 %4158
  %4160 = vrot.lane.b32.xlu0 %v3982, 56
  %v4161 = vpop.permute.xlu0 %4160
  %4162 = vrot.lane.b32.xlu0 %v3983, 56
  %v4163 = vpop.permute.xlu0 %4162
  %4164 = vrot.lane.b32.xlu0 %v3984, 56
  %v4165 = vpop.permute.xlu0 %4164
  %4166 = vrot.lane.b32.xlu0 %v3985, 56
  %v4167 = vpop.permute.xlu0 %4166
  %4168 = vrot.lane.b32.xlu0 %v3986, 56
  %v4169 = vpop.permute.xlu0 %4168
  %4170 = vrot.lane.b32.xlu0 %v3987, 56
  %v4171 = vpop.permute.xlu0 %4170
  %4172 = vrot.lane.b32.xlu0 %v3988, 56
  %v4173 = vpop.permute.xlu0 %4172
  %4174 = vrot.lane.b32.xlu0 %v3989, 56
  %v4175 = vpop.permute.xlu0 %4174
  %4176 = vrot.lane.b32.xlu0 %v3990, 56
  %v4177 = vpop.permute.xlu0 %4176
  %4178 = vrot.lane.b32.xlu0 %v3991, 56
  %v4179 = vpop.permute.xlu0 %4178
  %4180 = vrot.lane.b32.xlu0 %v3992, 56
  %v4181 = vpop.permute.xlu0 %4180
  %4182 = vrot.lane.b32.xlu0 %v3993, 56
  %v4183 = vpop.permute.xlu0 %4182
  %4184 = vrot.lane.b32.xlu0 %v3994, 56
  %v4185 = vpop.permute.xlu0 %4184
  %4186 = vrot.lane.b32.xlu0 %v3995, 56
  %v4187 = vpop.permute.xlu0 %4186
  %vm4252 = vcmask 523712
  %4253 = vst.msk [vmem:[#allocation3] sm:$0xff] %vm4252, %v4061
  %4254 = vst.msk [vmem:[#allocation3 + $0x8] sm:$0xff] %vm4252, %v4063
  %4255 = vst.msk [vmem:[#allocation3 + $0x10] sm:$0xff] %vm4252, %v4065
  %4256 = vst.msk [vmem:[#allocation3 + $0x18] sm:$0xff] %vm4252, %v4067
  %4257 = vst.msk [vmem:[#allocation3 + $0x20] sm:$0xff] %vm4252, %v4069
  %4258 = vst.msk [vmem:[#allocation3 + $0x28] sm:$0xff] %vm4252, %v4071
  %4259 = vst.msk [vmem:[#allocation3 + $0x30] sm:$0xff] %vm4252, %v4073
  %4260 = vst.msk [vmem:[#allocation3 + $0x38] sm:$0xff] %vm4252, %v4075
  %4261 = vst.msk [vmem:[#allocation3 + $0x40] sm:$0xff] %vm4252, %v4077
  %4262 = vst.msk [vmem:[#allocation3 + $0x48] sm:$0xff] %vm4252, %v4079
  %4263 = vst.msk [vmem:[#allocation3 + $0x50] sm:$0xff] %vm4252, %v4081
  %4264 = vst.msk [vmem:[#allocation3 + $0x58] sm:$0xff] %vm4252, %v4083
  %4265 = vst.msk [vmem:[#allocation3 + $0x60] sm:$0xff] %vm4252, %v4085
  %4266 = vst.msk [vmem:[#allocation3 + $0x68] sm:$0xff] %vm4252, %v4087
  %4267 = vst.msk [vmem:[#allocation3 + $0x70] sm:$0xff] %vm4252, %v4089
  %4268 = vst.msk [vmem:[#allocation3 + $0x78] sm:$0xff] %vm4252, %v4091
  %4269 = vst.msk [vmem:[#allocation3 + $0x80] sm:$0xff] %vm4252, %v4093
  %4270 = vst.msk [vmem:[#allocation3 + $0x88] sm:$0xff] %vm4252, %v4095
  %4271 = vst.msk [vmem:[#allocation3 + $0x90] sm:$0xff] %vm4252, %v4097
  %4272 = vst.msk [vmem:[#allocation3 + $0x98] sm:$0xff] %vm4252, %v4099
  %4273 = vst.msk [vmem:[#allocation3 + $0xa0] sm:$0xff] %vm4252, %v4101
  %4274 = vst.msk [vmem:[#allocation3 + $0xa8] sm:$0xff] %vm4252, %v4103
  %4275 = vst.msk [vmem:[#allocation3 + $0xb0] sm:$0xff] %vm4252, %v4105
  %4276 = vst.msk [vmem:[#allocation3 + $0xb8] sm:$0xff] %vm4252, %v4107
  %4277 = vst.msk [vmem:[#allocation3 + $0xc0] sm:$0xff] %vm4252, %v4109
  %4278 = vst.msk [vmem:[#allocation3 + $0xc8] sm:$0xff] %vm4252, %v4111
  %4279 = vst.msk [vmem:[#allocation3 + $0xd0] sm:$0xff] %vm4252, %v4113
  %4280 = vst.msk [vmem:[#allocation3 + $0xd8] sm:$0xff] %vm4252, %v4115
  %4281 = vst.msk [vmem:[#allocation3 + $0xe0] sm:$0xff] %vm4252, %v4117
  %4282 = vst.msk [vmem:[#allocation3 + $0xe8] sm:$0xff] %vm4252, %v4119
  %4283 = vst.msk [vmem:[#allocation3 + $0xf0] sm:$0xff] %vm4252, %v4121
  %4284 = vst.msk [vmem:[#allocation3 + $0xf8] sm:$0xff] %vm4252, %v4123
  %4285 = vst.msk [vmem:[#allocation3 + $0x100] sm:$0xff] %vm4252, %v4125
  %4286 = vst.msk [vmem:[#allocation3 + $0x108] sm:$0xff] %vm4252, %v4127
  %4287 = vst.msk [vmem:[#allocation3 + $0x110] sm:$0xff] %vm4252, %v4129
  %4288 = vst.msk [vmem:[#allocation3 + $0x118] sm:$0xff] %vm4252, %v4131
  %4289 = vst.msk [vmem:[#allocation3 + $0x120] sm:$0xff] %vm4252, %v4133
  %4290 = vst.msk [vmem:[#allocation3 + $0x128] sm:$0xff] %vm4252, %v4135
  %4291 = vst.msk [vmem:[#allocation3 + $0x130] sm:$0xff] %vm4252, %v4137
  %4292 = vst.msk [vmem:[#allocation3 + $0x138] sm:$0xff] %vm4252, %v4139
  %4293 = vst.msk [vmem:[#allocation3 + $0x140] sm:$0xff] %vm4252, %v4141
  %4294 = vst.msk [vmem:[#allocation3 + $0x148] sm:$0xff] %vm4252, %v4143
  %4295 = vst.msk [vmem:[#allocation3 + $0x150] sm:$0xff] %vm4252, %v4145
  %4296 = vst.msk [vmem:[#allocation3 + $0x158] sm:$0xff] %vm4252, %v4147
  %4297 = vst.msk [vmem:[#allocation3 + $0x160] sm:$0xff] %vm4252, %v4149
  %4298 = vst.msk [vmem:[#allocation3 + $0x168] sm:$0xff] %vm4252, %v4151
  %4299 = vst.msk [vmem:[#allocation3 + $0x170] sm:$0xff] %vm4252, %v4153
  %4300 = vst.msk [vmem:[#allocation3 + $0x178] sm:$0xff] %vm4252, %v4155
  %4301 = vst.msk [vmem:[#allocation3 + $0x180] sm:$0xff] %vm4252, %v4157
  %4302 = vst.msk [vmem:[#allocation3 + $0x188] sm:$0xff] %vm4252, %v4159
  %4303 = vst.msk [vmem:[#allocation3 + $0x190] sm:$0xff] %vm4252, %v4161
  %4304 = vst.msk [vmem:[#allocation3 + $0x198] sm:$0xff] %vm4252, %v4163
  %4305 = vst.msk [vmem:[#allocation3 + $0x1a0] sm:$0xff] %vm4252, %v4165
  %4306 = vst.msk [vmem:[#allocation3 + $0x1a8] sm:$0xff] %vm4252, %v4167
  %4307 = vst.msk [vmem:[#allocation3 + $0x1b0] sm:$0xff] %vm4252, %v4169
  %4308 = vst.msk [vmem:[#allocation3 + $0x1b8] sm:$0xff] %vm4252, %v4171
  %4309 = vst.msk [vmem:[#allocation3 + $0x1c0] sm:$0xff] %vm4252, %v4173
  %4310 = vst.msk [vmem:[#allocation3 + $0x1c8] sm:$0xff] %vm4252, %v4175
  %4311 = vst.msk [vmem:[#allocation3 + $0x1d0] sm:$0xff] %vm4252, %v4177
  %4312 = vst.msk [vmem:[#allocation3 + $0x1d8] sm:$0xff] %vm4252, %v4179
  %4313 = vst.msk [vmem:[#allocation3 + $0x1e0] sm:$0xff] %vm4252, %v4181
  %4314 = vst.msk [vmem:[#allocation3 + $0x1e8] sm:$0xff] %vm4252, %v4183
  %4315 = vst.msk [vmem:[#allocation3 + $0x1f0] sm:$0xff] %vm4252, %v4185
  %4316 = vst.msk [vmem:[#allocation3 + $0x1f8] sm:$0xff] %vm4252, %v4187
  %v4317 = vld [vmem:[%s3546 + $0x2] sm:$0xff]
  %v4318 = vld [vmem:[%s3546 + $0xa] sm:$0xff]
  %v4319 = vld [vmem:[%s3546 + $0x1a] sm:$0xff]
  %v4320 = vld [vmem:[%s3546 + $0x22] sm:$0xff]
  %v4321 = vld [vmem:[%s3546 + $0x32] sm:$0xff]
  %v4322 = vld [vmem:[%s3546 + $0x3a] sm:$0xff]
  %v4323 = vld [vmem:[%s3546 + $0x4a] sm:$0xff]
  %v4324 = vld [vmem:[%s3546 + $0x52] sm:$0xff]
  %v4325 = vld [vmem:[%s3546 + $0x62] sm:$0xff]
  %v4326 = vld [vmem:[%s3546 + $0x6a] sm:$0xff]
  %v4327 = vld [vmem:[%s3546 + $0x7a] sm:$0xff]
  %v4328 = vld [vmem:[%s3546 + $0x82] sm:$0xff]
  %v4329 = vld [vmem:[%s3546 + $0x92] sm:$0xff]
  %v4330 = vld [vmem:[%s3546 + $0x9a] sm:$0xff]
  %v4331 = vld [vmem:[%s3546 + $0xaa] sm:$0xff]
  %v4332 = vld [vmem:[%s3546 + $0xb2] sm:$0xff]
  %v4333 = vld [vmem:[%s3546 + $0xc2] sm:$0xff]
  %v4334 = vld [vmem:[%s3546 + $0xca] sm:$0xff]
  %v4335 = vld [vmem:[%s3546 + $0xda] sm:$0xff]
  %v4336 = vld [vmem:[%s3546 + $0xe2] sm:$0xff]
  %v4337 = vld [vmem:[%s3546 + $0xf2] sm:$0xff]
  %v4338 = vld [vmem:[%s3546 + $0xfa] sm:$0xff]
  %v4339 = vld [vmem:[%s3546 + $0x10a] sm:$0xff]
  %v4340 = vld [vmem:[%s3546 + $0x112] sm:$0xff]
  %v4341 = vld [vmem:[%s3546 + $0x122] sm:$0xff]
  %v4342 = vld [vmem:[%s3546 + $0x12a] sm:$0xff]
  %v4343 = vld [vmem:[%s3546 + $0x13a] sm:$0xff]
  %v4344 = vld [vmem:[%s3546 + $0x142] sm:$0xff]
  %v4345 = vld [vmem:[%s3546 + $0x152] sm:$0xff]
  %v4346 = vld [vmem:[%s3546 + $0x15a] sm:$0xff]
  %v4347 = vld [vmem:[%s3546 + $0x16a] sm:$0xff]
  %v4348 = vld [vmem:[%s3546 + $0x172] sm:$0xff]
  %v4349 = vld [vmem:[%s3546 + $0x1b2] sm:$0xff]
  %v4350 = vld [vmem:[%s3546 + $0x1ba] sm:$0xff]
  %v4351 = vld [vmem:[%s3546 + $0x1ca] sm:$0xff]
  %v4352 = vld [vmem:[%s3546 + $0x1d2] sm:$0xff]
  %v4353 = vld [vmem:[%s3546 + $0x1e2] sm:$0xff]
  %v4354 = vld [vmem:[%s3546 + $0x1ea] sm:$0xff]
  %v4355 = vld [vmem:[%s3546 + $0x1fa] sm:$0xff]
  %v4356 = vld [vmem:[%s3546 + $0x202] sm:$0xff]
  %v4357 = vld [vmem:[%s3546 + $0x212] sm:$0xff]
  %v4358 = vld [vmem:[%s3546 + $0x21a] sm:$0xff]
  %v4359 = vld [vmem:[%s3546 + $0x22a] sm:$0xff]
  %v4360 = vld [vmem:[%s3546 + $0x232] sm:$0xff]
  %v4361 = vld [vmem:[%s3546 + $0x242] sm:$0xff]
  %v4362 = vld [vmem:[%s3546 + $0x24a] sm:$0xff]
  %v4363 = vld [vmem:[%s3546 + $0x25a] sm:$0xff]
  %v4364 = vld [vmem:[%s3546 + $0x262] sm:$0xff]
  %v4365 = vld [vmem:[%s3546 + $0x272] sm:$0xff]
  %v4366 = vld [vmem:[%s3546 + $0x27a] sm:$0xff]
  %v4367 = vld [vmem:[%s3546 + $0x28a] sm:$0xff]
  %v4368 = vld [vmem:[%s3546 + $0x292] sm:$0xff]
  %v4369 = vld [vmem:[%s3546 + $0x2a2] sm:$0xff]
  %v4370 = vld [vmem:[%s3546 + $0x2aa] sm:$0xff]
  %v4371 = vld [vmem:[%s3546 + $0x2ba] sm:$0xff]
  %v4372 = vld [vmem:[%s3546 + $0x2c2] sm:$0xff]
  %v4373 = vld [vmem:[%s3546 + $0x2d2] sm:$0xff]
  %v4374 = vld [vmem:[%s3546 + $0x2da] sm:$0xff]
  %v4375 = vld [vmem:[%s3546 + $0x2ea] sm:$0xff]
  %v4376 = vld [vmem:[%s3546 + $0x2f2] sm:$0xff]
  %v4377 = vld [vmem:[%s3546 + $0x302] sm:$0xff]
  %v4378 = vld [vmem:[%s3546 + $0x30a] sm:$0xff]
  %v4379 = vld [vmem:[%s3546 + $0x31a] sm:$0xff]
  %v4380 = vld [vmem:[%s3546 + $0x322] sm:$0xff]
  %4445 = vrot.lane.b32.xlu0 %v4317, 64
  %v4446 = vpop.permute.xlu0 %4445
  %4447 = vrot.lane.b32.xlu0 %v4318, 64
  %v4448 = vpop.permute.xlu0 %4447
  %4449 = vrot.lane.b32.xlu0 %v4319, 64
  %v4450 = vpop.permute.xlu0 %4449
  %4451 = vrot.lane.b32.xlu0 %v4320, 64
  %v4452 = vpop.permute.xlu0 %4451
  %4453 = vrot.lane.b32.xlu0 %v4321, 64
  %v4454 = vpop.permute.xlu0 %4453
  %4455 = vrot.lane.b32.xlu0 %v4322, 64
  %v4456 = vpop.permute.xlu0 %4455
  %4457 = vrot.lane.b32.xlu0 %v4323, 64
  %v4458 = vpop.permute.xlu0 %4457
  %4459 = vrot.lane.b32.xlu0 %v4324, 64
  %v4460 = vpop.permute.xlu0 %4459
  %4461 = vrot.lane.b32.xlu0 %v4325, 64
  %v4462 = vpop.permute.xlu0 %4461
  %4463 = vrot.lane.b32.xlu0 %v4326, 64
  %v4464 = vpop.permute.xlu0 %4463
  %4465 = vrot.lane.b32.xlu0 %v4327, 64
  %v4466 = vpop.permute.xlu0 %4465
  %4467 = vrot.lane.b32.xlu0 %v4328, 64
  %v4468 = vpop.permute.xlu0 %4467
  %4469 = vrot.lane.b32.xlu0 %v4329, 64
  %v4470 = vpop.permute.xlu0 %4469
  %4471 = vrot.lane.b32.xlu0 %v4330, 64
  %v4472 = vpop.permute.xlu0 %4471
  %4473 = vrot.lane.b32.xlu0 %v4331, 64
  %v4474 = vpop.permute.xlu0 %4473
  %4475 = vrot.lane.b32.xlu0 %v4332, 64
  %v4476 = vpop.permute.xlu0 %4475
  %4477 = vrot.lane.b32.xlu0 %v4333, 64
  %v4478 = vpop.permute.xlu0 %4477
  %4479 = vrot.lane.b32.xlu0 %v4334, 64
  %v4480 = vpop.permute.xlu0 %4479
  %4481 = vrot.lane.b32.xlu0 %v4335, 64
  %v4482 = vpop.permute.xlu0 %4481
  %4483 = vrot.lane.b32.xlu0 %v4336, 64
  %v4484 = vpop.permute.xlu0 %4483
  %4485 = vrot.lane.b32.xlu0 %v4337, 64
  %v4486 = vpop.permute.xlu0 %4485
  %4487 = vrot.lane.b32.xlu0 %v4338, 64
  %v4488 = vpop.permute.xlu0 %4487
  %4489 = vrot.lane.b32.xlu0 %v4339, 64
  %v4490 = vpop.permute.xlu0 %4489
  %4491 = vrot.lane.b32.xlu0 %v4340, 64
  %v4492 = vpop.permute.xlu0 %4491
  %4493 = vrot.lane.b32.xlu0 %v4341, 64
  %v4494 = vpop.permute.xlu0 %4493
  %4495 = vrot.lane.b32.xlu0 %v4342, 64
  %v4496 = vpop.permute.xlu0 %4495
  %4497 = vrot.lane.b32.xlu0 %v4343, 64
  %v4498 = vpop.permute.xlu0 %4497
  %4499 = vrot.lane.b32.xlu0 %v4344, 64
  %v4500 = vpop.permute.xlu0 %4499
  %4501 = vrot.lane.b32.xlu0 %v4345, 64
  %v4502 = vpop.permute.xlu0 %4501
  %4503 = vrot.lane.b32.xlu0 %v4346, 64
  %v4504 = vpop.permute.xlu0 %4503
  %4505 = vrot.lane.b32.xlu0 %v4347, 64
  %v4506 = vpop.permute.xlu0 %4505
  %4507 = vrot.lane.b32.xlu0 %v4348, 64
  %v4508 = vpop.permute.xlu0 %4507
  %4509 = vrot.lane.b32.xlu0 %v4349, 64
  %v4510 = vpop.permute.xlu0 %4509
  %4511 = vrot.lane.b32.xlu0 %v4350, 64
  %v4512 = vpop.permute.xlu0 %4511
  %4513 = vrot.lane.b32.xlu0 %v4351, 64
  %v4514 = vpop.permute.xlu0 %4513
  %4515 = vrot.lane.b32.xlu0 %v4352, 64
  %v4516 = vpop.permute.xlu0 %4515
  %4517 = vrot.lane.b32.xlu0 %v4353, 64
  %v4518 = vpop.permute.xlu0 %4517
  %4519 = vrot.lane.b32.xlu0 %v4354, 64
  %v4520 = vpop.permute.xlu0 %4519
  %4521 = vrot.lane.b32.xlu0 %v4355, 64
  %v4522 = vpop.permute.xlu0 %4521
  %4523 = vrot.lane.b32.xlu0 %v4356, 64
  %v4524 = vpop.permute.xlu0 %4523
  %4525 = vrot.lane.b32.xlu0 %v4357, 64
  %v4526 = vpop.permute.xlu0 %4525
  %4527 = vrot.lane.b32.xlu0 %v4358, 64
  %v4528 = vpop.permute.xlu0 %4527
  %4529 = vrot.lane.b32.xlu0 %v4359, 64
  %v4530 = vpop.permute.xlu0 %4529
  %4531 = vrot.lane.b32.xlu0 %v4360, 64
  %v4532 = vpop.permute.xlu0 %4531
  %4533 = vrot.lane.b32.xlu0 %v4361, 64
  %v4534 = vpop.permute.xlu0 %4533
  %4535 = vrot.lane.b32.xlu0 %v4362, 64
  %v4536 = vpop.permute.xlu0 %4535
  %4537 = vrot.lane.b32.xlu0 %v4363, 64
  %v4538 = vpop.permute.xlu0 %4537
  %4539 = vrot.lane.b32.xlu0 %v4364, 64
  %v4540 = vpop.permute.xlu0 %4539
  %4541 = vrot.lane.b32.xlu0 %v4365, 64
  %v4542 = vpop.permute.xlu0 %4541
  %4543 = vrot.lane.b32.xlu0 %v4366, 64
  %v4544 = vpop.permute.xlu0 %4543
  %4545 = vrot.lane.b32.xlu0 %v4367, 64
  %v4546 = vpop.permute.xlu0 %4545
  %4547 = vrot.lane.b32.xlu0 %v4368, 64
  %v4548 = vpop.permute.xlu0 %4547
  %4549 = vrot.lane.b32.xlu0 %v4369, 64
  %v4550 = vpop.permute.xlu0 %4549
  %4551 = vrot.lane.b32.xlu0 %v4370, 64
  %v4552 = vpop.permute.xlu0 %4551
  %4553 = vrot.lane.b32.xlu0 %v4371, 64
  %v4554 = vpop.permute.xlu0 %4553
  %4555 = vrot.lane.b32.xlu0 %v4372, 64
  %v4556 = vpop.permute.xlu0 %4555
  %4557 = vrot.lane.b32.xlu0 %v4373, 64
  %v4558 = vpop.permute.xlu0 %4557
  %4559 = vrot.lane.b32.xlu0 %v4374, 64
  %v4560 = vpop.permute.xlu0 %4559
  %4561 = vrot.lane.b32.xlu0 %v4375, 64
  %v4562 = vpop.permute.xlu0 %4561
  %4563 = vrot.lane.b32.xlu0 %v4376, 64
  %v4564 = vpop.permute.xlu0 %4563
  %4565 = vrot.lane.b32.xlu0 %v4377, 64
  %v4566 = vpop.permute.xlu0 %4565
  %4567 = vrot.lane.b32.xlu0 %v4378, 64
  %v4568 = vpop.permute.xlu0 %4567
  %4569 = vrot.lane.b32.xlu0 %v4379, 64
  %v4570 = vpop.permute.xlu0 %4569
  %4571 = vrot.lane.b32.xlu0 %v4380, 64
  %v4572 = vpop.permute.xlu0 %4571
  %vm4637 = vcmask 589312
  %4638 = vst.msk [vmem:[#allocation3] sm:$0xff] %vm4637, %v4446
  %4639 = vst.msk [vmem:[#allocation3 + $0x8] sm:$0xff] %vm4637, %v4448
  %4640 = vst.msk [vmem:[#allocation3 + $0x10] sm:$0xff] %vm4637, %v4450
  %4641 = vst.msk [vmem:[#allocation3 + $0x18] sm:$0xff] %vm4637, %v4452
  %4642 = vst.msk [vmem:[#allocation3 + $0x20] sm:$0xff] %vm4637, %v4454
  %4643 = vst.msk [vmem:[#allocation3 + $0x28] sm:$0xff] %vm4637, %v4456
  %4644 = vst.msk [vmem:[#allocation3 + $0x30] sm:$0xff] %vm4637, %v4458
  %4645 = vst.msk [vmem:[#allocation3 + $0x38] sm:$0xff] %vm4637, %v4460
  %4646 = vst.msk [vmem:[#allocation3 + $0x40] sm:$0xff] %vm4637, %v4462
  %4647 = vst.msk [vmem:[#allocation3 + $0x48] sm:$0xff] %vm4637, %v4464
  %4648 = vst.msk [vmem:[#allocation3 + $0x50] sm:$0xff] %vm4637, %v4466
  %4649 = vst.msk [vmem:[#allocation3 + $0x58] sm:$0xff] %vm4637, %v4468
  %4650 = vst.msk [vmem:[#allocation3 + $0x60] sm:$0xff] %vm4637, %v4470
  %4651 = vst.msk [vmem:[#allocation3 + $0x68] sm:$0xff] %vm4637, %v4472
  %4652 = vst.msk [vmem:[#allocation3 + $0x70] sm:$0xff] %vm4637, %v4474
  %4653 = vst.msk [vmem:[#allocation3 + $0x78] sm:$0xff] %vm4637, %v4476
  %4654 = vst.msk [vmem:[#allocation3 + $0x80] sm:$0xff] %vm4637, %v4478
  %4655 = vst.msk [vmem:[#allocation3 + $0x88] sm:$0xff] %vm4637, %v4480
  %4656 = vst.msk [vmem:[#allocation3 + $0x90] sm:$0xff] %vm4637, %v4482
  %4657 = vst.msk [vmem:[#allocation3 + $0x98] sm:$0xff] %vm4637, %v4484
  %4658 = vst.msk [vmem:[#allocation3 + $0xa0] sm:$0xff] %vm4637, %v4486
  %4659 = vst.msk [vmem:[#allocation3 + $0xa8] sm:$0xff] %vm4637, %v4488
  %4660 = vst.msk [vmem:[#allocation3 + $0xb0] sm:$0xff] %vm4637, %v4490
  %4661 = vst.msk [vmem:[#allocation3 + $0xb8] sm:$0xff] %vm4637, %v4492
  %4662 = vst.msk [vmem:[#allocation3 + $0xc0] sm:$0xff] %vm4637, %v4494
  %4663 = vst.msk [vmem:[#allocation3 + $0xc8] sm:$0xff] %vm4637, %v4496
  %4664 = vst.msk [vmem:[#allocation3 + $0xd0] sm:$0xff] %vm4637, %v4498
  %4665 = vst.msk [vmem:[#allocation3 + $0xd8] sm:$0xff] %vm4637, %v4500
  %4666 = vst.msk [vmem:[#allocation3 + $0xe0] sm:$0xff] %vm4637, %v4502
  %4667 = vst.msk [vmem:[#allocation3 + $0xe8] sm:$0xff] %vm4637, %v4504
  %4668 = vst.msk [vmem:[#allocation3 + $0xf0] sm:$0xff] %vm4637, %v4506
  %4669 = vst.msk [vmem:[#allocation3 + $0xf8] sm:$0xff] %vm4637, %v4508
  %4670 = vst.msk [vmem:[#allocation3 + $0x100] sm:$0xff] %vm4637, %v4510
  %4671 = vst.msk [vmem:[#allocation3 + $0x108] sm:$0xff] %vm4637, %v4512
  %4672 = vst.msk [vmem:[#allocation3 + $0x110] sm:$0xff] %vm4637, %v4514
  %4673 = vst.msk [vmem:[#allocation3 + $0x118] sm:$0xff] %vm4637, %v4516
  %4674 = vst.msk [vmem:[#allocation3 + $0x120] sm:$0xff] %vm4637, %v4518
  %4675 = vst.msk [vmem:[#allocation3 + $0x128] sm:$0xff] %vm4637, %v4520
  %4676 = vst.msk [vmem:[#allocation3 + $0x130] sm:$0xff] %vm4637, %v4522
  %4677 = vst.msk [vmem:[#allocation3 + $0x138] sm:$0xff] %vm4637, %v4524
  %4678 = vst.msk [vmem:[#allocation3 + $0x140] sm:$0xff] %vm4637, %v4526
  %4679 = vst.msk [vmem:[#allocation3 + $0x148] sm:$0xff] %vm4637, %v4528
  %4680 = vst.msk [vmem:[#allocation3 + $0x150] sm:$0xff] %vm4637, %v4530
  %4681 = vst.msk [vmem:[#allocation3 + $0x158] sm:$0xff] %vm4637, %v4532
  %4682 = vst.msk [vmem:[#allocation3 + $0x160] sm:$0xff] %vm4637, %v4534
  %4683 = vst.msk [vmem:[#allocation3 + $0x168] sm:$0xff] %vm4637, %v4536
  %4684 = vst.msk [vmem:[#allocation3 + $0x170] sm:$0xff] %vm4637, %v4538
  %4685 = vst.msk [vmem:[#allocation3 + $0x178] sm:$0xff] %vm4637, %v4540
  %4686 = vst.msk [vmem:[#allocation3 + $0x180] sm:$0xff] %vm4637, %v4542
  %4687 = vst.msk [vmem:[#allocation3 + $0x188] sm:$0xff] %vm4637, %v4544
  %4688 = vst.msk [vmem:[#allocation3 + $0x190] sm:$0xff] %vm4637, %v4546
  %4689 = vst.msk [vmem:[#allocation3 + $0x198] sm:$0xff] %vm4637, %v4548
  %4690 = vst.msk [vmem:[#allocation3 + $0x1a0] sm:$0xff] %vm4637, %v4550
  %4691 = vst.msk [vmem:[#allocation3 + $0x1a8] sm:$0xff] %vm4637, %v4552
  %4692 = vst.msk [vmem:[#allocation3 + $0x1b0] sm:$0xff] %vm4637, %v4554
  %4693 = vst.msk [vmem:[#allocation3 + $0x1b8] sm:$0xff] %vm4637, %v4556
  %4694 = vst.msk [vmem:[#allocation3 + $0x1c0] sm:$0xff] %vm4637, %v4558
  %4695 = vst.msk [vmem:[#allocation3 + $0x1c8] sm:$0xff] %vm4637, %v4560
  %4696 = vst.msk [vmem:[#allocation3 + $0x1d0] sm:$0xff] %vm4637, %v4562
  %4697 = vst.msk [vmem:[#allocation3 + $0x1d8] sm:$0xff] %vm4637, %v4564
  %4698 = vst.msk [vmem:[#allocation3 + $0x1e0] sm:$0xff] %vm4637, %v4566
  %4699 = vst.msk [vmem:[#allocation3 + $0x1e8] sm:$0xff] %vm4637, %v4568
  %4700 = vst.msk [vmem:[#allocation3 + $0x1f0] sm:$0xff] %vm4637, %v4570
  %4701 = vst.msk [vmem:[#allocation3 + $0x1f8] sm:$0xff] %vm4637, %v4572
  %v4702 = vld [vmem:[#allocation3] sm:$0xff]
  %v4703 = vld [vmem:[#allocation3 + $0x8] sm:$0xff]
  %v4704 = vld [vmem:[#allocation3 + $0x10] sm:$0xff]
  %v4705 = vld [vmem:[#allocation3 + $0x18] sm:$0xff]
  %v4706 = vld [vmem:[#allocation3 + $0x20] sm:$0xff]
  %v4707 = vld [vmem:[#allocation3 + $0x28] sm:$0xff]
  %v4708 = vld [vmem:[#allocation3 + $0x30] sm:$0xff]
  %v4709 = vld [vmem:[#allocation3 + $0x38] sm:$0xff]
  %v4710 = vld [vmem:[#allocation3 + $0x40] sm:$0xff]
  %v4711 = vld [vmem:[#allocation3 + $0x48] sm:$0xff]
  %v4712 = vld [vmem:[#allocation3 + $0x50] sm:$0xff]
  %v4713 = vld [vmem:[#allocation3 + $0x58] sm:$0xff]
  %v4714 = vld [vmem:[#allocation3 + $0x60] sm:$0xff]
  %v4715 = vld [vmem:[#allocation3 + $0x68] sm:$0xff]
  %v4716 = vld [vmem:[#allocation3 + $0x70] sm:$0xff]
  %v4717 = vld [vmem:[#allocation3 + $0x78] sm:$0xff]
  %v4718 = vld [vmem:[#allocation3 + $0x80] sm:$0xff]
  %v4719 = vld [vmem:[#allocation3 + $0x88] sm:$0xff]
  %v4720 = vld [vmem:[#allocation3 + $0x90] sm:$0xff]
  %v4721 = vld [vmem:[#allocation3 + $0x98] sm:$0xff]
  %v4722 = vld [vmem:[#allocation3 + $0xa0] sm:$0xff]
  %v4723 = vld [vmem:[#allocation3 + $0xa8] sm:$0xff]
  %v4724 = vld [vmem:[#allocation3 + $0xb0] sm:$0xff]
  %v4725 = vld [vmem:[#allocation3 + $0xb8] sm:$0xff]
  %v4726 = vld [vmem:[#allocation3 + $0xc0] sm:$0xff]
  %v4727 = vld [vmem:[#allocation3 + $0xc8] sm:$0xff]
  %v4728 = vld [vmem:[#allocation3 + $0xd0] sm:$0xff]
  %v4729 = vld [vmem:[#allocation3 + $0xd8] sm:$0xff]
  %v4730 = vld [vmem:[#allocation3 + $0xe0] sm:$0xff]
  %v4731 = vld [vmem:[#allocation3 + $0xe8] sm:$0xff]
  %v4732 = vld [vmem:[#allocation3 + $0xf0] sm:$0xff]
  %v4733 = vld [vmem:[#allocation3 + $0xf8] sm:$0xff]
  %v4734 = vld [vmem:[#allocation3 + $0x100] sm:$0xff]
  %v4735 = vld [vmem:[#allocation3 + $0x108] sm:$0xff]
  %v4736 = vld [vmem:[#allocation3 + $0x110] sm:$0xff]
  %v4737 = vld [vmem:[#allocation3 + $0x118] sm:$0xff]
  %v4738 = vld [vmem:[#allocation3 + $0x120] sm:$0xff]
  %v4739 = vld [vmem:[#allocation3 + $0x128] sm:$0xff]
  %v4740 = vld [vmem:[#allocation3 + $0x130] sm:$0xff]
  %v4741 = vld [vmem:[#allocation3 + $0x138] sm:$0xff]
  %v4742 = vld [vmem:[#allocation3 + $0x140] sm:$0xff]
  %v4743 = vld [vmem:[#allocation3 + $0x148] sm:$0xff]
  %v4744 = vld [vmem:[#allocation3 + $0x150] sm:$0xff]
  %v4745 = vld [vmem:[#allocation3 + $0x158] sm:$0xff]
  %v4746 = vld [vmem:[#allocation3 + $0x160] sm:$0xff]
  %v4747 = vld [vmem:[#allocation3 + $0x168] sm:$0xff]
  %v4748 = vld [vmem:[#allocation3 + $0x170] sm:$0xff]
  %v4749 = vld [vmem:[#allocation3 + $0x178] sm:$0xff]
  %v4750 = vld [vmem:[#allocation3 + $0x180] sm:$0xff]
  %v4751 = vld [vmem:[#allocation3 + $0x188] sm:$0xff]
  %v4752 = vld [vmem:[#allocation3 + $0x190] sm:$0xff]
  %v4753 = vld [vmem:[#allocation3 + $0x198] sm:$0xff]
  %v4754 = vld [vmem:[#allocation3 + $0x1a0] sm:$0xff]
  %v4755 = vld [vmem:[#allocation3 + $0x1a8] sm:$0xff]
  %v4756 = vld [vmem:[#allocation3 + $0x1b0] sm:$0xff]
  %v4757 = vld [vmem:[#allocation3 + $0x1b8] sm:$0xff]
  %v4758 = vld [vmem:[#allocation3 + $0x1c0] sm:$0xff]
  %v4759 = vld [vmem:[#allocation3 + $0x1c8] sm:$0xff]
  %v4760 = vld [vmem:[#allocation3 + $0x1d0] sm:$0xff]
  %v4761 = vld [vmem:[#allocation3 + $0x1d8] sm:$0xff]
  %v4762 = vld [vmem:[#allocation3 + $0x1e0] sm:$0xff]
  %v4763 = vld [vmem:[#allocation3 + $0x1e8] sm:$0xff]
  %v4764 = vld [vmem:[#allocation3 + $0x1f0] sm:$0xff]
  %v4765 = vld [vmem:[#allocation3 + $0x1f8] sm:$0xff]
  %v4766 = vld [vmem:[%s5] sm:$0xff]
  %v4767 = vld [vmem:[%s6] sm:$0xff]
  %4769 = vset.pattern.permute.xlu0 0
  %4770 = vperm.xlu0 %4769, %v4767
  %v4771 = vpop.permute.xlu0 %4770
  %vm4773 = vcmask 588800
  %v4775 = vsel %vm4773, %v4766, 0
  %v4778 = vsel %vm4773, %v4702, 0
  %v4781 = vsel %vm4773, %v4703, 0
  %v4784 = vsel %vm4773, %v4704, 0
  %v4787 = vsel %vm4773, %v4705, 0
  %v4790 = vsel %vm4773, %v4706, 0
  %v4793 = vsel %vm4773, %v4707, 0
  %v4796 = vsel %vm4773, %v4708, 0
  %v4799 = vsel %vm4773, %v4709, 0
  %v4802 = vsel %vm4773, %v4710, 0
  %v4805 = vsel %vm4773, %v4711, 0
  %v4808 = vsel %vm4773, %v4712, 0
  %v4811 = vsel %vm4773, %v4713, 0
  %v4814 = vsel %vm4773, %v4714, 0
  %v4817 = vsel %vm4773, %v4715, 0
  %v4820 = vsel %vm4773, %v4716, 0
  %v4823 = vsel %vm4773, %v4717, 0
  %v4826 = vsel %vm4773, %v4718, 0
  %v4829 = vsel %vm4773, %v4719, 0
  %v4832 = vsel %vm4773, %v4720, 0
  %v4835 = vsel %vm4773, %v4721, 0
  %v4838 = vsel %vm4773, %v4722, 0
  %v4841 = vsel %vm4773, %v4723, 0
  %v4844 = vsel %vm4773, %v4724, 0
  %v4847 = vsel %vm4773, %v4725, 0
  %v4850 = vsel %vm4773, %v4726, 0
  %v4853 = vsel %vm4773, %v4727, 0
  %v4856 = vsel %vm4773, %v4728, 0
  %v4859 = vsel %vm4773, %v4729, 0
  %v4862 = vsel %vm4773, %v4730, 0
  %v4865 = vsel %vm4773, %v4731, 0
  %v4868 = vsel %vm4773, %v4732, 0
  %v4871 = vsel %vm4773, %v4733, 0
  %v4874 = vsel %vm4773, %v4734, 0
  %v4877 = vsel %vm4773, %v4735, 0
  %v4880 = vsel %vm4773, %v4736, 0
  %v4883 = vsel %vm4773, %v4737, 0
  %v4886 = vsel %vm4773, %v4738, 0
  %v4889 = vsel %vm4773, %v4739, 0
  %v4892 = vsel %vm4773, %v4740, 0
  %v4895 = vsel %vm4773, %v4741, 0
  %v4898 = vsel %vm4773, %v4742, 0
  %v4901 = vsel %vm4773, %v4743, 0
  %v4904 = vsel %vm4773, %v4744, 0
  %v4907 = vsel %vm4773, %v4745, 0
  %v4910 = vsel %vm4773, %v4746, 0
  %v4913 = vsel %vm4773, %v4747, 0
  %v4916 = vsel %vm4773, %v4748, 0
  %v4919 = vsel %vm4773, %v4749, 0
  %v4922 = vsel %vm4773, %v4750, 0
  %v4925 = vsel %vm4773, %v4751, 0
  %v4928 = vsel %vm4773, %v4752, 0
  %v4931 = vsel %vm4773, %v4753, 0
  %v4934 = vsel %vm4773, %v4754, 0
  %v4937 = vsel %vm4773, %v4755, 0
  %v4940 = vsel %vm4773, %v4756, 0
  %v4943 = vsel %vm4773, %v4757, 0
  %v4946 = vsel %vm4773, %v4758, 0
  %v4949 = vsel %vm4773, %v4759, 0
  %v4952 = vsel %vm4773, %v4760, 0
  %v4955 = vsel %vm4773, %v4761, 0
  %v4958 = vsel %vm4773, %v4762, 0
  %v4961 = vsel %vm4773, %v4763, 0
  %v4964 = vsel %vm4773, %v4764, 0
  %v4967 = vsel %vm4773, %v4765, 0
  %4969 = vmatprep.subr.mxu0 0.0
  %4970 = vmatpush1.xpose.msra.mxu0 %v4823
  %4971 = vmatprep.subr.mxu0 0.0
  %4972 = vmatpush1.xpose.msra.mxu0 %v4820
  %4973 = vmatprep.subr.mxu0 0.0
  %4974 = vmatpush1.xpose.msra.mxu0 %v4817
  %4975 = vmatprep.subr.mxu0 0.0
  %4976 = vmatpush1.xpose.msra.mxu0 %v4814
  %4977 = vmatprep.subr.mxu0 0.0
  %4978 = vmatpush1.xpose.msra.mxu0 %v4811
  %4979 = vmatprep.subr.mxu0 0.0
  %4980 = vmatpush1.xpose.msra.mxu0 %v4808
  %4981 = vmatprep.subr.mxu0 0.0
  %4982 = vmatpush1.xpose.msra.mxu0 %v4805
  %4983 = vmatprep.subr.mxu0 0.0
  %4984 = vmatpush1.xpose.msra.mxu0 %v4802
  %4985 = vmatprep.subr.mxu0 0.0
  %4986 = vmatpush1.xpose.msra.mxu0 %v4799
  %4987 = vmatprep.subr.mxu0 0.0
  %4988 = vmatpush1.xpose.msra.mxu0 %v4796
  %4989 = vmatprep.subr.mxu0 0.0
  %4990 = vmatpush1.xpose.msra.mxu0 %v4793
  %4991 = vmatprep.subr.mxu0 0.0
  %4992 = vmatpush1.xpose.msra.mxu0 %v4790
  %4993 = vmatprep.subr.mxu0 0.0
  %4994 = vmatpush1.xpose.msra.mxu0 %v4787
  %4995 = vmatprep.subr.mxu0 0.0
  %4996 = vmatpush1.xpose.msra.mxu0 %v4784
  %4997 = vmatprep.subr.mxu0 0.0
  %4998 = vmatpush1.xpose.msra.mxu0 %v4781
  %4999 = vmatprep.subr.mxu0 0.0
  %5000 = vmatpush1.xpose.msra.mxu0 %v4778
  %5001 = vmatprep.subr.mxu0 0.0
  %5002 = vmatpush2.xpose.msra.mxu0 %v4871
  %5003 = vmatprep.subr.mxu0 0.0
  %5004 = vmatpush2.xpose.msra.mxu0 %v4868
  %5005 = vmatprep.subr.mxu0 0.0
  %5006 = vmatpush2.xpose.msra.mxu0 %v4865
  %5007 = vmatprep.subr.mxu0 0.0
  %5008 = vmatpush2.xpose.msra.mxu0 %v4862
  %5009 = vmatprep.subr.mxu0 0.0
  %5010 = vmatpush2.xpose.msra.mxu0 %v4859
  %5011 = vmatprep.subr.mxu0 0.0
  %5012 = vmatpush2.xpose.msra.mxu0 %v4856
  %5013 = vmatprep.subr.mxu0 0.0
  %5014 = vmatpush2.xpose.msra.mxu0 %v4853
  %5015 = vmatprep.subr.mxu0 0.0
  %5016 = vmatpush2.xpose.msra.mxu0 %v4850
  %5017 = vmatprep.subr.mxu0 0.0
  %5018 = vmatpush2.xpose.msra.mxu0 %v4847
  %5019 = vmatprep.subr.mxu0 0.0
  %5020 = vmatpush2.xpose.msra.mxu0 %v4844
  %5021 = vmatprep.subr.mxu0 0.0
  %5022 = vmatpush2.xpose.msra.mxu0 %v4841
  %5023 = vmatprep.subr.mxu0 0.0
  %5024 = vmatpush2.xpose.msra.mxu0 %v4838
  %5025 = vmatprep.subr.mxu0 0.0
  %5026 = vmatpush2.xpose.msra.mxu0 %v4835
  %5027 = vmatprep.subr.mxu0 0.0
  %5028 = vmatpush2.xpose.msra.mxu0 %v4832
  %5029 = vmatprep.subr.mxu0 0.0
  %5030 = vmatpush2.xpose.msra.mxu0 %v4829
  %5031 = vmatprep.subr.mxu0 0.0
  %5032 = vmatpush2.xpose.msra.mxu0 %v4826
  %5033 = vmatprep.mubr.f32.mxu0 0.0
  %5034 = vmatmul.mubr.f32.gmra.mxu0 %v4775
  %v5035 = vpop.f32.mrf.mxu0
  %v5036 = vadd.f32 %v4771, %v5035
  %v5037 = vpop.f32.mrf.mxu0
  %v5038 = vadd.f32 %v4771, %v5037
  %5039 = vdwg.mxu0
  %5040 = vmatprep.subr.mxu0 0.0
  %5041 = vmatpush1.xpose.msra.mxu0 %v4919
  %5042 = vmatprep.subr.mxu0 0.0
  %5043 = vmatpush1.xpose.msra.mxu0 %v4916
  %5044 = vmatprep.subr.mxu0 0.0
  %5045 = vmatpush1.xpose.msra.mxu0 %v4913
  %5046 = vmatprep.subr.mxu0 0.0
  %5047 = vmatpush1.xpose.msra.mxu0 %v4910
  %5048 = vmatprep.subr.mxu0 0.0
  %5049 = vmatpush1.xpose.msra.mxu0 %v4907
  %5050 = vmatprep.subr.mxu0 0.0
  %5051 = vmatpush1.xpose.msra.mxu0 %v4904
  %5052 = vmatprep.subr.mxu0 0.0
  %5053 = vmatpush1.xpose.msra.mxu0 %v4901
  %5054 = vmatprep.subr.mxu0 0.0
  %5055 = vmatpush1.xpose.msra.mxu0 %v4898
  %5056 = vmatprep.subr.mxu0 0.0
  %5057 = vmatpush1.xpose.msra.mxu0 %v4895
  %5058 = vmatprep.subr.mxu0 0.0
  %5059 = vmatpush1.xpose.msra.mxu0 %v4892
  %5060 = vmatprep.subr.mxu0 0.0
  %5061 = vmatpush1.xpose.msra.mxu0 %v4889
  %5062 = vmatprep.subr.mxu0 0.0
  %5063 = vmatpush1.xpose.msra.mxu0 %v4886
  %5064 = vmatprep.subr.mxu0 0.0
  %5065 = vmatpush1.xpose.msra.mxu0 %v4883
  %5066 = vmatprep.subr.mxu0 0.0
  %5067 = vmatpush1.xpose.msra.mxu0 %v4880
  %5068 = vmatprep.subr.mxu0 0.0
  %5069 = vmatpush1.xpose.msra.mxu0 %v4877
  %5070 = vmatprep.subr.mxu0 0.0
  %5071 = vmatpush1.xpose.msra.mxu0 %v4874
  %5072 = vmatprep.subr.mxu0 0.0
  %5073 = vmatpush2.xpose.msra.mxu0 %v4967
  %5074 = vmatprep.subr.mxu0 0.0
  %5075 = vmatpush2.xpose.msra.mxu0 %v4964
  %5076 = vmatprep.subr.mxu0 0.0
  %5077 = vmatpush2.xpose.msra.mxu0 %v4961
  %5078 = vmatprep.subr.mxu0 0.0
  %5079 = vmatpush2.xpose.msra.mxu0 %v4958
  %5080 = vmatprep.subr.mxu0 0.0
  %5081 = vmatpush2.xpose.msra.mxu0 %v4955
  %5082 = vmatprep.subr.mxu0 0.0
  %5083 = vmatpush2.xpose.msra.mxu0 %v4952
  %5084 = vmatprep.subr.mxu0 0.0
  %5085 = vmatpush2.xpose.msra.mxu0 %v4949
  %5086 = vmatprep.subr.mxu0 0.0
  %5087 = vmatpush2.xpose.msra.mxu0 %v4946
  %5088 = vmatprep.subr.mxu0 0.0
  %5089 = vmatpush2.xpose.msra.mxu0 %v4943
  %5090 = vmatprep.subr.mxu0 0.0
  %5091 = vmatpush2.xpose.msra.mxu0 %v4940
  %5092 = vmatprep.subr.mxu0 0.0
  %5093 = vmatpush2.xpose.msra.mxu0 %v4937
  %5094 = vmatprep.subr.mxu0 0.0
  %5095 = vmatpush2.xpose.msra.mxu0 %v4934
  %5096 = vmatprep.subr.mxu0 0.0
  %5097 = vmatpush2.xpose.msra.mxu0 %v4931
  %5098 = vmatprep.subr.mxu0 0.0
  %5099 = vmatpush2.xpose.msra.mxu0 %v4928
  %5100 = vmatprep.subr.mxu0 0.0
  %5101 = vmatpush2.xpose.msra.mxu0 %v4925
  %5102 = vmatprep.subr.mxu0 0.0
  %5103 = vmatpush2.xpose.msra.mxu0 %v4922
  %5104 = vmatprep.mubr.f32.mxu0 0.0
  %5105 = vmatmul.mubr.f32.gmra.mxu0 %v4775
  %v5106 = vpop.f32.mrf.mxu0
  %v5107 = vadd.f32 %v4771, %v5106
  %v5108 = vpop.f32.mrf.mxu0
  %v5109 = vadd.f32 %v4771, %v5108
  %5110 = vdwg.mxu0
  %5111 = vst [vmem:[%s7] sm:$0xff] %v5036
  %5112 = vst [vmem:[%s7 + $0x8] sm:$0xff] %v5038
  %5113 = vst [vmem:[%s7 + $0x10] sm:$0xff] %v5107
  %5114 = vst [vmem:[%s7 + $0x18] sm:$0xff] %v5109
  // Predicated region
  $region30: #{cbam_forward.1} parent=0 // pred_check
    _
  $region31: #{cbam_forward.1} parent=0 // pred_check_branch
    %5116 = sbr.rel (0) target = $region33
  $region32: #{cbam_forward.1} parent=0 // pred_region
    _
  $region33: #{cbam_forward.1} parent=0 // pred_fallthru
    _
  // Predicated region
  $region34: #{cbam_forward.1} parent=0 // pred_check
    _
  $region35: #{cbam_forward.1} parent=0 // pred_check_branch
    %5118 = sbr.rel (0) target = $region37
  $region36: #{cbam_forward.1} parent=0 // pred_region
    _
  $region37: #{cbam_forward.1} parent=0 // pred_fallthru
    _

</llo_original>
